<compile_context>
chip_gen: v6e
topology: v6e:2x2x1
jax: 0.10.0
libtpu: 0.0.40
codegen_flags: <defaults>
</compile_context>

<pallas_src>
import functools

import jax
import jax.numpy as jnp
from jax.experimental import pallas as pl
from jax.experimental.pallas import tpu as pltpu


# ----------------------------------------------------------------------------
# Pallas kernel 1: 1x1x1 conv, channels-first:  (C2, C1) @ (C1, D*H*W) + bias
# One grid step per batch element; output last dim = D*H*W (lane-dense).
# ----------------------------------------------------------------------------
def _conv1x1_kernel(x_ref, w_ref, b_ref, o_ref):
    # x_ref: (1, C1, S) f32, w_ref: (C2, C1) bf16, b_ref: (C2, 1) f32
    xv = x_ref[0].astype(jnp.bfloat16)
    y = jnp.dot(w_ref[...], xv, preferred_element_type=jnp.float32)  # (C2, S)
    y = y + b_ref[...]
    o_ref[...] = y[None].astype(o_ref.dtype)


def conv1x1(x, w, b):
    # x: (N, C1, D, H, W)  [PyTorch NCDHW, no transpose needed]
    # w: (C1, C2), b: (C2,)
    N, C1, D, H, W = x.shape
    C2 = w.shape[1]
    S = D * H * W
    # TODO(synk): for very large volumes S should be tiled; at UpBlock sizes a
    # single per-batch block fits VMEM trivially.
    out = pl.pallas_call(
        _conv1x1_kernel,
        out_shape=jax.ShapeDtypeStruct((N, C2, S), jnp.float32),
        grid=(N,),
        in_specs=[
            pl.BlockSpec((1, C1, S), lambda n: (n, 0, 0)),
            pl.BlockSpec((C2, C1), lambda n: (0, 0)),
            pl.BlockSpec((C2, 1), lambda n: (0, 0)),
        ],
        out_specs=pl.BlockSpec((1, C2, S), lambda n: (n, 0, 0)),
        compiler_params=pltpu.CompilerParams(
            dimension_semantics=("parallel",)),
    )(x.reshape(N, C1, S), w.T.astype(jnp.bfloat16),
      b.reshape(C2, 1).astype(jnp.float32))
    return out.reshape(N, C2, D, H, W)


# ----------------------------------------------------------------------------
# Block-banded (Toeplitz) weights: fold the kw tap and the W position into the
# MXU contraction / output-column dimensions.
#   B[kd*3+kh, w_in*Cin+ci, w_out*Cout+co] =
#       w[kd, kh, w_in - w_out + 1, ci, co]   if |w_in - w_out| <= 1 else 0
# W-boundary zero-padding is implicit (rows outside [0, W) simply don't exist).
# ----------------------------------------------------------------------------
def _build_banded_weights(w, W):
    Cin, Cout = w.shape[3], w.shape[4]
    wk = w.reshape(9, 3, Cin, Cout)
    w_in = jnp.arange(W)[:, None]                       # (W, 1)
    w_out = jnp.arange(W)[None, :]                      # (1, W)
    tap = w_in - w_out + 1                              # (W, W)
    valid = (tap >= 0) & (tap <= 2)
    tap = jnp.clip(tap, 0, 2)
    band = wk[:, tap] * valid[None, :, :, None, None].astype(w.dtype)
    # (9, W_in, W_out, Cin, Cout) -> (9, W_in*Cin, W_out*Cout)
    band = band.transpose(0, 1, 3, 2, 4).reshape(9, W * Cin, W * Cout)
    return band.astype(jnp.bfloat16)


# ----------------------------------------------------------------------------
# Pallas kernel 2: Conv3d 3x3x3 (pad=1) + folded BatchNorm + LeakyReLU, fused.
# Grid = (N, D-tiles); padding (D, H) done in-kernel in a VMEM scratch, the W
# padding is handled by the banded weights.  9 lane-dense MXU dots per step.
# ----------------------------------------------------------------------------
def _conv3x3_bn_lrelu_kernel(x_ref, wb_ref, b_ref, scale_ref, shift_ref,
                             o_ref, xbuf_ref, *, TD, H, W, Cin, Cout,
                             negative_slope):
    # x_ref:   (1, D, H, W*Cin)      full (unpadded) volume of batch n
    # wb_ref:  (9, W*Cin, W*Cout)    block-banded weights (bf16)
    # b/scale/shift: (1, W*Cout)     f32, tiled per output column (w, cout)
    # o_ref:   (1, 1, TD*H, W*Cout)  lane-dense output tile
    # xbuf_ref:(TD+2, H+2, W*Cin)    f32 scratch, zero-padded D/H window
    dt = pl.program_id(1)
    n_dt = pl.num_programs(1)
    d0 = dt * TD
    WC_in = W * Cin

    # ---- in-kernel zero padding (replaces host-side jnp.pad) ----
    xbuf_ref[...] = jnp.zeros_like(xbuf_ref)
    xbuf_ref[pl.ds(1, TD), pl.ds(1, H), :] = (
        x_ref[0, pl.ds(d0, TD), :, :].astype(jnp.float32))

    @pl.when(dt > 0)
    def _():  # lower D-halo plane
        xbuf_ref[pl.ds(0, 1), pl.ds(1, H), :] = (
            x_ref[0, pl.ds(d0 - 1, 1), :, :].astype(jnp.float32))

    @pl.when(dt + 1 < n_dt)
    def _():  # upper D-halo plane
        xbuf_ref[pl.ds(TD + 1, 1), pl.ds(1, H), :] = (
            x_ref[0, pl.ds(d0 + TD, 1), :, :].astype(jnp.float32))

    # ---- conv as 9 lane-dense MXU matmuls (kd, kh unrolled) ----
    acc = jnp.zeros((TD * H, W * Cout), jnp.float32)
    for kd in range(3):
        for kh in range(3):
            lhs = xbuf_ref[kd:kd + TD, kh:kh + H, :]
            lhs = lhs.reshape(TD * H, WC_in).astype(jnp.bfloat16)
            acc = acc + jnp.dot(lhs, wb_ref[kd * 3 + kh],
                                preferred_element_type=jnp.float32)

    # ---- bias + BatchNorm (running stats, folded) + LeakyReLU, f32 ----
    acc = acc + b_ref[...]
    acc = acc * scale_ref[...] + shift_ref[...]
    acc = jnp.where(acc >= 0, acc, negative_slope * acc)

    o_ref[...] = acc[None, None].astype(o_ref.dtype)


def conv3x3_bn_lrelu(x, w, b, bn_scale, bn_shift, *, negative_slope=0.01,
                     out_dtype=jnp.float32, d_tile=4):
    # x: (N, D, H, W, Cin) channels-last, w: (3, 3, 3, Cin, Cout)
    N, D, H, W, Cin = x.shape
    Cout = w.shape[-1]
    TD = max(1, min(d_tile, D))
    while D % TD:
        TD -= 1
    n_dt = D // TD
    rows, cols = TD * H, W * Cout

    wb = _build_banded_weights(w, W)                       # (9, W*Cin, W*Cout)
    b_t = jnp.tile(b.astype(jnp.float32), W).reshape(1, cols)
    s_t = jnp.tile(bn_scale.astype(jnp.float32), W).reshape(1, cols)
    h_t = jnp.tile(bn_shift.astype(jnp.float32), W).reshape(1, cols)
    xf = x.reshape(N, D, H, W * Cin)                       # free reshape

    kernel = functools.partial(_conv3x3_bn_lrelu_kernel, TD=TD, H=H, W=W,
                               Cin=Cin, Cout=Cout,
                               negative_slope=negative_slope)
    # TODO(synk): for very large W the banded weights scale as W^2; tile W too.
    out = pl.pallas_call(
        kernel,
        out_shape=jax.ShapeDtypeStruct((N, n_dt, rows, cols), out_dtype),
        grid=(N, n_dt),
        in_specs=[
            pl.BlockSpec((1, D, H, W * Cin), lambda n, d: (n, 0, 0, 0)),
            pl.BlockSpec((9, W * Cin, cols), lambda n, d: (0, 0, 0)),
            pl.BlockSpec((1, cols), lambda n, d: (0, 0)),
            pl.BlockSpec((1, cols), lambda n, d: (0, 0)),
            pl.BlockSpec((1, cols), lambda n, d: (0, 0)),
        ],
        out_specs=pl.BlockSpec((1, 1, rows, cols), lambda n, d: (n, d, 0, 0)),
        scratch_shapes=[pltpu.VMEM((TD + 2, H + 2, W * Cin), jnp.float32)],
        compiler_params=pltpu.CompilerParams(
            dimension_semantics=("parallel", "parallel"),
            vmem_limit_bytes=32 * 1024 * 1024),
    )(xf, wb, b_t, s_t, h_t)
    # (N, n_dt, TD*H, W*Cout) has memory order n, d, h, w, c -> free reshape.
    return out.reshape(N, D, H, W, Cout)


# ----------------------------------------------------------------------------
# Trilinear upsample (scale 2, align_corners=True) — JAX glue.
# TODO(synk): gather-based interpolation kept in plain JAX; fusing it into the
#             producer side of the first conv3x3 kernel is left for later.
# ----------------------------------------------------------------------------
def _interp_axis_ac(x, axis, out_size):
    in_size = x.shape[axis]
    if in_size == 1:
        return jnp.repeat(x, out_size, axis=axis)
    src = jnp.arange(out_size, dtype=jnp.float32) * (in_size - 1) / (out_size - 1)
    i0 = jnp.clip(jnp.floor(src).astype(jnp.int32), 0, in_size - 2)
    frac = src - i0.astype(jnp.float32)
    x0 = jnp.take(x, i0, axis=axis)
    x1 = jnp.take(x, i0 + 1, axis=axis)
    shape = [1] * x.ndim
    shape[axis] = out_size
    frac = frac.reshape(shape)
    return x0 * (1.0 - frac) + x1 * frac


def upsample_trilinear_ac2x(x):  # x: NDHWC
    _, D, H, W, _ = x.shape
    x = _interp_axis_ac(x, 1, 2 * D)
    x = _interp_axis_ac(x, 2, 2 * H)
    x = _interp_axis_ac(x, 3, 2 * W)
    return x


# ----------------------------------------------------------------------------
# UpBlock forward (trilinear=True path), eval-mode semantics.
# ----------------------------------------------------------------------------
def upblock_forward(params, x1, x2, *, negative_slope=0.01):
    # x1: (N, C1, D, H, W), x2: (N, C2, 2D, 2H, 2W) — PyTorch NCDHW.
    y = conv1x1(x1, params["w1x1"], params["b1x1"])        # (N, C2, D, H, W)
    y = jnp.transpose(y, (0, 2, 3, 4, 1))                  # NDHWC (small volume)
    y = upsample_trilinear_ac2x(y)                         # (N, 2D, 2H, 2W, C2)
    x2t = jnp.transpose(x2, (0, 2, 3, 4, 1))
    x = jnp.concatenate([x2t, y], axis=-1)                 # torch.cat([x2, x1], 1)
    # ConvBlock: Dropout is identity in eval(); BatchNorm uses running stats
    # folded into scale/shift.  Intermediate activation kept in bf16.
    x = conv3x3_bn_lrelu(x, params["wc1"], params["bc1"],
                         params["bn1_scale"], params["bn1_shift"],
                         negative_slope=negative_slope, out_dtype=jnp.bfloat16)
    x = conv3x3_bn_lrelu(x, params["wc2"], params["bc2"],
                         params["bn2_scale"], params["bn2_shift"],
                         negative_slope=negative_slope, out_dtype=jnp.float32)
    return jnp.transpose(x, (0, 4, 1, 2, 3))               # back to NCDHW


# ----------------------------------------------------------------------------
# Deterministic synthetic parameter initialization.
# ----------------------------------------------------------------------------
def init_params(key, in_channels1, in_channels2, out_channels):
    ks = jax.random.split(key, 10)

    def u(k, shape, fan_in):
        bound = 1.0 / jnp.sqrt(float(fan_in))
        return jax.random.uniform(k, shape, jnp.float32, -bound, bound)

    cmid = in_channels2 * 2
    p = {}
    p["w1x1"] = u(ks[0], (in_channels1, in_channels2), in_channels1)
    p["b1x1"] = u(ks[1], (in_channels2,), in_channels1)
    p["wc1"] = u(ks[2], (3, 3, 3, cmid, out_channels), cmid * 27)
    p["bc1"] = u(ks[3], (out_channels,), cmid * 27)
    p["wc2"] = u(ks[4], (3, 3, 3, out_channels, out_channels),
                 out_channels * 27)
    p["bc2"] = u(ks[5], (out_channels,), out_channels * 27)

    eps = 1e-5
    for i, (kg, kb) in enumerate([(ks[6], ks[7]), (ks[8], ks[9])], start=1):
        gamma = 1.0 + 0.1 * jax.random.normal(kg, (out_channels,), jnp.float32)
        beta = 0.1 * jax.random.normal(kb, (out_channels,), jnp.float32)
        running_mean = jnp.zeros((out_channels,), jnp.float32)
        running_var = jnp.ones((out_channels,), jnp.float32)
        scale = gamma / jnp.sqrt(running_var + eps)
        shift = beta - running_mean * scale
        p[f"bn{i}_scale"] = scale
        p[f"bn{i}_shift"] = shift
    return p


if __name__ == "__main__":
    key = jax.random.PRNGKey(0)
    k1, k2, kp = jax.random.split(key, 3)

    # UpBlock(in_channels1=16, in_channels2=8, out_channels=8, dropout_p=0.0)
    N, C1, C2, COUT = 2, 16, 8, 8
    D, H, W = 4, 8, 8
    x1 = jax.random.normal(k1, (N, C1, D, H, W), jnp.float32)
    x2 = jax.random.normal(k2, (N, C2, 2 * D, 2 * H, 2 * W), jnp.float32)
    params = init_params(kp, C1, C2, COUT)

    out = jax.jit(upblock_forward)(params, x1, x2)
    out = jax.block_until_ready(out)
    assert out.shape == (N, COUT, 2 * D, 2 * H, 2 * W), out.shape
    assert bool(jnp.all(jnp.isfinite(out)))
    print("KERNEL_OK")
</pallas_src>

<mosaic_0001>
module attributes {stable_mosaic.version = 11 : i64} {
  func.func @_conv1x1_kernel(%arg0: i32, %arg1: memref<1x16x256xf32, #tpu.memory_space<vmem>>, %arg2: memref<8x16xbf16, #tpu.memory_space<vmem>>, %arg3: memref<8x1xf32, #tpu.memory_space<vmem>>, %arg4: memref<1x8x256xf32, #tpu.memory_space<vmem>>) attributes {dimension_semantics = [#tpu.dimension_semantics<parallel>], iteration_bounds = array<i64: 2>, scalar_prefetch = 0 : i64, scratch_operands = 0 : i64, tpu.core_type = #tpu.core_type<tc>, window_params = [{transform_indices = @transform_0, window_bounds = array<i64: 1, 16, 256>}, {pipeline_mode = #tpu.pipeline_mode<synchronous>, transform_indices = @transform_1, window_bounds = array<i64: 8, 16>}, {pipeline_mode = #tpu.pipeline_mode<synchronous>, transform_indices = @transform_2, window_bounds = array<i64: 8, 1>}, {transform_indices = @transform_3, window_bounds = array<i64: 1, 8, 256>}]} {
    %c0 = arith.constant 0 : index
    %c0_0 = arith.constant 0 : index
    %c0_1 = arith.constant 0 : index
    %0 = vector.load %arg1[%c0, %c0_0, %c0_1] : memref<1x16x256xf32, #tpu.memory_space<vmem>>, vector<1x16x256xf32>
    %1 = vector.shape_cast %0 : vector<1x16x256xf32> to vector<16x256xf32>
    %2 = arith.truncf %1 : vector<16x256xf32> to vector<16x256xbf16>
    %c0_2 = arith.constant 0 : index
    %c0_3 = arith.constant 0 : index
    %3 = vector.load %arg2[%c0_2, %c0_3] : memref<8x16xbf16, #tpu.memory_space<vmem>>, vector<8x16xbf16>
    %cst = arith.constant dense<0.000000e+00> : vector<8x256xf32>
    %4 = tpu.matmul %3, %2, %cst {dimension_numbers = #tpu.dot_dimension_numbers<[1], [0], [0], [1], [0, 0, 1, 1], [], []>} : vector<8x16xbf16>, vector<16x256xbf16>, vector<8x256xf32> -> vector<8x256xf32>
    %c0_4 = arith.constant 0 : index
    %c0_5 = arith.constant 0 : index
    %5 = vector.load %arg3[%c0_4, %c0_5] : memref<8x1xf32, #tpu.memory_space<vmem>>, vector<8x1xf32>
    %6 = vector.broadcast %5 : vector<8x1xf32> to vector<8x256xf32>
    %7 = arith.addf %4, %6 : vector<8x256xf32>
    %8 = vector.shape_cast %7 : vector<8x256xf32> to vector<1x8x256xf32>
    %c0_6 = arith.constant 0 : index
    %c0_7 = arith.constant 0 : index
    %c0_8 = arith.constant 0 : index
    %9 = vector.load %arg4[%c0_6, %c0_7, %c0_8] : memref<1x8x256xf32, #tpu.memory_space<vmem>>, vector<1x8x256xf32>
    tpu.vector_store %arg4[%c0_6, %c0_7, %c0_8], %8 {strides = array<i32>} : memref<1x8x256xf32, #tpu.memory_space<vmem>>, vector<1x8x256xf32>,
    return
  }
  func.func @transform_0(%arg0: i32) -> (i32, i32, i32) {
    %c0_i32 = arith.constant 0 : i32
    %c0_i32_0 = arith.constant 0 : i32
    %c0_i32_1 = arith.constant 0 : i32
    return %arg0, %c0_i32, %c0_i32_0 : i32, i32, i32
  }
  func.func @transform_1(%arg0: i32) -> (i32, i32) {
    %c0_i32 = arith.constant 0 : i32
    %c0_i32_0 = arith.constant 0 : i32
    %c0_i32_1 = arith.constant 0 : i32
    return %c0_i32, %c0_i32_0 : i32, i32
  }
  func.func @transform_2(%arg0: i32) -> (i32, i32) {
    %c0_i32 = arith.constant 0 : i32
    %c0_i32_0 = arith.constant 0 : i32
    %c0_i32_1 = arith.constant 0 : i32
    return %c0_i32, %c0_i32_0 : i32, i32
  }
  func.func @transform_3(%arg0: i32) -> (i32, i32, i32) {
    %c0_i32 = arith.constant 0 : i32
    %c0_i32_0 = arith.constant 0 : i32
    %c0_i32_1 = arith.constant 0 : i32
    return %arg0, %c0_i32, %c0_i32_0 : i32, i32, i32
  }
}

module attributes {stable_mosaic.version = 11 : i64} {
  func.func @_conv3x3_bn_lrelu_kernel(%arg0: i32, %arg1: i32, %arg2: memref<1x8x16x256xf32, #tpu.memory_space<vmem>>, %arg3: memref<9x256x128xbf16, #tpu.memory_space<vmem>>, %arg4: memref<1x128xf32, #tpu.memory_space<vmem>>, %arg5: memref<1x128xf32, #tpu.memory_space<vmem>>, %arg6: memref<1x128xf32, #tpu.memory_space<vmem>>, %arg7: memref<1x1x64x128xbf16, #tpu.memory_space<vmem>>, %arg8: memref<6x18x256xf32, #tpu.memory_space<vmem>>) attributes {dimension_semantics = [#tpu.dimension_semantics<parallel>, #tpu.dimension_semantics<parallel>], iteration_bounds = array<i64: 2, 2>, scalar_prefetch = 0 : i64, scratch_operands = 1 : i64, tpu.core_type = #tpu.core_type<tc>, window_params = [{transform_indices = @transform_0, window_bounds = array<i64: 1, 8, 16, 256>}, {pipeline_mode = #tpu.pipeline_mode<synchronous>, transform_indices = @transform_1, window_bounds = array<i64: 9, 256, 128>}, {pipeline_mode = #tpu.pipeline_mode<synchronous>, transform_indices = @transform_2, window_bounds = array<i64: 1, 128>}, {pipeline_mode = #tpu.pipeline_mode<synchronous>, transform_indices = @transform_3, window_bounds = array<i64: 1, 128>}, {pipeline_mode = #tpu.pipeline_mode<synchronous>, transform_indices = @transform_4, window_bounds = array<i64: 1, 128>}, {transform_indices = @transform_5, window_bounds = array<i64: 1, 1, 64, 128>}]} {
    %c4_i32 = arith.constant 4 : i32
    %0 = arith.muli %arg1, %c4_i32 : i32
    %cst = arith.constant 0.000000e+00 : f32
    %1 = vector.broadcast %cst : f32 to vector<6x18x256xf32>
    %c0 = arith.constant 0 : index
    %c0_0 = arith.constant 0 : index
    %c0_1 = arith.constant 0 : index
    %2 = vector.load %arg8[%c0, %c0_0, %c0_1] : memref<6x18x256xf32, #tpu.memory_space<vmem>>, vector<6x18x256xf32>
    tpu.vector_store %arg8[%c0, %c0_0, %c0_1], %1 {strides = array<i32>} : memref<6x18x256xf32, #tpu.memory_space<vmem>>, vector<6x18x256xf32>,
    %c0_2 = arith.constant 0 : index
    %3 = arith.index_cast %0 : i32 to index
    %c0_3 = arith.constant 0 : index
    %c0_4 = arith.constant 0 : index
    %4 = vector.load %arg2[%c0_2, %3, %c0_3, %c0_4] : memref<1x8x16x256xf32, #tpu.memory_space<vmem>>, vector<1x4x16x256xf32>
    %5 = vector.shape_cast %4 : vector<1x4x16x256xf32> to vector<4x16x256xf32>
    %c1 = arith.constant 1 : index
    %c1_5 = arith.constant 1 : index
    %c0_6 = arith.constant 0 : index
    %6 = vector.load %arg8[%c1, %c1_5, %c0_6] : memref<6x18x256xf32, #tpu.memory_space<vmem>>, vector<4x16x256xf32>
    tpu.vector_store %arg8[%c1, %c1_5, %c0_6], %5 {strides = array<i32>} : memref<6x18x256xf32, #tpu.memory_space<vmem>>, vector<4x16x256xf32>,
    %c0_i32 = arith.constant 0 : i32
    %7 = arith.cmpi sgt, %arg1, %c0_i32 : i32
    %8 = arith.extui %7 : i1 to i32
    %c0_i32_7 = arith.constant 0 : i32
    %9 = arith.cmpi ne, %8, %c0_i32_7 : i32
    scf.if %9 {
      %c1_i32_78 = arith.constant 1 : i32
      %95 = arith.subi %0, %c1_i32_78 : i32
      %c0_79 = arith.constant 0 : index
      %96 = arith.index_cast %95 : i32 to index
      %c0_80 = arith.constant 0 : index
      %c0_81 = arith.constant 0 : index
      %97 = vector.load %arg2[%c0_79, %96, %c0_80, %c0_81] : memref<1x8x16x256xf32, #tpu.memory_space<vmem>>, vector<1x1x16x256xf32>
      %98 = vector.shape_cast %97 : vector<1x1x16x256xf32> to vector<1x16x256xf32>
      %c0_82 = arith.constant 0 : index
      %c1_83 = arith.constant 1 : index
      %c0_84 = arith.constant 0 : index
      %99 = vector.load %arg8[%c0_82, %c1_83, %c0_84] : memref<6x18x256xf32, #tpu.memory_space<vmem>>, vector<1x16x256xf32>
      tpu.vector_store %arg8[%c0_82, %c1_83, %c0_84], %98 {strides = array<i32>} : memref<6x18x256xf32, #tpu.memory_space<vmem>>, vector<1x16x256xf32>,
    } else {
    }
    %c1_i32 = arith.constant 1 : i32
    %10 = arith.addi %arg1, %c1_i32 : i32
    %c2_i32 = arith.constant 2 : i32
    %11 = arith.cmpi slt, %10, %c2_i32 : i32
    %12 = arith.extui %11 : i1 to i32
    %c0_i32_8 = arith.constant 0 : i32
    %13 = arith.cmpi ne, %12, %c0_i32_8 : i32
    scf.if %13 {
      %c4_i32_78 = arith.constant 4 : i32
      %95 = arith.addi %0, %c4_i32_78 : i32
      %c0_79 = arith.constant 0 : index
      %96 = arith.index_cast %95 : i32 to index
      %c0_80 = arith.constant 0 : index
      %c0_81 = arith.constant 0 : index
      %97 = vector.load %arg2[%c0_79, %96, %c0_80, %c0_81] : memref<1x8x16x256xf32, #tpu.memory_space<vmem>>, vector<1x1x16x256xf32>
      %98 = vector.shape_cast %97 : vector<1x1x16x256xf32> to vector<1x16x256xf32>
      %c5_82 = arith.constant 5 : index
      %c1_83 = arith.constant 1 : index
      %c0_84 = arith.constant 0 : index
      %99 = vector.load %arg8[%c5_82, %c1_83, %c0_84] : memref<6x18x256xf32, #tpu.memory_space<vmem>>, vector<1x16x256xf32>
      tpu.vector_store %arg8[%c5_82, %c1_83, %c0_84], %98 {strides = array<i32>} : memref<6x18x256xf32, #tpu.memory_space<vmem>>, vector<1x16x256xf32>,
    } else {
    }
    %cst_9 = arith.constant 0.000000e+00 : f32
    %14 = vector.broadcast %cst_9 : f32 to vector<64x128xf32>
    %c0_10 = arith.constant 0 : index
    %c0_11 = arith.constant 0 : index
    %c0_12 = arith.constant 0 : index
    %15 = vector.load %arg8[%c0_10, %c0_11, %c0_12] : memref<6x18x256xf32, #tpu.memory_space<vmem>>, vector<4x16x256xf32>
    %16 = vector.shape_cast %15 : vector<4x16x256xf32> to vector<64x256xf32>
    %17 = arith.truncf %16 : vector<64x256xf32> to vector<64x256xbf16>
    %c0_13 = arith.constant 0 : index
    %c0_14 = arith.constant 0 : index
    %c0_15 = arith.constant 0 : index
    %18 = vector.load %arg3[%c0_13, %c0_14, %c0_15] : memref<9x256x128xbf16, #tpu.memory_space<vmem>>, vector<1x256x128xbf16>
    %19 = vector.shape_cast %18 : vector<1x256x128xbf16> to vector<256x128xbf16>
    %cst_16 = arith.constant dense<0.000000e+00> : vector<64x128xf32>
    %20 = tpu.matmul %17, %19, %cst_16 {dimension_numbers = #tpu.dot_dimension_numbers<[1], [0], [0], [1], [0, 0, 1, 1], [], []>} : vector<64x256xbf16>, vector<256x128xbf16>, vector<64x128xf32> -> vector<64x128xf32>
    %21 = arith.addf %14, %20 : vector<64x128xf32>
    %c0_17 = arith.constant 0 : index
    %c1_18 = arith.constant 1 : index
    %c0_19 = arith.constant 0 : index
    %22 = vector.load %arg8[%c0_17, %c1_18, %c0_19] : memref<6x18x256xf32, #tpu.memory_space<vmem>>, vector<4x16x256xf32>
    %23 = vector.shape_cast %22 : vector<4x16x256xf32> to vector<64x256xf32>
    %24 = arith.truncf %23 : vector<64x256xf32> to vector<64x256xbf16>
    %c1_20 = arith.constant 1 : index
    %c0_21 = arith.constant 0 : index
    %c0_22 = arith.constant 0 : index
    %25 = vector.load %arg3[%c1_20, %c0_21, %c0_22] : memref<9x256x128xbf16, #tpu.memory_space<vmem>>, vector<1x256x128xbf16>
    %26 = vector.shape_cast %25 : vector<1x256x128xbf16> to vector<256x128xbf16>
    %cst_23 = arith.constant dense<0.000000e+00> : vector<64x128xf32>
    %27 = tpu.matmul %24, %26, %cst_23 {dimension_numbers = #tpu.dot_dimension_numbers<[1], [0], [0], [1], [0, 0, 1, 1], [], []>} : vector<64x256xbf16>, vector<256x128xbf16>, vector<64x128xf32> -> vector<64x128xf32>
    %28 = arith.addf %21, %27 : vector<64x128xf32>
    %c0_24 = arith.constant 0 : index
    %c2 = arith.constant 2 : index
    %c0_25 = arith.constant 0 : index
    %29 = vector.load %arg8[%c0_24, %c2, %c0_25] : memref<6x18x256xf32, #tpu.memory_space<vmem>>, vector<4x16x256xf32>
    %30 = vector.shape_cast %29 : vector<4x16x256xf32> to vector<64x256xf32>
    %31 = arith.truncf %30 : vector<64x256xf32> to vector<64x256xbf16>
    %c2_26 = arith.constant 2 : index
    %c0_27 = arith.constant 0 : index
    %c0_28 = arith.constant 0 : index
    %32 = vector.load %arg3[%c2_26, %c0_27, %c0_28] : memref<9x256x128xbf16, #tpu.memory_space<vmem>>, vector<1x256x128xbf16>
    %33 = vector.shape_cast %32 : vector<1x256x128xbf16> to vector<256x128xbf16>
    %cst_29 = arith.constant dense<0.000000e+00> : vector<64x128xf32>
    %34 = tpu.matmul %31, %33, %cst_29 {dimension_numbers = #tpu.dot_dimension_numbers<[1], [0], [0], [1], [0, 0, 1, 1], [], []>} : vector<64x256xbf16>, vector<256x128xbf16>, vector<64x128xf32> -> vector<64x128xf32>
    %35 = arith.addf %28, %34 : vector<64x128xf32>
    %c1_30 = arith.constant 1 : index
    %c0_31 = arith.constant 0 : index
    %c0_32 = arith.constant 0 : index
    %36 = vector.load %arg8[%c1_30, %c0_31, %c0_32] : memref<6x18x256xf32, #tpu.memory_space<vmem>>, vector<4x16x256xf32>
    %37 = vector.shape_cast %36 : vector<4x16x256xf32> to vector<64x256xf32>
    %38 = arith.truncf %37 : vector<64x256xf32> to vector<64x256xbf16>
    %c3 = arith.constant 3 : index
    %c0_33 = arith.constant 0 : index
    %c0_34 = arith.constant 0 : index
    %39 = vector.load %arg3[%c3, %c0_33, %c0_34] : memref<9x256x128xbf16, #tpu.memory_space<vmem>>, vector<1x256x128xbf16>
    %40 = vector.shape_cast %39 : vector<1x256x128xbf16> to vector<256x128xbf16>
    %cst_35 = arith.constant dense<0.000000e+00> : vector<64x128xf32>
    %41 = tpu.matmul %38, %40, %cst_35 {dimension_numbers = #tpu.dot_dimension_numbers<[1], [0], [0], [1], [0, 0, 1, 1], [], []>} : vector<64x256xbf16>, vector<256x128xbf16>, vector<64x128xf32> -> vector<64x128xf32>
    %42 = arith.addf %35, %41 : vector<64x128xf32>
    %c1_36 = arith.constant 1 : index
    %c1_37 = arith.constant 1 : index
    %c0_38 = arith.constant 0 : index
    %43 = vector.load %arg8[%c1_36, %c1_37, %c0_38] : memref<6x18x256xf32, #tpu.memory_space<vmem>>, vector<4x16x256xf32>
    %44 = vector.shape_cast %43 : vector<4x16x256xf32> to vector<64x256xf32>
    %45 = arith.truncf %44 : vector<64x256xf32> to vector<64x256xbf16>
    %c4 = arith.constant 4 : index
    %c0_39 = arith.constant 0 : index
    %c0_40 = arith.constant 0 : index
    %46 = vector.load %arg3[%c4, %c0_39, %c0_40] : memref<9x256x128xbf16, #tpu.memory_space<vmem>>, vector<1x256x128xbf16>
    %47 = vector.shape_cast %46 : vector<1x256x128xbf16> to vector<256x128xbf16>
    %cst_41 = arith.constant dense<0.000000e+00> : vector<64x128xf32>
    %48 = tpu.matmul %45, %47, %cst_41 {dimension_numbers = #tpu.dot_dimension_numbers<[1], [0], [0], [1], [0, 0, 1, 1], [], []>} : vector<64x256xbf16>, vector<256x128xbf16>, vector<64x128xf32> -> vector<64x128xf32>
    %49 = arith.addf %42, %48 : vector<64x128xf32>
    %c1_42 = arith.constant 1 : index
    %c2_43 = arith.constant 2 : index
    %c0_44 = arith.constant 0 : index
    %50 = vector.load %arg8[%c1_42, %c2_43, %c0_44] : memref<6x18x256xf32, #tpu.memory_space<vmem>>, vector<4x16x256xf32>
    %51 = vector.shape_cast %50 : vector<4x16x256xf32> to vector<64x256xf32>
    %52 = arith.truncf %51 : vector<64x256xf32> to vector<64x256xbf16>
    %c5 = arith.constant 5 : index
    %c0_45 = arith.constant 0 : index
    %c0_46 = arith.constant 0 : index
    %53 = vector.load %arg3[%c5, %c0_45, %c0_46] : memref<9x256x128xbf16, #tpu.memory_space<vmem>>, vector<1x256x128xbf16>
    %54 = vector.shape_cast %53 : vector<1x256x128xbf16> to vector<256x128xbf16>
    %cst_47 = arith.constant dense<0.000000e+00> : vector<64x128xf32>
    %55 = tpu.matmul %52, %54, %cst_47 {dimension_numbers = #tpu.dot_dimension_numbers<[1], [0], [0], [1], [0, 0, 1, 1], [], []>} : vector<64x256xbf16>, vector<256x128xbf16>, vector<64x128xf32> -> vector<64x128xf32>
    %56 = arith.addf %49, %55 : vector<64x128xf32>
    %c2_48 = arith.constant 2 : index
    %c0_49 = arith.constant 0 : index
    %c0_50 = arith.constant 0 : index
    %57 = vector.load %arg8[%c2_48, %c0_49, %c0_50] : memref<6x18x256xf32, #tpu.memory_space<vmem>>, vector<4x16x256xf32>
    %58 = vector.shape_cast %57 : vector<4x16x256xf32> to vector<64x256xf32>
    %59 = arith.truncf %58 : vector<64x256xf32> to vector<64x256xbf16>
    %c6 = arith.constant 6 : index
    %c0_51 = arith.constant 0 : index
    %c0_52 = arith.constant 0 : index
    %60 = vector.load %arg3[%c6, %c0_51, %c0_52] : memref<9x256x128xbf16, #tpu.memory_space<vmem>>, vector<1x256x128xbf16>
    %61 = vector.shape_cast %60 : vector<1x256x128xbf16> to vector<256x128xbf16>
    %cst_53 = arith.constant dense<0.000000e+00> : vector<64x128xf32>
    %62 = tpu.matmul %59, %61, %cst_53 {dimension_numbers = #tpu.dot_dimension_numbers<[1], [0], [0], [1], [0, 0, 1, 1], [], []>} : vector<64x256xbf16>, vector<256x128xbf16>, vector<64x128xf32> -> vector<64x128xf32>
    %63 = arith.addf %56, %62 : vector<64x128xf32>
    %c2_54 = arith.constant 2 : index
    %c1_55 = arith.constant 1 : index
    %c0_56 = arith.constant 0 : index
    %64 = vector.load %arg8[%c2_54, %c1_55, %c0_56] : memref<6x18x256xf32, #tpu.memory_space<vmem>>, vector<4x16x256xf32>
    %65 = vector.shape_cast %64 : vector<4x16x256xf32> to vector<64x256xf32>
    %66 = arith.truncf %65 : vector<64x256xf32> to vector<64x256xbf16>
    %c7 = arith.constant 7 : index
    %c0_57 = arith.constant 0 : index
    %c0_58 = arith.constant 0 : index
    %67 = vector.load %arg3[%c7, %c0_57, %c0_58] : memref<9x256x128xbf16, #tpu.memory_space<vmem>>, vector<1x256x128xbf16>
    %68 = vector.shape_cast %67 : vector<1x256x128xbf16> to vector<256x128xbf16>
    %cst_59 = arith.constant dense<0.000000e+00> : vector<64x128xf32>
    %69 = tpu.matmul %66, %68, %cst_59 {dimension_numbers = #tpu.dot_dimension_numbers<[1], [0], [0], [1], [0, 0, 1, 1], [], []>} : vector<64x256xbf16>, vector<256x128xbf16>, vector<64x128xf32> -> vector<64x128xf32>
    %70 = arith.addf %63, %69 : vector<64x128xf32>
    %c2_60 = arith.constant 2 : index
    %c2_61 = arith.constant 2 : index
    %c0_62 = arith.constant 0 : index
    %71 = vector.load %arg8[%c2_60, %c2_61, %c0_62] : memref<6x18x256xf32, #tpu.memory_space<vmem>>, vector<4x16x256xf32>
    %72 = vector.shape_cast %71 : vector<4x16x256xf32> to vector<64x256xf32>
    %73 = arith.truncf %72 : vector<64x256xf32> to vector<64x256xbf16>
    %c8 = arith.constant 8 : index
    %c0_63 = arith.constant 0 : index
    %c0_64 = arith.constant 0 : index
    %74 = vector.load %arg3[%c8, %c0_63, %c0_64] : memref<9x256x128xbf16, #tpu.memory_space<vmem>>, vector<1x256x128xbf16>
    %75 = vector.shape_cast %74 : vector<1x256x128xbf16> to vector<256x128xbf16>
    %cst_65 = arith.constant dense<0.000000e+00> : vector<64x128xf32>
    %76 = tpu.matmul %73, %75, %cst_65 {dimension_numbers = #tpu.dot_dimension_numbers<[1], [0], [0], [1], [0, 0, 1, 1], [], []>} : vector<64x256xbf16>, vector<256x128xbf16>, vector<64x128xf32> -> vector<64x128xf32>
    %77 = arith.addf %70, %76 : vector<64x128xf32>
    %c0_66 = arith.constant 0 : index
    %c0_67 = arith.constant 0 : index
    %78 = vector.load %arg4[%c0_66, %c0_67] : memref<1x128xf32, #tpu.memory_space<vmem>>, vector<1x128xf32>
    %79 = vector.broadcast %78 : vector<1x128xf32> to vector<64x128xf32>
    %80 = arith.addf %77, %79 : vector<64x128xf32>
    %c0_68 = arith.constant 0 : index
    %c0_69 = arith.constant 0 : index
    %81 = vector.load %arg5[%c0_68, %c0_69] : memref<1x128xf32, #tpu.memory_space<vmem>>, vector<1x128xf32>
    %82 = vector.broadcast %81 : vector<1x128xf32> to vector<64x128xf32>
    %83 = arith.mulf %80, %82 : vector<64x128xf32>
    %c0_70 = arith.constant 0 : index
    %c0_71 = arith.constant 0 : index
    %84 = vector.load %arg6[%c0_70, %c0_71] : memref<1x128xf32, #tpu.memory_space<vmem>>, vector<1x128xf32>
    %85 = vector.broadcast %84 : vector<1x128xf32> to vector<64x128xf32>
    %86 = arith.addf %83, %85 : vector<64x128xf32>
    %cst_72 = arith.constant 0.000000e+00 : f32
    %87 = vector.broadcast %cst_72 : f32 to vector<64x128xf32>
    %88 = arith.cmpf oge, %86, %87 : vector<64x128xf32>
    %cst_73 = arith.constant 0.00999999977 : f32
    %89 = vector.broadcast %cst_73 : f32 to vector<64x128xf32>
    %90 = arith.mulf %89, %86 : vector<64x128xf32>
    %91 = arith.select %88, %86, %90 : vector<64x128xi1>, vector<64x128xf32>
    %92 = vector.shape_cast %91 : vector<64x128xf32> to vector<1x1x64x128xf32>
    %93 = arith.truncf %92 : vector<1x1x64x128xf32> to vector<1x1x64x128xbf16>
    %c0_74 = arith.constant 0 : index
    %c0_75 = arith.constant 0 : index
    %c0_76 = arith.constant 0 : index
    %c0_77 = arith.constant 0 : index
    %94 = vector.load %arg7[%c0_74, %c0_75, %c0_76, %c0_77] : memref<1x1x64x128xbf16, #tpu.memory_space<vmem>>, vector<1x1x64x128xbf16>
    tpu.vector_store %arg7[%c0_74, %c0_75, %c0_76, %c0_77], %93 {strides = array<i32>} : memref<1x1x64x128xbf16, #tpu.memory_space<vmem>>, vector<1x1x64x128xbf16>,
    return
  }
  func.func @transform_0(%arg0: i32, %arg1: i32) -> (i32, i32, i32, i32) {
    %c0_i32 = arith.constant 0 : i32
    %c0_i32_0 = arith.constant 0 : i32
    %c0_i32_1 = arith.constant 0 : i32
    %c0_i32_2 = arith.constant 0 : i32
    return %arg0, %c0_i32, %c0_i32_0, %c0_i32_1 : i32, i32, i32, i32
  }
  func.func @transform_1(%arg0: i32, %arg1: i32) -> (i32, i32, i32) {
    %c0_i32 = arith.constant 0 : i32
    %c0_i32_0 = arith.constant 0 : i32
    %c0_i32_1 = arith.constant 0 : i32
    %c0_i32_2 = arith.constant 0 : i32
    return %c0_i32, %c0_i32_0, %c0_i32_1 : i32, i32, i32
  }
  func.func @transform_2(%arg0: i32, %arg1: i32) -> (i32, i32) {
    %c0_i32 = arith.constant 0 : i32
    %c0_i32_0 = arith.constant 0 : i32
    %c0_i32_1 = arith.constant 0 : i32
    return %c0_i32, %c0_i32_0 : i32, i32
  }
  func.func @transform_3(%arg0: i32, %arg1: i32) -> (i32, i32) {
    %c0_i32 = arith.constant 0 : i32
    %c0_i32_0 = arith.constant 0 : i32
    %c0_i32_1 = arith.constant 0 : i32
    return %c0_i32, %c0_i32_0 : i32, i32
  }
  func.func @transform_4(%arg0: i32, %arg1: i32) -> (i32, i32) {
    %c0_i32 = arith.constant 0 : i32
    %c0_i32_0 = arith.constant 0 : i32
    %c0_i32_1 = arith.constant 0 : i32
    return %c0_i32, %c0_i32_0 : i32, i32
  }
  func.func @transform_5(%arg0: i32, %arg1: i32) -> (i32, i32, i32, i32) {
    %c0_i32 = arith.constant 0 : i32
    %c0_i32_0 = arith.constant 0 : i32
    %c0_i32_1 = arith.constant 0 : i32
    return %arg0, %arg1, %c0_i32, %c0_i32_0 : i32, i32, i32, i32
  }
}

module attributes {stable_mosaic.version = 11 : i64} {
  func.func @_conv3x3_bn_lrelu_kernel(%arg0: i32, %arg1: i32, %arg2: memref<1x8x16x128xbf16, #tpu.memory_space<vmem>>, %arg3: memref<9x128x128xbf16, #tpu.memory_space<vmem>>, %arg4: memref<1x128xf32, #tpu.memory_space<vmem>>, %arg5: memref<1x128xf32, #tpu.memory_space<vmem>>, %arg6: memref<1x128xf32, #tpu.memory_space<vmem>>, %arg7: memref<1x1x64x128xf32, #tpu.memory_space<vmem>>, %arg8: memref<6x18x128xf32, #tpu.memory_space<vmem>>) attributes {dimension_semantics = [#tpu.dimension_semantics<parallel>, #tpu.dimension_semantics<parallel>], iteration_bounds = array<i64: 2, 2>, scalar_prefetch = 0 : i64, scratch_operands = 1 : i64, tpu.core_type = #tpu.core_type<tc>, window_params = [{transform_indices = @transform_0, window_bounds = array<i64: 1, 8, 16, 128>}, {pipeline_mode = #tpu.pipeline_mode<synchronous>, transform_indices = @transform_1, window_bounds = array<i64: 9, 128, 128>}, {pipeline_mode = #tpu.pipeline_mode<synchronous>, transform_indices = @transform_2, window_bounds = array<i64: 1, 128>}, {pipeline_mode = #tpu.pipeline_mode<synchronous>, transform_indices = @transform_3, window_bounds = array<i64: 1, 128>}, {pipeline_mode = #tpu.pipeline_mode<synchronous>, transform_indices = @transform_4, window_bounds = array<i64: 1, 128>}, {transform_indices = @transform_5, window_bounds = array<i64: 1, 1, 64, 128>}]} {
    %c4_i32 = arith.constant 4 : i32
    %0 = arith.muli %arg1, %c4_i32 : i32
    %cst = arith.constant 0.000000e+00 : f32
    %1 = vector.broadcast %cst : f32 to vector<6x18x128xf32>
    %c0 = arith.constant 0 : index
    %c0_0 = arith.constant 0 : index
    %c0_1 = arith.constant 0 : index
    %2 = vector.load %arg8[%c0, %c0_0, %c0_1] : memref<6x18x128xf32, #tpu.memory_space<vmem>>, vector<6x18x128xf32>
    tpu.vector_store %arg8[%c0, %c0_0, %c0_1], %1 {strides = array<i32>} : memref<6x18x128xf32, #tpu.memory_space<vmem>>, vector<6x18x128xf32>,
    %c0_2 = arith.constant 0 : index
    %3 = arith.index_cast %0 : i32 to index
    %c0_3 = arith.constant 0 : index
    %c0_4 = arith.constant 0 : index
    %4 = vector.load %arg2[%c0_2, %3, %c0_3, %c0_4] : memref<1x8x16x128xbf16, #tpu.memory_space<vmem>>, vector<1x4x16x128xbf16>
    %5 = vector.shape_cast %4 : vector<1x4x16x128xbf16> to vector<4x16x128xbf16>
    %6 = arith.extf %5 : vector<4x16x128xbf16> to vector<4x16x128xf32>
    %c1 = arith.constant 1 : index
    %c1_5 = arith.constant 1 : index
    %c0_6 = arith.constant 0 : index
    %7 = vector.load %arg8[%c1, %c1_5, %c0_6] : memref<6x18x128xf32, #tpu.memory_space<vmem>>, vector<4x16x128xf32>
    tpu.vector_store %arg8[%c1, %c1_5, %c0_6], %6 {strides = array<i32>} : memref<6x18x128xf32, #tpu.memory_space<vmem>>, vector<4x16x128xf32>,
    %c0_i32 = arith.constant 0 : i32
    %8 = arith.cmpi sgt, %arg1, %c0_i32 : i32
    %9 = arith.extui %8 : i1 to i32
    %c0_i32_7 = arith.constant 0 : i32
    %10 = arith.cmpi ne, %9, %c0_i32_7 : i32
    scf.if %10 {
      %c1_i32_78 = arith.constant 1 : i32
      %95 = arith.subi %0, %c1_i32_78 : i32
      %c0_79 = arith.constant 0 : index
      %96 = arith.index_cast %95 : i32 to index
      %c0_80 = arith.constant 0 : index
      %c0_81 = arith.constant 0 : index
      %97 = vector.load %arg2[%c0_79, %96, %c0_80, %c0_81] : memref<1x8x16x128xbf16, #tpu.memory_space<vmem>>, vector<1x1x16x128xbf16>
      %98 = vector.shape_cast %97 : vector<1x1x16x128xbf16> to vector<1x16x128xbf16>
      %99 = arith.extf %98 : vector<1x16x128xbf16> to vector<1x16x128xf32>
      %c0_82 = arith.constant 0 : index
      %c1_83 = arith.constant 1 : index
      %c0_84 = arith.constant 0 : index
      %100 = vector.load %arg8[%c0_82, %c1_83, %c0_84] : memref<6x18x128xf32, #tpu.memory_space<vmem>>, vector<1x16x128xf32>
      tpu.vector_store %arg8[%c0_82, %c1_83, %c0_84], %99 {strides = array<i32>} : memref<6x18x128xf32, #tpu.memory_space<vmem>>, vector<1x16x128xf32>,
    } else {
    }
    %c1_i32 = arith.constant 1 : i32
    %11 = arith.addi %arg1, %c1_i32 : i32
    %c2_i32 = arith.constant 2 : i32
    %12 = arith.cmpi slt, %11, %c2_i32 : i32
    %13 = arith.extui %12 : i1 to i32
    %c0_i32_8 = arith.constant 0 : i32
    %14 = arith.cmpi ne, %13, %c0_i32_8 : i32
    scf.if %14 {
      %c4_i32_78 = arith.constant 4 : i32
      %95 = arith.addi %0, %c4_i32_78 : i32
      %c0_79 = arith.constant 0 : index
      %96 = arith.index_cast %95 : i32 to index
      %c0_80 = arith.constant 0 : index
      %c0_81 = arith.constant 0 : index
      %97 = vector.load %arg2[%c0_79, %96, %c0_80, %c0_81] : memref<1x8x16x128xbf16, #tpu.memory_space<vmem>>, vector<1x1x16x128xbf16>
      %98 = vector.shape_cast %97 : vector<1x1x16x128xbf16> to vector<1x16x128xbf16>
      %99 = arith.extf %98 : vector<1x16x128xbf16> to vector<1x16x128xf32>
      %c5_82 = arith.constant 5 : index
      %c1_83 = arith.constant 1 : index
      %c0_84 = arith.constant 0 : index
      %100 = vector.load %arg8[%c5_82, %c1_83, %c0_84] : memref<6x18x128xf32, #tpu.memory_space<vmem>>, vector<1x16x128xf32>
      tpu.vector_store %arg8[%c5_82, %c1_83, %c0_84], %99 {strides = array<i32>} : memref<6x18x128xf32, #tpu.memory_space<vmem>>, vector<1x16x128xf32>,
    } else {
    }
    %cst_9 = arith.constant 0.000000e+00 : f32
    %15 = vector.broadcast %cst_9 : f32 to vector<64x128xf32>
    %c0_10 = arith.constant 0 : index
    %c0_11 = arith.constant 0 : index
    %c0_12 = arith.constant 0 : index
    %16 = vector.load %arg8[%c0_10, %c0_11, %c0_12] : memref<6x18x128xf32, #tpu.memory_space<vmem>>, vector<4x16x128xf32>
    %17 = vector.shape_cast %16 : vector<4x16x128xf32> to vector<64x128xf32>
    %18 = arith.truncf %17 : vector<64x128xf32> to vector<64x128xbf16>
    %c0_13 = arith.constant 0 : index
    %c0_14 = arith.constant 0 : index
    %c0_15 = arith.constant 0 : index
    %19 = vector.load %arg3[%c0_13, %c0_14, %c0_15] : memref<9x128x128xbf16, #tpu.memory_space<vmem>>, vector<1x128x128xbf16>
    %20 = vector.shape_cast %19 : vector<1x128x128xbf16> to vector<128x128xbf16>
    %cst_16 = arith.constant dense<0.000000e+00> : vector<64x128xf32>
    %21 = tpu.matmul %18, %20, %cst_16 {dimension_numbers = #tpu.dot_dimension_numbers<[1], [0], [0], [1], [0, 0, 1, 1], [], []>} : vector<64x128xbf16>, vector<128x128xbf16>, vector<64x128xf32> -> vector<64x128xf32>
    %22 = arith.addf %15, %21 : vector<64x128xf32>
    %c0_17 = arith.constant 0 : index
    %c1_18 = arith.constant 1 : index
    %c0_19 = arith.constant 0 : index
    %23 = vector.load %arg8[%c0_17, %c1_18, %c0_19] : memref<6x18x128xf32, #tpu.memory_space<vmem>>, vector<4x16x128xf32>
    %24 = vector.shape_cast %23 : vector<4x16x128xf32> to vector<64x128xf32>
    %25 = arith.truncf %24 : vector<64x128xf32> to vector<64x128xbf16>
    %c1_20 = arith.constant 1 : index
    %c0_21 = arith.constant 0 : index
    %c0_22 = arith.constant 0 : index
    %26 = vector.load %arg3[%c1_20, %c0_21, %c0_22] : memref<9x128x128xbf16, #tpu.memory_space<vmem>>, vector<1x128x128xbf16>
    %27 = vector.shape_cast %26 : vector<1x128x128xbf16> to vector<128x128xbf16>
    %cst_23 = arith.constant dense<0.000000e+00> : vector<64x128xf32>
    %28 = tpu.matmul %25, %27, %cst_23 {dimension_numbers = #tpu.dot_dimension_numbers<[1], [0], [0], [1], [0, 0, 1, 1], [], []>} : vector<64x128xbf16>, vector<128x128xbf16>, vector<64x128xf32> -> vector<64x128xf32>
    %29 = arith.addf %22, %28 : vector<64x128xf32>
    %c0_24 = arith.constant 0 : index
    %c2 = arith.constant 2 : index
    %c0_25 = arith.constant 0 : index
    %30 = vector.load %arg8[%c0_24, %c2, %c0_25] : memref<6x18x128xf32, #tpu.memory_space<vmem>>, vector<4x16x128xf32>
    %31 = vector.shape_cast %30 : vector<4x16x128xf32> to vector<64x128xf32>
    %32 = arith.truncf %31 : vector<64x128xf32> to vector<64x128xbf16>
    %c2_26 = arith.constant 2 : index
    %c0_27 = arith.constant 0 : index
    %c0_28 = arith.constant 0 : index
    %33 = vector.load %arg3[%c2_26, %c0_27, %c0_28] : memref<9x128x128xbf16, #tpu.memory_space<vmem>>, vector<1x128x128xbf16>
    %34 = vector.shape_cast %33 : vector<1x128x128xbf16> to vector<128x128xbf16>
    %cst_29 = arith.constant dense<0.000000e+00> : vector<64x128xf32>
    %35 = tpu.matmul %32, %34, %cst_29 {dimension_numbers = #tpu.dot_dimension_numbers<[1], [0], [0], [1], [0, 0, 1, 1], [], []>} : vector<64x128xbf16>, vector<128x128xbf16>, vector<64x128xf32> -> vector<64x128xf32>
    %36 = arith.addf %29, %35 : vector<64x128xf32>
    %c1_30 = arith.constant 1 : index
    %c0_31 = arith.constant 0 : index
    %c0_32 = arith.constant 0 : index
    %37 = vector.load %arg8[%c1_30, %c0_31, %c0_32] : memref<6x18x128xf32, #tpu.memory_space<vmem>>, vector<4x16x128xf32>
    %38 = vector.shape_cast %37 : vector<4x16x128xf32> to vector<64x128xf32>
    %39 = arith.truncf %38 : vector<64x128xf32> to vector<64x128xbf16>
    %c3 = arith.constant 3 : index
    %c0_33 = arith.constant 0 : index
    %c0_34 = arith.constant 0 : index
    %40 = vector.load %arg3[%c3, %c0_33, %c0_34] : memref<9x128x128xbf16, #tpu.memory_space<vmem>>, vector<1x128x128xbf16>
    %41 = vector.shape_cast %40 : vector<1x128x128xbf16> to vector<128x128xbf16>
    %cst_35 = arith.constant dense<0.000000e+00> : vector<64x128xf32>
    %42 = tpu.matmul %39, %41, %cst_35 {dimension_numbers = #tpu.dot_dimension_numbers<[1], [0], [0], [1], [0, 0, 1, 1], [], []>} : vector<64x128xbf16>, vector<128x128xbf16>, vector<64x128xf32> -> vector<64x128xf32>
    %43 = arith.addf %36, %42 : vector<64x128xf32>
    %c1_36 = arith.constant 1 : index
    %c1_37 = arith.constant 1 : index
    %c0_38 = arith.constant 0 : index
    %44 = vector.load %arg8[%c1_36, %c1_37, %c0_38] : memref<6x18x128xf32, #tpu.memory_space<vmem>>, vector<4x16x128xf32>
    %45 = vector.shape_cast %44 : vector<4x16x128xf32> to vector<64x128xf32>
    %46 = arith.truncf %45 : vector<64x128xf32> to vector<64x128xbf16>
    %c4 = arith.constant 4 : index
    %c0_39 = arith.constant 0 : index
    %c0_40 = arith.constant 0 : index
    %47 = vector.load %arg3[%c4, %c0_39, %c0_40] : memref<9x128x128xbf16, #tpu.memory_space<vmem>>, vector<1x128x128xbf16>
    %48 = vector.shape_cast %47 : vector<1x128x128xbf16> to vector<128x128xbf16>
    %cst_41 = arith.constant dense<0.000000e+00> : vector<64x128xf32>
    %49 = tpu.matmul %46, %48, %cst_41 {dimension_numbers = #tpu.dot_dimension_numbers<[1], [0], [0], [1], [0, 0, 1, 1], [], []>} : vector<64x128xbf16>, vector<128x128xbf16>, vector<64x128xf32> -> vector<64x128xf32>
    %50 = arith.addf %43, %49 : vector<64x128xf32>
    %c1_42 = arith.constant 1 : index
    %c2_43 = arith.constant 2 : index
    %c0_44 = arith.constant 0 : index
    %51 = vector.load %arg8[%c1_42, %c2_43, %c0_44] : memref<6x18x128xf32, #tpu.memory_space<vmem>>, vector<4x16x128xf32>
    %52 = vector.shape_cast %51 : vector<4x16x128xf32> to vector<64x128xf32>
    %53 = arith.truncf %52 : vector<64x128xf32> to vector<64x128xbf16>
    %c5 = arith.constant 5 : index
    %c0_45 = arith.constant 0 : index
    %c0_46 = arith.constant 0 : index
    %54 = vector.load %arg3[%c5, %c0_45, %c0_46] : memref<9x128x128xbf16, #tpu.memory_space<vmem>>, vector<1x128x128xbf16>
    %55 = vector.shape_cast %54 : vector<1x128x128xbf16> to vector<128x128xbf16>
    %cst_47 = arith.constant dense<0.000000e+00> : vector<64x128xf32>
    %56 = tpu.matmul %53, %55, %cst_47 {dimension_numbers = #tpu.dot_dimension_numbers<[1], [0], [0], [1], [0, 0, 1, 1], [], []>} : vector<64x128xbf16>, vector<128x128xbf16>, vector<64x128xf32> -> vector<64x128xf32>
    %57 = arith.addf %50, %56 : vector<64x128xf32>
    %c2_48 = arith.constant 2 : index
    %c0_49 = arith.constant 0 : index
    %c0_50 = arith.constant 0 : index
    %58 = vector.load %arg8[%c2_48, %c0_49, %c0_50] : memref<6x18x128xf32, #tpu.memory_space<vmem>>, vector<4x16x128xf32>
    %59 = vector.shape_cast %58 : vector<4x16x128xf32> to vector<64x128xf32>
    %60 = arith.truncf %59 : vector<64x128xf32> to vector<64x128xbf16>
    %c6 = arith.constant 6 : index
    %c0_51 = arith.constant 0 : index
    %c0_52 = arith.constant 0 : index
    %61 = vector.load %arg3[%c6, %c0_51, %c0_52] : memref<9x128x128xbf16, #tpu.memory_space<vmem>>, vector<1x128x128xbf16>
    %62 = vector.shape_cast %61 : vector<1x128x128xbf16> to vector<128x128xbf16>
    %cst_53 = arith.constant dense<0.000000e+00> : vector<64x128xf32>
    %63 = tpu.matmul %60, %62, %cst_53 {dimension_numbers = #tpu.dot_dimension_numbers<[1], [0], [0], [1], [0, 0, 1, 1], [], []>} : vector<64x128xbf16>, vector<128x128xbf16>, vector<64x128xf32> -> vector<64x128xf32>
    %64 = arith.addf %57, %63 : vector<64x128xf32>
    %c2_54 = arith.constant 2 : index
    %c1_55 = arith.constant 1 : index
    %c0_56 = arith.constant 0 : index
    %65 = vector.load %arg8[%c2_54, %c1_55, %c0_56] : memref<6x18x128xf32, #tpu.memory_space<vmem>>, vector<4x16x128xf32>
    %66 = vector.shape_cast %65 : vector<4x16x128xf32> to vector<64x128xf32>
    %67 = arith.truncf %66 : vector<64x128xf32> to vector<64x128xbf16>
    %c7 = arith.constant 7 : index
    %c0_57 = arith.constant 0 : index
    %c0_58 = arith.constant 0 : index
    %68 = vector.load %arg3[%c7, %c0_57, %c0_58] : memref<9x128x128xbf16, #tpu.memory_space<vmem>>, vector<1x128x128xbf16>
    %69 = vector.shape_cast %68 : vector<1x128x128xbf16> to vector<128x128xbf16>
    %cst_59 = arith.constant dense<0.000000e+00> : vector<64x128xf32>
    %70 = tpu.matmul %67, %69, %cst_59 {dimension_numbers = #tpu.dot_dimension_numbers<[1], [0], [0], [1], [0, 0, 1, 1], [], []>} : vector<64x128xbf16>, vector<128x128xbf16>, vector<64x128xf32> -> vector<64x128xf32>
    %71 = arith.addf %64, %70 : vector<64x128xf32>
    %c2_60 = arith.constant 2 : index
    %c2_61 = arith.constant 2 : index
    %c0_62 = arith.constant 0 : index
    %72 = vector.load %arg8[%c2_60, %c2_61, %c0_62] : memref<6x18x128xf32, #tpu.memory_space<vmem>>, vector<4x16x128xf32>
    %73 = vector.shape_cast %72 : vector<4x16x128xf32> to vector<64x128xf32>
    %74 = arith.truncf %73 : vector<64x128xf32> to vector<64x128xbf16>
    %c8 = arith.constant 8 : index
    %c0_63 = arith.constant 0 : index
    %c0_64 = arith.constant 0 : index
    %75 = vector.load %arg3[%c8, %c0_63, %c0_64] : memref<9x128x128xbf16, #tpu.memory_space<vmem>>, vector<1x128x128xbf16>
    %76 = vector.shape_cast %75 : vector<1x128x128xbf16> to vector<128x128xbf16>
    %cst_65 = arith.constant dense<0.000000e+00> : vector<64x128xf32>
    %77 = tpu.matmul %74, %76, %cst_65 {dimension_numbers = #tpu.dot_dimension_numbers<[1], [0], [0], [1], [0, 0, 1, 1], [], []>} : vector<64x128xbf16>, vector<128x128xbf16>, vector<64x128xf32> -> vector<64x128xf32>
    %78 = arith.addf %71, %77 : vector<64x128xf32>
    %c0_66 = arith.constant 0 : index
    %c0_67 = arith.constant 0 : index
    %79 = vector.load %arg4[%c0_66, %c0_67] : memref<1x128xf32, #tpu.memory_space<vmem>>, vector<1x128xf32>
    %80 = vector.broadcast %79 : vector<1x128xf32> to vector<64x128xf32>
    %81 = arith.addf %78, %80 : vector<64x128xf32>
    %c0_68 = arith.constant 0 : index
    %c0_69 = arith.constant 0 : index
    %82 = vector.load %arg5[%c0_68, %c0_69] : memref<1x128xf32, #tpu.memory_space<vmem>>, vector<1x128xf32>
    %83 = vector.broadcast %82 : vector<1x128xf32> to vector<64x128xf32>
    %84 = arith.mulf %81, %83 : vector<64x128xf32>
    %c0_70 = arith.constant 0 : index
    %c0_71 = arith.constant 0 : index
    %85 = vector.load %arg6[%c0_70, %c0_71] : memref<1x128xf32, #tpu.memory_space<vmem>>, vector<1x128xf32>
    %86 = vector.broadcast %85 : vector<1x128xf32> to vector<64x128xf32>
    %87 = arith.addf %84, %86 : vector<64x128xf32>
    %cst_72 = arith.constant 0.000000e+00 : f32
    %88 = vector.broadcast %cst_72 : f32 to vector<64x128xf32>
    %89 = arith.cmpf oge, %87, %88 : vector<64x128xf32>
    %cst_73 = arith.constant 0.00999999977 : f32
    %90 = vector.broadcast %cst_73 : f32 to vector<64x128xf32>
    %91 = arith.mulf %90, %87 : vector<64x128xf32>
    %92 = arith.select %89, %87, %91 : vector<64x128xi1>, vector<64x128xf32>
    %93 = vector.shape_cast %92 : vector<64x128xf32> to vector<1x1x64x128xf32>
    %c0_74 = arith.constant 0 : index
    %c0_75 = arith.constant 0 : index
    %c0_76 = arith.constant 0 : index
    %c0_77 = arith.constant 0 : index
    %94 = vector.load %arg7[%c0_74, %c0_75, %c0_76, %c0_77] : memref<1x1x64x128xf32, #tpu.memory_space<vmem>>, vector<1x1x64x128xf32>
    tpu.vector_store %arg7[%c0_74, %c0_75, %c0_76, %c0_77], %93 {strides = array<i32>} : memref<1x1x64x128xf32, #tpu.memory_space<vmem>>, vector<1x1x64x128xf32>,
    return
  }
  func.func @transform_0(%arg0: i32, %arg1: i32) -> (i32, i32, i32, i32) {
    %c0_i32 = arith.constant 0 : i32
    %c0_i32_0 = arith.constant 0 : i32
    %c0_i32_1 = arith.constant 0 : i32
    %c0_i32_2 = arith.constant 0 : i32
    return %arg0, %c0_i32, %c0_i32_0, %c0_i32_1 : i32, i32, i32, i32
  }
  func.func @transform_1(%arg0: i32, %arg1: i32) -> (i32, i32, i32) {
    %c0_i32 = arith.constant 0 : i32
    %c0_i32_0 = arith.constant 0 : i32
    %c0_i32_1 = arith.constant 0 : i32
    %c0_i32_2 = arith.constant 0 : i32
    return %c0_i32, %c0_i32_0, %c0_i32_1 : i32, i32, i32
  }
  func.func @transform_2(%arg0: i32, %arg1: i32) -> (i32, i32) {
    %c0_i32 = arith.constant 0 : i32
    %c0_i32_0 = arith.constant 0 : i32
    %c0_i32_1 = arith.constant 0 : i32
    return %c0_i32, %c0_i32_0 : i32, i32
  }
  func.func @transform_3(%arg0: i32, %arg1: i32) -> (i32, i32) {
    %c0_i32 = arith.constant 0 : i32
    %c0_i32_0 = arith.constant 0 : i32
    %c0_i32_1 = arith.constant 0 : i32
    return %c0_i32, %c0_i32_0 : i32, i32
  }
  func.func @transform_4(%arg0: i32, %arg1: i32) -> (i32, i32) {
    %c0_i32 = arith.constant 0 : i32
    %c0_i32_0 = arith.constant 0 : i32
    %c0_i32_1 = arith.constant 0 : i32
    return %c0_i32, %c0_i32_0 : i32, i32
  }
  func.func @transform_5(%arg0: i32, %arg1: i32) -> (i32, i32, i32, i32) {
    %c0_i32 = arith.constant 0 : i32
    %c0_i32_0 = arith.constant 0 : i32
    %c0_i32_1 = arith.constant 0 : i32
    return %arg0, %arg1, %c0_i32, %c0_i32_0 : i32, i32, i32, i32
  }
}

</mosaic_0001>

<llo_original>
// kernel: upblock_forward.3
$region0: #{upblock_forward.3}
  #allocation0 [shape = 'u32[]', space=smem, size = 0x4, offset = 0x4, fixed_abs, tag = 'smem constant byte address 0x4 - core index']
  #allocation1 [shape = 'u32[144,128]{1,0:T(1,128)}', space=vmem, size = 0x12000, scoped, tag = 'internal scratch']
  %s0 = inlined_call_operand.vmem [shape: f32[2,16,256], index: 0, kind: input, shape index: {}]
  %s1 = inlined_call_operand.vmem [shape: bf16[8,16], index: 1, kind: input, shape index: {}]
  %s2 = inlined_call_operand.vmem [shape: f32[8,1], index: 2, kind: input, shape index: {}]
  %s3 = inlined_call_operand.vmem [shape: f32[2,8,256], index: 3, kind: output, shape index: {}]
  %s4 = sld [smem:[#allocation0]]
  $region45: #{upblock_forward.3} parent=0
    _
  %s6 = ssub.s32 1, %s4
  %s7 = scalar_select 0, %s6, %s4
  loop: start=0, step=1, limit=4
  $region2: #{upblock_forward.3} parent=0 // loop_pre_header
    _
  $region3: #{upblock_forward.3} parent=0 // loop_header
    %s9 = sphi 0, %s13
    %p10 = scmp.ge.s32.totalorder %s9, 4
    %s19 = sphi 0, %s21
    %s22 = sphi 0, %s19
    %s23 = sphi 0, %s22
    %s39 = sphi 0, %s23
    %s43 = sphi 0, %s43
    %s45 = sphi 0, %s43
    %s46 = sphi 0, %s45
    %s60 = sphi 0, %s46
    %s64 = sphi 0, %s64
    %s66 = sphi 0, %s64
    %s67 = sphi 0, %s66
    %s81 = sphi 0, %s67
    %s87 = sphi 0, %s89
    %s90 = sphi 0, %s87
    %s91 = sphi 0, %s90
    %s107 = sphi 0, %s91
  $region4: #{upblock_forward.3} parent=0 // loop_header_branch
    %12 = sbr.rel (%p10) target = $region8
  $region5: #{upblock_forward.3} parent=0 // loop_body
    %s14 = ssub.s32 %s9, 1
    %s15 = ssub.s32 %s9, 2
    %s16 = sadd.s32 %s9, 1
    %s17 = ssub.s32 %s9, %s16
    %p18 = scmp.eq.s32.totalorder %s17, 0
    %s20 = sadd.s32 %s19, 1
    %s21 = scalar_select %p18, %s19, %s20
    %p24 = pneg %p18
    %p25 = scmp.eq.s32.totalorder %s9, 1
    %p26 = por %p24, %p25
    %p27 = scmp.ne.s32.totalorder %s19, %s22
    %p28 = scmp.eq.s32.totalorder %s9, 0
    %p29 = por %p27, %p28
    %p30 = scmp.ne.s32.totalorder %s19, %s22
    %p31 = scmp.eq.s32.totalorder %s14, 1
    %p32 = por %p30, %p31
    %p33 = scmp.ne.s32.totalorder %s22, %s23
    %p34 = scmp.eq.s32.totalorder %s14, 0
    %p35 = por %p33, %p34
    %p36 = scmp.ne.s32.totalorder %s22, %s23
    %p37 = scmp.eq.s32.totalorder %s15, 1
    %p38 = por %p36, %p37
    %p40 = scmp.ne.s32.totalorder %s23, %s39
    %p41 = scmp.eq.s32.totalorder %s15, 0
    %p42 = por %p40, %p41
    %s44 = sadd.s32 %s43, 1
    %p47 = scmp.eq.s32.totalorder %s9, 1
    %p48 = scmp.ne.s32.totalorder %s43, %s45
    %p49 = scmp.eq.s32.totalorder %s9, 0
    %p50 = por %p48, %p49
    %p51 = scmp.ne.s32.totalorder %s43, %s45
    %p52 = scmp.eq.s32.totalorder %s14, 1
    %p53 = por %p51, %p52
    %p54 = scmp.ne.s32.totalorder %s45, %s46
    %p55 = scmp.eq.s32.totalorder %s14, 0
    %p56 = por %p54, %p55
    %p57 = scmp.ne.s32.totalorder %s45, %s46
    %p58 = scmp.eq.s32.totalorder %s15, 1
    %p59 = por %p57, %p58
    %p61 = scmp.ne.s32.totalorder %s46, %s60
    %p62 = scmp.eq.s32.totalorder %s15, 0
    %p63 = por %p61, %p62
    %s65 = sadd.s32 %s64, 1
    %p68 = scmp.eq.s32.totalorder %s9, 1
    %p69 = scmp.ne.s32.totalorder %s64, %s66
    %p70 = scmp.eq.s32.totalorder %s9, 0
    %p71 = por %p69, %p70
    %p72 = scmp.ne.s32.totalorder %s64, %s66
    %p73 = scmp.eq.s32.totalorder %s14, 1
    %p74 = por %p72, %p73
    %p75 = scmp.ne.s32.totalorder %s66, %s67
    %p76 = scmp.eq.s32.totalorder %s14, 0
    %p77 = por %p75, %p76
    %p78 = scmp.ne.s32.totalorder %s66, %s67
    %p79 = scmp.eq.s32.totalorder %s15, 1
    %p80 = por %p78, %p79
    %p82 = scmp.ne.s32.totalorder %s67, %s81
    %p83 = scmp.eq.s32.totalorder %s15, 0
    %p84 = por %p82, %p83
    %s85 = ssub.s32 %s9, %s16
    %p86 = scmp.eq.s32.totalorder %s85, 0
    %s88 = sadd.s32 %s87, 1
    %s89 = scalar_select %p86, %s87, %s88
    %p92 = pneg %p86
    %p93 = scmp.eq.s32.totalorder %s9, 1
    %p94 = por %p92, %p93
    %p95 = scmp.ne.s32.totalorder %s87, %s90
    %p96 = scmp.eq.s32.totalorder %s9, 0
    %p97 = por %p95, %p96
    %p98 = scmp.ne.s32.totalorder %s87, %s90
    %p99 = scmp.eq.s32.totalorder %s14, 1
    %p100 = por %p98, %p99
    %p101 = scmp.ne.s32.totalorder %s90, %s91
    %p102 = scmp.eq.s32.totalorder %s14, 0
    %p103 = por %p101, %p102
    %p104 = scmp.ne.s32.totalorder %s90, %s91
    %p105 = scmp.eq.s32.totalorder %s15, 1
    %p106 = por %p104, %p105
    %p108 = scmp.ne.s32.totalorder %s91, %s107
    %p109 = scmp.eq.s32.totalorder %s15, 0
    %p110 = por %p108, %p109
    %p111 = scmp.le.s32.totalorder 1, %s9
    %p112 = scmp.lt.s32.totalorder %s9, 3
    %p113 = pnand %p111, %p112
    %p114 = pneg %p113
    // Predicated region
    $region9: #{upblock_forward.3} parent=5 // pred_check
      _
    $region10: #{upblock_forward.3} parent=5 // pred_check_branch
      %116 = sbr.rel (%p113) target = $region12
    $region11: #{upblock_forward.3} parent=5 // pred_region
      %s117 = ssub.s32 %s9, 1
      // Predicated region
      $region13: #{upblock_forward.3} parent=11 // pred_check
        %p118 = pneg %p56
      $region14: #{upblock_forward.3} parent=11 // pred_check_branch
        %120 = sbr.rel (%p118) target = $region16
      $region15: #{upblock_forward.3} parent=11 // pred_region
        _
      $region16: #{upblock_forward.3} parent=11 // pred_fallthru
        _
      // Predicated region
      $region17: #{upblock_forward.3} parent=11 // pred_check
        %p121 = pneg %p77
      $region18: #{upblock_forward.3} parent=11 // pred_check_branch
        %123 = sbr.rel (%p121) target = $region20
      $region19: #{upblock_forward.3} parent=11 // pred_region
        _
      $region20: #{upblock_forward.3} parent=11 // pred_fallthru
        _
    $region12: #{upblock_forward.3} parent=5 // pred_fallthru
      _
    %p124 = scmp.lt.s32.totalorder %s9, 2
    // Predicated region
    $region21: #{upblock_forward.3} parent=5 // pred_check
      %p125 = pneg %p124
    $region22: #{upblock_forward.3} parent=5 // pred_check_branch
      %127 = sbr.rel (%p125) target = $region24
    $region23: #{upblock_forward.3} parent=5 // pred_region
      // Predicated region
      $region25: #{upblock_forward.3} parent=23 // pred_check
        %p128 = pneg %p29
      $region26: #{upblock_forward.3} parent=23 // pred_check_branch
        %130 = sbr.rel (%p128) target = $region28
      $region27: #{upblock_forward.3} parent=23 // pred_region
        %p131 = scmp.lt.s32.totalorder %s9, 1
        %s132 = scalar_select %p131, %s9, 1
        %s133 = smul.addr %s132, 4
        %s134 = smul.addr %s133, 8
        %s135 = scalar_lea.vmem %s0, %s134
      $region28: #{upblock_forward.3} parent=23 // pred_fallthru
        _
    $region24: #{upblock_forward.3} parent=5 // pred_fallthru
      _
    %p136 = scmp.le.s32.totalorder 1, %s9
    %p137 = scmp.lt.s32.totalorder %s9, 3
    %p138 = pnand %p136, %p137
    %p139 = pneg %p138
    // Predicated region
    $region29: #{upblock_forward.3} parent=5 // pred_check
      _
    $region30: #{upblock_forward.3} parent=5 // pred_check_branch
      %141 = sbr.rel (%p138) target = $region32
    $region31: #{upblock_forward.3} parent=5 // pred_region
      %s142 = ssub.s32 %s9, 1
      %p143 = scmp.lt.s32.totalorder %s14, 1
      %s144 = scalar_select %p143, %s14, 1
      %s145 = smul.addr %s144, 4
      %s146 = smul.addr %s145, 8
      %s147 = scalar_lea.vmem %s0, %s146
      %p148 = pneg %p35
      %p149 = pneg %p32
      %p150 = pneg %p56
      %p151 = pneg %p53
      %p152 = pneg %p77
      %p153 = pneg %p74
      %p154 = pneg %p103
      %p155 = pneg %p100
      %p156 = scmp.lt.s32.totalorder %s14, 1
      %s157 = scalar_select %p156, %s14, 1
      %s158 = smul.addr %s157, 2
      %s159 = smul.addr %s158, 8
      %s160 = scalar_lea.vmem %s3, %s159
      %p161 = scmp.lt.s32.totalorder %s14, 1
      %s162 = scalar_select %p161, %s14, 1
      %s163 = smul.addr %s162, 4
      %s164 = smul.addr %s163, 8
      %s165 = scalar_lea.vmem %s0, %s164
      %p166 = scmp.lt.s32.totalorder %s14, 1
      %s167 = scalar_select %p166, %s14, 1
      %s168 = smul.addr %s167, 2
      %s169 = smul.addr %s168, 8
      %s170 = scalar_lea.vmem %s3, %s169
      %v172 = vld [vmem:[%s165] sm:$0xff]
      %v173 = vld [vmem:[%s165 + $0x8] sm:$0xff]
      %v174 = vld [vmem:[%s165 + $0x10] sm:$0xff]
      %v175 = vld [vmem:[%s165 + $0x18] sm:$0xff]
      %v176 = vpack.c.bf16 %v174, %v172
      %v177 = vpack.c.bf16 %v175, %v173
      %v178 = vld [vmem:[%s1] sm:$0xf]
      %v179 = vld [vmem:[%s2] sm:$0xff]
      %181 = vset.pattern.permute.xlu0 0
      %182 = vperm.xlu0 %181, %v179
      %v183 = vpop.permute.xlu0 %182
      %vm185 = vcmask 130048
      %v187 = vsel %vm185, %v178, 0
      %189 = vmatprep.subr.bf16.mxu0 0
      %190 = vmatpush1.bf16.msra.mxu0 0
      %191 = vmatprep.subr.bf16.mxu0 0
      %192 = vmatpush1.bf16.msra.mxu0 0
      %193 = vmatprep.subr.bf16.mxu0 0
      %194 = vmatpush1.bf16.msra.mxu0 0
      %195 = vmatprep.subr.bf16.mxu0 0
      %196 = vmatpush1.bf16.msra.mxu0 0
      %197 = vmatprep.subr.bf16.mxu0 0
      %198 = vmatpush1.bf16.msra.mxu0 0
      %199 = vmatprep.subr.bf16.mxu0 0
      %200 = vmatpush1.bf16.msra.mxu0 0
      %201 = vmatprep.subr.bf16.mxu0 0
      %202 = vmatpush1.bf16.msra.mxu0 0
      %203 = vmatprep.subr.bf16.mxu0 %v177
      %204 = vmatpush1.bf16.msra.mxu0 %v176
      %205 = vmatprep.subr.bf16.mxu0 0
      %206 = vmatpush2.bf16.msra.mxu0 0
      %207 = vmatprep.subr.bf16.mxu0 0
      %208 = vmatpush2.bf16.msra.mxu0 0
      %209 = vmatprep.subr.bf16.mxu0 0
      %210 = vmatpush2.bf16.msra.mxu0 0
      %211 = vmatprep.subr.bf16.mxu0 0
      %212 = vmatpush2.bf16.msra.mxu0 0
      %213 = vmatprep.subr.bf16.mxu0 0
      %214 = vmatpush2.bf16.msra.mxu0 0
      %215 = vmatprep.subr.bf16.mxu0 0
      %216 = vmatpush2.bf16.msra.mxu0 0
      %217 = vmatprep.subr.bf16.mxu0 0
      %218 = vmatpush2.bf16.msra.mxu0 0
      %219 = vmatprep.subr.bf16.mxu0 0
      %220 = vmatpush2.bf16.msra.mxu0 0
      %221 = vmatprep.mubr.bf16.mxu0 0
      %222 = vmatmul.mubr.bf16.gmra.mxu0 %v187
      %v223 = vpop.f32.mrf.mxu0
      %v224 = vadd.f32 %v183, %v223
      %v225 = vpop.f32.mrf.mxu0
      %v226 = vadd.f32 %v183, %v225
      %v227 = vpop.f32.mrf.mxu0
      %v228 = vpop.f32.mrf.mxu0
      %229 = vdwg.mxu0
      %230 = vst [vmem:[%s170] sm:$0xff] %v224
      %231 = vst [vmem:[%s170 + $0x8] sm:$0xff] %v226
      %p232 = scmp.lt.s32.totalorder %s14, 1
      %s233 = scalar_select %p232, %s14, 1
      %s234 = smul.addr %s233, 2
      %s235 = smul.addr %s234, 8
      %s236 = scalar_lea.vmem %s3, %s235
      // Predicated region
      $region33: #{upblock_forward.3} parent=31 // pred_check
        %p237 = pneg %p100
      $region34: #{upblock_forward.3} parent=31 // pred_check_branch
        %239 = sbr.rel (%p237) target = $region36
      $region35: #{upblock_forward.3} parent=31 // pred_region
        _
      $region36: #{upblock_forward.3} parent=31 // pred_fallthru
        _
    $region32: #{upblock_forward.3} parent=5 // pred_fallthru
      _
    %p240 = scmp.le.s32.totalorder 2, %s9
    // Predicated region
    $region37: #{upblock_forward.3} parent=5 // pred_check
      %p241 = pneg %p240
    $region38: #{upblock_forward.3} parent=5 // pred_check_branch
      %243 = sbr.rel (%p241) target = $region40
    $region39: #{upblock_forward.3} parent=5 // pred_region
      %s244 = ssub.s32 %s9, 2
      // Predicated region
      $region41: #{upblock_forward.3} parent=39 // pred_check
        %p245 = pneg %p106
      $region42: #{upblock_forward.3} parent=39 // pred_check_branch
        %247 = sbr.rel (%p245) target = $region44
      $region43: #{upblock_forward.3} parent=39 // pred_region
        %p248 = scmp.lt.s32.totalorder %s15, 1
        %s249 = scalar_select %p248, %s15, 1
        %s250 = smul.addr %s249, 2
        %s251 = smul.addr %s250, 8
        %s252 = scalar_lea.vmem %s3, %s251
      $region44: #{upblock_forward.3} parent=39 // pred_fallthru
        _
    $region40: #{upblock_forward.3} parent=5 // pred_fallthru
      _
  $region6: #{upblock_forward.3} parent=0 // loop_footer
    %s13 = sadd.s32 1, %s9
  $region7: #{upblock_forward.3} parent=0 // loop_footer_branch
    %8 = sbr.rel target = $region3
  $region8: #{upblock_forward.3} parent=0 // loop_exit
    _

// kernel: tile.33
$region0: #{tile.33}
  #allocation0 [shape = 's32[1]{0}', space=sflag, size = 0x4, scoped, tag = 'scoped memory for tile.33']
  %s0 = inlined_call_operand.vmem [shape: f32[8], index: 0, kind: input, shape index: {}]
  %s1 = inlined_call_operand.vmem [shape: f32[16,8], index: 1, kind: output, shape index: {}]
  // Predicated region
  $region2: #{tile.33} parent=0 // pred_check
    _
  $region3: #{tile.33} parent=0 // pred_check_branch
    %3 = sbr.rel (0) target = $region5
  $region4: #{tile.33} parent=0 // pred_region
    _
  $region5: #{tile.33} parent=0 // pred_fallthru
    _
  %v4 = vld [vmem:[%s0] ss:$0 sm:$0xff]
  %5 = vst [vmem:[%s1] sm:$0xff] %v4
  %s6 = scalar_lea.vmem %s1, 8
  %7 = vst [vmem:[%s6] sm:$0xff] %v4

// kernel: tile.34
$region0: #{tile.34}
  %s0 = inlined_call_operand.vmem [shape: f32[16,8], index: 0, kind: input, shape index: {}]
  %s1 = inlined_call_operand.vmem [shape: f32[1,128], index: 1, kind: output, shape index: {}]
  $region1: #{tile.34} parent=0
    #allocation0 [shape = 'u8[4096]{0}', space=vmem, size = 0x1000, scoped, tag = 'scoped mem for output reshape']
    %v2 = vld [vmem:[%s0] sm:$0x1]
    %vm3 = vcmask 64512
    %4 = vst.msk [vmem:[#allocation0] sm:$0x1] %vm3, %v2
    %s5 = scalar_lea.vmem %s0, 15
    %v6 = vld [vmem:[%s5] sm:$0x1]
    %7 = vrot.lane.b32.xlu0 %v6, 120
    %v8 = vpop.permute.xlu0 %7
    %vm9 = vcmask 1048512
    %10 = vst.msk [vmem:[#allocation0] sm:$0x1] %vm9, %v8
    %s11 = scalar_lea.vmem %s0, 14
    %v12 = vld [vmem:[%s11] sm:$0x1]
    %13 = vrot.lane.b32.xlu0 %v12, 112
    %v14 = vpop.permute.xlu0 %13
    %vm15 = vcmask 982912
    %16 = vst.msk [vmem:[#allocation0] sm:$0x1] %vm15, %v14
    %s17 = scalar_lea.vmem %s0, 13
    %v18 = vld [vmem:[%s17] sm:$0x1]
    %19 = vrot.lane.b32.xlu0 %v18, 104
    %v20 = vpop.permute.xlu0 %19
    %vm21 = vcmask 917312
    %22 = vst.msk [vmem:[#allocation0] sm:$0x1] %vm21, %v20
    %s23 = scalar_lea.vmem %s0, 12
    %v24 = vld [vmem:[%s23] sm:$0x1]
    %25 = vrot.lane.b32.xlu0 %v24, 96
    %v26 = vpop.permute.xlu0 %25
    %vm27 = vcmask 851712
    %28 = vst.msk [vmem:[#allocation0] sm:$0x1] %vm27, %v26
    %s29 = scalar_lea.vmem %s0, 11
    %v30 = vld [vmem:[%s29] sm:$0x1]
    %31 = vrot.lane.b32.xlu0 %v30, 88
    %v32 = vpop.permute.xlu0 %31
    %vm33 = vcmask 786112
    %34 = vst.msk [vmem:[#allocation0] sm:$0x1] %vm33, %v32
    %s35 = scalar_lea.vmem %s0, 10
    %v36 = vld [vmem:[%s35] sm:$0x1]
    %37 = vrot.lane.b32.xlu0 %v36, 80
    %v38 = vpop.permute.xlu0 %37
    %vm39 = vcmask 720512
    %40 = vst.msk [vmem:[#allocation0] sm:$0x1] %vm39, %v38
    %s41 = scalar_lea.vmem %s0, 9
    %v42 = vld [vmem:[%s41] sm:$0x1]
    %43 = vrot.lane.b32.xlu0 %v42, 72
    %v44 = vpop.permute.xlu0 %43
    %vm45 = vcmask 654912
    %46 = vst.msk [vmem:[#allocation0] sm:$0x1] %vm45, %v44
    %s47 = scalar_lea.vmem %s0, 8
    %v48 = vld [vmem:[%s47] sm:$0x1]
    %49 = vrot.lane.b32.xlu0 %v48, 64
    %v50 = vpop.permute.xlu0 %49
    %vm51 = vcmask 589312
    %52 = vst.msk [vmem:[#allocation0] sm:$0x1] %vm51, %v50
    %s53 = scalar_lea.vmem %s0, 7
    %v54 = vld [vmem:[%s53] sm:$0x1]
    %55 = vrot.lane.b32.xlu0 %v54, 56
    %v56 = vpop.permute.xlu0 %55
    %vm57 = vcmask 523712
    %58 = vst.msk [vmem:[#allocation0] sm:$0x1] %vm57, %v56
    %s59 = scalar_lea.vmem %s0, 6
    %v60 = vld [vmem:[%s59] sm:$0x1]
    %61 = vrot.lane.b32.xlu0 %v60, 48
    %v62 = vpop.permute.xlu0 %61
    %vm63 = vcmask 458112
    %64 = vst.msk [vmem:[#allocation0] sm:$0x1] %vm63, %v62
    %s65 = scalar_lea.vmem %s0, 5
    %v66 = vld [vmem:[%s65] sm:$0x1]
    %67 = vrot.lane.b32.xlu0 %v66, 40
    %v68 = vpop.permute.xlu0 %67
    %vm69 = vcmask 392512
    %70 = vst.msk [vmem:[#allocation0] sm:$0x1] %vm69, %v68
    %s71 = scalar_lea.vmem %s0, 4
    %v72 = vld [vmem:[%s71] sm:$0x1]
    %73 = vrot.lane.b32.xlu0 %v72, 32
    %v74 = vpop.permute.xlu0 %73
    %vm75 = vcmask 326912
    %76 = vst.msk [vmem:[#allocation0] sm:$0x1] %vm75, %v74
    %s77 = scalar_lea.vmem %s0, 3
    %v78 = vld [vmem:[%s77] sm:$0x1]
    %79 = vrot.lane.b32.xlu0 %v78, 24
    %v80 = vpop.permute.xlu0 %79
    %vm81 = vcmask 261312
    %82 = vst.msk [vmem:[#allocation0] sm:$0x1] %vm81, %v80
    %s83 = scalar_lea.vmem %s0, 2
    %v84 = vld [vmem:[%s83] sm:$0x1]
    %85 = vrot.lane.b32.xlu0 %v84, 16
    %v86 = vpop.permute.xlu0 %85
    %vm87 = vcmask 195712
    %88 = vst.msk [vmem:[#allocation0] sm:$0x1] %vm87, %v86
    %s89 = scalar_lea.vmem %s0, 1
    %v90 = vld [vmem:[%s89] sm:$0x1]
    %91 = vrot.lane.b32.xlu0 %v90, 8
    %v92 = vpop.permute.xlu0 %91
    %vm93 = vcmask 130112
    %94 = vst.msk [vmem:[#allocation0] sm:$0x1] %vm93, %v92
    %s96 = sshll.u32 1, 1
    %s97 = ssub.s32 %s96, 1
    %v99 = vld [vmem:[#allocation0] sm:%s97]
    %s100 = sshll.u32 1, 1
    %s101 = ssub.s32 %s100, 1
    %102 = vst [vmem:[%s1] sm:%s101] %v99

// kernel: upblock_forward.4
$region0: #{upblock_forward.4}
  #allocation0 [shape = 'u32[]', space=smem, size = 0x4, offset = 0x4, fixed_abs, tag = 'smem constant byte address 0x4 - core index']
  #allocation1 [shape = 'u32[144,128]{1,0:T(1,128)}', space=vmem, size = 0x12000, scoped, tag = 'internal scratch']
  #allocation2 [shape = 'f32[6,18,256]{2,1,0:T(8,128)}', space=vmem, size = 0x24000, scoped, tag = 'scratch operand']
  %s0 = inlined_call_operand.vmem [shape: f32[2,8,16,256], index: 0, kind: input, shape index: {}]
  %s1 = inlined_call_operand.vmem [shape: bf16[9,256,128], index: 1, kind: input, shape index: {}]
  %s2 = inlined_call_operand.vmem [shape: f32[1,128], index: 2, kind: input, shape index: {}]
  %s3 = inlined_call_operand.vmem [shape: f32[1,128], index: 3, kind: input, shape index: {}]
  %s4 = inlined_call_operand.vmem [shape: f32[1,128], index: 4, kind: input, shape index: {}]
  %s5 = inlined_call_operand.vmem [shape: bf16[2,2,64,128], index: 5, kind: output, shape index: {}]
  %s6 = sld [smem:[#allocation0]]
  $region61: #{upblock_forward.4} parent=0
    _
  %s8 = ssub.s32 1, %s6
  %s9 = scalar_select 0, %s8, %s6
  loop: start=0, step=1, limit=6
  $region2: #{upblock_forward.4} parent=0 // loop_pre_header
    _
  $region3: #{upblock_forward.4} parent=0 // loop_header
    %s11 = sphi 0, %s15
    %p12 = scmp.ge.s32.totalorder %s11, 6
    %s18 = sphi 0, %s30
    %s19 = sphi 0, %s26
    %s20 = sphi 0, %s18
    %s21 = sphi 0, %s19
    %s22 = sphi 0, %s20
    %s23 = sphi 0, %s21
    %s33 = sphi 0, %s35
    %s36 = sphi 0, %s33
    %s37 = sphi 0, %s36
    %s53 = sphi 0, %s37
    %s57 = sphi 0, %s57
    %s59 = sphi 0, %s57
    %s60 = sphi 0, %s59
    %s74 = sphi 0, %s60
    %s78 = sphi 0, %s78
    %s80 = sphi 0, %s78
    %s81 = sphi 0, %s80
    %s95 = sphi 0, %s81
    %s99 = sphi 0, %s99
    %s101 = sphi 0, %s99
    %s102 = sphi 0, %s101
    %s116 = sphi 0, %s102
    %s120 = sphi 0, %s120
    %s122 = sphi 0, %s120
    %s123 = sphi 0, %s122
    %s137 = sphi 0, %s123
    %s145 = sphi 0, %s147
    %s148 = sphi 0, %s145
    %s149 = sphi 0, %s148
    %s165 = sphi 0, %s149
  $region4: #{upblock_forward.4} parent=0 // loop_header_branch
    %14 = sbr.rel (%p12) target = $region8
  $region5: #{upblock_forward.4} parent=0 // loop_body
    %s16 = ssub.s32 %s11, 1
    %s17 = ssub.s32 %s11, 2
    %s24 = sadd.s32 1, %s19
    %p25 = scmp.ge.s32.totalorder %s24, 2
    %s26 = scalar_select %p25, 0, %s24
    %s27 = sadd.s32 1, %s18
    %s28 = scalar_select %p25, %s27, %s18
    %p29 = scmp.ge.s32.totalorder %s28, 2
    %s30 = scalar_select %p29, 0, %s28
    %s31 = ssub.s32 %s18, %s30
    %p32 = scmp.eq.s32.totalorder %s31, 0
    %s34 = sadd.s32 %s33, 1
    %s35 = scalar_select %p32, %s33, %s34
    %p38 = pneg %p32
    %p39 = scmp.eq.s32.totalorder %s11, 3
    %p40 = por %p38, %p39
    %p41 = scmp.ne.s32.totalorder %s33, %s36
    %p42 = scmp.eq.s32.totalorder %s11, 0
    %p43 = por %p41, %p42
    %p44 = scmp.ne.s32.totalorder %s33, %s36
    %p45 = scmp.eq.s32.totalorder %s16, 3
    %p46 = por %p44, %p45
    %p47 = scmp.ne.s32.totalorder %s36, %s37
    %p48 = scmp.eq.s32.totalorder %s16, 0
    %p49 = por %p47, %p48
    %p50 = scmp.ne.s32.totalorder %s36, %s37
    %p51 = scmp.eq.s32.totalorder %s17, 3
    %p52 = por %p50, %p51
    %p54 = scmp.ne.s32.totalorder %s37, %s53
    %p55 = scmp.eq.s32.totalorder %s17, 0
    %p56 = por %p54, %p55
    %s58 = sadd.s32 %s57, 1
    %p61 = scmp.eq.s32.totalorder %s11, 3
    %p62 = scmp.ne.s32.totalorder %s57, %s59
    %p63 = scmp.eq.s32.totalorder %s11, 0
    %p64 = por %p62, %p63
    %p65 = scmp.ne.s32.totalorder %s57, %s59
    %p66 = scmp.eq.s32.totalorder %s16, 3
    %p67 = por %p65, %p66
    %p68 = scmp.ne.s32.totalorder %s59, %s60
    %p69 = scmp.eq.s32.totalorder %s16, 0
    %p70 = por %p68, %p69
    %p71 = scmp.ne.s32.totalorder %s59, %s60
    %p72 = scmp.eq.s32.totalorder %s17, 3
    %p73 = por %p71, %p72
    %p75 = scmp.ne.s32.totalorder %s60, %s74
    %p76 = scmp.eq.s32.totalorder %s17, 0
    %p77 = por %p75, %p76
    %s79 = sadd.s32 %s78, 1
    %p82 = scmp.eq.s32.totalorder %s11, 3
    %p83 = scmp.ne.s32.totalorder %s78, %s80
    %p84 = scmp.eq.s32.totalorder %s11, 0
    %p85 = por %p83, %p84
    %p86 = scmp.ne.s32.totalorder %s78, %s80
    %p87 = scmp.eq.s32.totalorder %s16, 3
    %p88 = por %p86, %p87
    %p89 = scmp.ne.s32.totalorder %s80, %s81
    %p90 = scmp.eq.s32.totalorder %s16, 0
    %p91 = por %p89, %p90
    %p92 = scmp.ne.s32.totalorder %s80, %s81
    %p93 = scmp.eq.s32.totalorder %s17, 3
    %p94 = por %p92, %p93
    %p96 = scmp.ne.s32.totalorder %s81, %s95
    %p97 = scmp.eq.s32.totalorder %s17, 0
    %p98 = por %p96, %p97
    %s100 = sadd.s32 %s99, 1
    %p103 = scmp.eq.s32.totalorder %s11, 3
    %p104 = scmp.ne.s32.totalorder %s99, %s101
    %p105 = scmp.eq.s32.totalorder %s11, 0
    %p106 = por %p104, %p105
    %p107 = scmp.ne.s32.totalorder %s99, %s101
    %p108 = scmp.eq.s32.totalorder %s16, 3
    %p109 = por %p107, %p108
    %p110 = scmp.ne.s32.totalorder %s101, %s102
    %p111 = scmp.eq.s32.totalorder %s16, 0
    %p112 = por %p110, %p111
    %p113 = scmp.ne.s32.totalorder %s101, %s102
    %p114 = scmp.eq.s32.totalorder %s17, 3
    %p115 = por %p113, %p114
    %p117 = scmp.ne.s32.totalorder %s102, %s116
    %p118 = scmp.eq.s32.totalorder %s17, 0
    %p119 = por %p117, %p118
    %s121 = sadd.s32 %s120, 1
    %p124 = scmp.eq.s32.totalorder %s11, 3
    %p125 = scmp.ne.s32.totalorder %s120, %s122
    %p126 = scmp.eq.s32.totalorder %s11, 0
    %p127 = por %p125, %p126
    %p128 = scmp.ne.s32.totalorder %s120, %s122
    %p129 = scmp.eq.s32.totalorder %s16, 3
    %p130 = por %p128, %p129
    %p131 = scmp.ne.s32.totalorder %s122, %s123
    %p132 = scmp.eq.s32.totalorder %s16, 0
    %p133 = por %p131, %p132
    %p134 = scmp.ne.s32.totalorder %s122, %s123
    %p135 = scmp.eq.s32.totalorder %s17, 3
    %p136 = por %p134, %p135
    %p138 = scmp.ne.s32.totalorder %s123, %s137
    %p139 = scmp.eq.s32.totalorder %s17, 0
    %p140 = por %p138, %p139
    %s141 = ssub.s32 %s18, %s30
    %s142 = ssub.s32 %s19, %s26
    %s143 = sor.u32 %s141, %s142
    %p144 = scmp.eq.s32.totalorder %s143, 0
    %s146 = sadd.s32 %s145, 1
    %s147 = scalar_select %p144, %s145, %s146
    %p150 = pneg %p144
    %p151 = scmp.eq.s32.totalorder %s11, 3
    %p152 = por %p150, %p151
    %p153 = scmp.ne.s32.totalorder %s145, %s148
    %p154 = scmp.eq.s32.totalorder %s11, 0
    %p155 = por %p153, %p154
    %p156 = scmp.ne.s32.totalorder %s145, %s148
    %p157 = scmp.eq.s32.totalorder %s16, 3
    %p158 = por %p156, %p157
    %p159 = scmp.ne.s32.totalorder %s148, %s149
    %p160 = scmp.eq.s32.totalorder %s16, 0
    %p161 = por %p159, %p160
    %p162 = scmp.ne.s32.totalorder %s148, %s149
    %p163 = scmp.eq.s32.totalorder %s17, 3
    %p164 = por %p162, %p163
    %p166 = scmp.ne.s32.totalorder %s149, %s165
    %p167 = scmp.eq.s32.totalorder %s17, 0
    %p168 = por %p166, %p167
    %p169 = scmp.le.s32.totalorder 1, %s11
    %p170 = scmp.lt.s32.totalorder %s11, 5
    %p171 = pnand %p169, %p170
    %p172 = pneg %p171
    // Predicated region
    $region9: #{upblock_forward.4} parent=5 // pred_check
      _
    $region10: #{upblock_forward.4} parent=5 // pred_check_branch
      %174 = sbr.rel (%p171) target = $region12
    $region11: #{upblock_forward.4} parent=5 // pred_region
      %s175 = ssub.s32 %s11, 1
      // Predicated region
      $region13: #{upblock_forward.4} parent=11 // pred_check
        %p176 = pneg %p70
      $region14: #{upblock_forward.4} parent=11 // pred_check_branch
        %178 = sbr.rel (%p176) target = $region16
      $region15: #{upblock_forward.4} parent=11 // pred_region
        _
      $region16: #{upblock_forward.4} parent=11 // pred_fallthru
        _
      // Predicated region
      $region17: #{upblock_forward.4} parent=11 // pred_check
        %p179 = pneg %p91
      $region18: #{upblock_forward.4} parent=11 // pred_check_branch
        %181 = sbr.rel (%p179) target = $region20
      $region19: #{upblock_forward.4} parent=11 // pred_region
        _
      $region20: #{upblock_forward.4} parent=11 // pred_fallthru
        _
      // Predicated region
      $region21: #{upblock_forward.4} parent=11 // pred_check
        %p182 = pneg %p112
      $region22: #{upblock_forward.4} parent=11 // pred_check_branch
        %184 = sbr.rel (%p182) target = $region24
      $region23: #{upblock_forward.4} parent=11 // pred_region
        _
      $region24: #{upblock_forward.4} parent=11 // pred_fallthru
        _
      // Predicated region
      $region25: #{upblock_forward.4} parent=11 // pred_check
        %p185 = pneg %p133
      $region26: #{upblock_forward.4} parent=11 // pred_check_branch
        %187 = sbr.rel (%p185) target = $region28
      $region27: #{upblock_forward.4} parent=11 // pred_region
        _
      $region28: #{upblock_forward.4} parent=11 // pred_fallthru
        _
    $region12: #{upblock_forward.4} parent=5 // pred_fallthru
      _
    %p188 = scmp.lt.s32.totalorder %s11, 4
    // Predicated region
    $region29: #{upblock_forward.4} parent=5 // pred_check
      %p189 = pneg %p188
    $region30: #{upblock_forward.4} parent=5 // pred_check_branch
      %191 = sbr.rel (%p189) target = $region32
    $region31: #{upblock_forward.4} parent=5 // pred_region
      // Predicated region
      $region33: #{upblock_forward.4} parent=31 // pred_check
        %p192 = pneg %p43
      $region34: #{upblock_forward.4} parent=31 // pred_check_branch
        %194 = sbr.rel (%p192) target = $region36
      $region35: #{upblock_forward.4} parent=31 // pred_region
        %p195 = scmp.lt.s32.totalorder %s18, 1
        %s196 = scalar_select %p195, %s18, 1
        %s197 = smul.addr %s196, 32
        %s198 = smul.addr %s197, 8
        %s199 = scalar_lea.vmem %s0, %s198
      $region36: #{upblock_forward.4} parent=31 // pred_fallthru
        _
    $region32: #{upblock_forward.4} parent=5 // pred_fallthru
      _
    %p200 = scmp.le.s32.totalorder 1, %s11
    %p201 = scmp.lt.s32.totalorder %s11, 5
    %p202 = pnand %p200, %p201
    %p203 = pneg %p202
    // Predicated region
    $region37: #{upblock_forward.4} parent=5 // pred_check
      _
    $region38: #{upblock_forward.4} parent=5 // pred_check_branch
      %205 = sbr.rel (%p202) target = $region40
    $region39: #{upblock_forward.4} parent=5 // pred_region
      %s206 = ssub.s32 %s11, 1
      %p207 = scmp.lt.s32.totalorder %s20, 1
      %s208 = scalar_select %p207, %s20, 1
      %s209 = smul.addr %s208, 32
      %s210 = smul.addr %s209, 8
      %s211 = scalar_lea.vmem %s0, %s210
      %p212 = pneg %p49
      %p213 = pneg %p46
      %p214 = pneg %p70
      %p215 = pneg %p67
      %p216 = pneg %p91
      %p217 = pneg %p88
      %p218 = pneg %p112
      %p219 = pneg %p109
      %p220 = pneg %p133
      %p221 = pneg %p130
      %p222 = pneg %p161
      %p223 = pneg %p158
      %p224 = scmp.lt.s32.totalorder %s20, 1
      %s225 = scalar_select %p224, %s20, 1
      %p226 = scmp.lt.s32.totalorder %s21, 1
      %s227 = scalar_select %p226, %s21, 1
      %s228 = smul.addr %s227, 8
      %s229 = smul.addr %s225, 16
      %s230 = sadd.s32 %s228, %s229
      %s231 = smul.addr %s230, 4
      %s232 = scalar_lea.vmem %s5, %s231
      %p233 = scmp.lt.s32.totalorder %s20, 1
      %s234 = scalar_select %p233, %s20, 1
      %s235 = smul.addr %s234, 32
      %s236 = smul.addr %s235, 8
      %s237 = scalar_lea.vmem %s0, %s236
      %p238 = scmp.lt.s32.totalorder %s20, 1
      %s239 = scalar_select %p238, %s20, 1
      %p240 = scmp.lt.s32.totalorder %s21, 1
      %s241 = scalar_select %p240, %s21, 1
      %s242 = smul.addr %s241, 8
      %s243 = smul.addr %s239, 16
      %s244 = sadd.s32 %s242, %s243
      %s245 = smul.addr %s244, 4
      %s246 = scalar_lea.vmem %s5, %s245
      %s248 = smul.u32 %s21, 4
      %249 = vst [vmem:[#allocation2] sm:$0xff] 0.0
      %250 = vst [vmem:[#allocation2 + $0x8] sm:$0xff] 0.0
      %251 = vst [vmem:[#allocation2 + $0x10] sm:$0xff] 0.0
      %252 = vst [vmem:[#allocation2 + $0x18] sm:$0xff] 0.0
      %253 = vst [vmem:[#allocation2 + $0x20] sm:$0x3] 0.0
      %254 = vst [vmem:[#allocation2 + $0x28] sm:$0x3] 0.0
      %255 = vst [vmem:[#allocation2 + $0x30] sm:$0xff] 0.0
      %256 = vst [vmem:[#allocation2 + $0x38] sm:$0xff] 0.0
      %257 = vst [vmem:[#allocation2 + $0x40] sm:$0xff] 0.0
      %258 = vst [vmem:[#allocation2 + $0x48] sm:$0xff] 0.0
      %259 = vst [vmem:[#allocation2 + $0x50] sm:$0x3] 0.0
      %260 = vst [vmem:[#allocation2 + $0x58] sm:$0x3] 0.0
      %261 = vst [vmem:[#allocation2 + $0x60] sm:$0xff] 0.0
      %262 = vst [vmem:[#allocation2 + $0x68] sm:$0xff] 0.0
      %263 = vst [vmem:[#allocation2 + $0x70] sm:$0xff] 0.0
      %264 = vst [vmem:[#allocation2 + $0x78] sm:$0xff] 0.0
      %265 = vst [vmem:[#allocation2 + $0x80] sm:$0x3] 0.0
      %266 = vst [vmem:[#allocation2 + $0x88] sm:$0x3] 0.0
      %267 = vst [vmem:[#allocation2 + $0x90] sm:$0xff] 0.0
      %268 = vst [vmem:[#allocation2 + $0x98] sm:$0xff] 0.0
      %269 = vst [vmem:[#allocation2 + $0xa0] sm:$0xff] 0.0
      %270 = vst [vmem:[#allocation2 + $0xa8] sm:$0xff] 0.0
      %271 = vst [vmem:[#allocation2 + $0xb0] sm:$0x3] 0.0
      %272 = vst [vmem:[#allocation2 + $0xb8] sm:$0x3] 0.0
      %273 = vst [vmem:[#allocation2 + $0xc0] sm:$0xff] 0.0
      %274 = vst [vmem:[#allocation2 + $0xc8] sm:$0xff] 0.0
      %275 = vst [vmem:[#allocation2 + $0xd0] sm:$0xff] 0.0
      %276 = vst [vmem:[#allocation2 + $0xd8] sm:$0xff] 0.0
      %277 = vst [vmem:[#allocation2 + $0xe0] sm:$0x3] 0.0
      %278 = vst [vmem:[#allocation2 + $0xe8] sm:$0x3] 0.0
      %279 = vst [vmem:[#allocation2 + $0xf0] sm:$0xff] 0.0
      %280 = vst [vmem:[#allocation2 + $0xf8] sm:$0xff] 0.0
      %281 = vst [vmem:[#allocation2 + $0x100] sm:$0xff] 0.0
      %282 = vst [vmem:[#allocation2 + $0x108] sm:$0xff] 0.0
      %283 = vst [vmem:[#allocation2 + $0x110] sm:$0x3] 0.0
      %284 = vst [vmem:[#allocation2 + $0x118] sm:$0x3] 0.0
      %s285 = smul.u32 %s248, 4
      %s286 = smul.addr %s285, 8
      %s287 = scalar_lea.vmem %s237, %s286
      %v288 = vld [vmem:[%s287] sm:$0xff]
      %v289 = vld [vmem:[%s287 + $0x8] sm:$0xff]
      %v290 = vld [vmem:[%s287 + $0x10] sm:$0xff]
      %v291 = vld [vmem:[%s287 + $0x18] sm:$0xff]
      %v292 = vld [vmem:[%s287 + $0x20] sm:$0xff]
      %v293 = vld [vmem:[%s287 + $0x28] sm:$0xff]
      %v294 = vld [vmem:[%s287 + $0x30] sm:$0xff]
      %v295 = vld [vmem:[%s287 + $0x38] sm:$0xff]
      %v296 = vld [vmem:[%s287 + $0x40] sm:$0xff]
      %v297 = vld [vmem:[%s287 + $0x48] sm:$0xff]
      %v298 = vld [vmem:[%s287 + $0x50] sm:$0xff]
      %v299 = vld [vmem:[%s287 + $0x58] sm:$0xff]
      %v300 = vld [vmem:[%s287 + $0x60] sm:$0xff]
      %v301 = vld [vmem:[%s287 + $0x68] sm:$0xff]
      %v302 = vld [vmem:[%s287 + $0x70] sm:$0xff]
      %v303 = vld [vmem:[%s287 + $0x78] sm:$0xff]
      %vm320 = vcmask 1040384
      %v321 = vrot.slane %v288, 7
      %v322 = vrot.slane %v289, 7
      %v323 = vrot.slane %v290, 7
      %v324 = vsel %vm320, %v321, %v323
      %v325 = vrot.slane %v291, 7
      %v326 = vsel %vm320, %v322, %v325
      %v327 = vrot.slane %v292, 7
      %v328 = vrot.slane %v293, 7
      %v329 = vrot.slane %v294, 7
      %v330 = vsel %vm320, %v327, %v329
      %v331 = vrot.slane %v295, 7
      %v332 = vsel %vm320, %v328, %v331
      %v333 = vrot.slane %v296, 7
      %v334 = vrot.slane %v297, 7
      %v335 = vrot.slane %v298, 7
      %v336 = vsel %vm320, %v333, %v335
      %v337 = vrot.slane %v299, 7
      %v338 = vsel %vm320, %v334, %v337
      %v339 = vrot.slane %v300, 7
      %v340 = vrot.slane %v301, 7
      %v341 = vrot.slane %v302, 7
      %v342 = vsel %vm320, %v339, %v341
      %v343 = vrot.slane %v303, 7
      %v344 = vsel %vm320, %v340, %v343
      %s369 = scalar_lea.vmem [#allocation2], 48
      %370 = vst [vmem:[%s369] sm:$0xfe] %v321
      %371 = vst [vmem:[%s369 + $0x8] sm:$0xfe] %v322
      %372 = vst [vmem:[%s369 + $0x10] sm:$0xff] %v324
      %373 = vst [vmem:[%s369 + $0x18] sm:$0xff] %v326
      %374 = vst [vmem:[%s369 + $0x20] sm:$0x1] %v323
      %375 = vst [vmem:[%s369 + $0x28] sm:$0x1] %v325
      %376 = vst [vmem:[%s369 + $0x30] sm:$0xfe] %v327
      %377 = vst [vmem:[%s369 + $0x38] sm:$0xfe] %v328
      %378 = vst [vmem:[%s369 + $0x40] sm:$0xff] %v330
      %379 = vst [vmem:[%s369 + $0x48] sm:$0xff] %v332
      %380 = vst [vmem:[%s369 + $0x50] sm:$0x1] %v329
      %381 = vst [vmem:[%s369 + $0x58] sm:$0x1] %v331
      %382 = vst [vmem:[%s369 + $0x60] sm:$0xfe] %v333
      %383 = vst [vmem:[%s369 + $0x68] sm:$0xfe] %v334
      %384 = vst [vmem:[%s369 + $0x70] sm:$0xff] %v336
      %385 = vst [vmem:[%s369 + $0x78] sm:$0xff] %v338
      %386 = vst [vmem:[%s369 + $0x80] sm:$0x1] %v335
      %387 = vst [vmem:[%s369 + $0x88] sm:$0x1] %v337
      %388 = vst [vmem:[%s369 + $0x90] sm:$0xfe] %v339
      %389 = vst [vmem:[%s369 + $0x98] sm:$0xfe] %v340
      %390 = vst [vmem:[%s369 + $0xa0] sm:$0xff] %v342
      %391 = vst [vmem:[%s369 + $0xa8] sm:$0xff] %v344
      %392 = vst [vmem:[%s369 + $0xb0] sm:$0x1] %v341
      %393 = vst [vmem:[%s369 + $0xb8] sm:$0x1] %v343
      %p394 = scmp.gt.s32.totalorder %s21, 0
      // Predicated region
      $region41: #{upblock_forward.4} parent=39 // pred_check
        %p395 = pneg %p394
      $region42: #{upblock_forward.4} parent=39 // pred_check_branch
        %397 = sbr.rel (%p395) target = $region44
      $region43: #{upblock_forward.4} parent=39 // pred_region
        %s398 = ssub.s32 %s248, 1
        %s399 = smul.u32 %s398, 4
        %s400 = smul.addr %s399, 8
        %s401 = scalar_lea.vmem %s237, %s400
        %v402 = vld [vmem:[%s401] sm:$0xff]
        %v403 = vld [vmem:[%s401 + $0x8] sm:$0xff]
        %v404 = vld [vmem:[%s401 + $0x10] sm:$0xff]
        %v405 = vld [vmem:[%s401 + $0x18] sm:$0xff]
        %v410 = vrot.slane %v402, 7
        %v411 = vrot.slane %v403, 7
        %v412 = vrot.slane %v404, 7
        %v413 = vsel %vm320, %v410, %v412
        %v414 = vrot.slane %v405, 7
        %v415 = vsel %vm320, %v411, %v414
        %422 = vst [vmem:[#allocation2] sm:$0xfe] %v410
        %423 = vst [vmem:[#allocation2 + $0x8] sm:$0xfe] %v411
        %424 = vst [vmem:[#allocation2 + $0x10] sm:$0xff] %v413
        %425 = vst [vmem:[#allocation2 + $0x18] sm:$0xff] %v415
        %426 = vst [vmem:[#allocation2 + $0x20] sm:$0x1] %v412
        %427 = vst [vmem:[#allocation2 + $0x28] sm:$0x1] %v414
      $region44: #{upblock_forward.4} parent=39 // pred_fallthru
        _
      %s428 = sadd.s32 %s21, 1
      %p429 = scmp.lt.s32.totalorder %s428, 2
      // Predicated region
      $region45: #{upblock_forward.4} parent=39 // pred_check
        %p430 = pneg %p429
      $region46: #{upblock_forward.4} parent=39 // pred_check_branch
        %432 = sbr.rel (%p430) target = $region48
      $region47: #{upblock_forward.4} parent=39 // pred_region
        %s433 = sadd.s32 %s248, 4
        %s434 = smul.u32 %s433, 4
        %s435 = smul.addr %s434, 8
        %s436 = scalar_lea.vmem %s237, %s435
        %v437 = vld [vmem:[%s436] sm:$0xff]
        %v438 = vld [vmem:[%s436 + $0x8] sm:$0xff]
        %v439 = vld [vmem:[%s436 + $0x10] sm:$0xff]
        %v440 = vld [vmem:[%s436 + $0x18] sm:$0xff]
        %v445 = vrot.slane %v437, 7
        %v446 = vrot.slane %v438, 7
        %v447 = vrot.slane %v439, 7
        %v448 = vsel %vm320, %v445, %v447
        %v449 = vrot.slane %v440, 7
        %v450 = vsel %vm320, %v446, %v449
        %s457 = scalar_lea.vmem [#allocation2], 240
        %458 = vst [vmem:[%s457] sm:$0xfe] %v445
        %459 = vst [vmem:[%s457 + $0x8] sm:$0xfe] %v446
        %460 = vst [vmem:[%s457 + $0x10] sm:$0xff] %v448
        %461 = vst [vmem:[%s457 + $0x18] sm:$0xff] %v450
        %462 = vst [vmem:[%s457 + $0x20] sm:$0x1] %v447
        %463 = vst [vmem:[%s457 + $0x28] sm:$0x1] %v449
      $region48: #{upblock_forward.4} parent=39 // pred_fallthru
        _
      %v464 = vld [vmem:[#allocation2] sm:$0xff]
      %v465 = vld [vmem:[#allocation2 + $0x8] sm:$0xff]
      %v466 = vld [vmem:[#allocation2 + $0x10] sm:$0xff]
      %v467 = vld [vmem:[#allocation2 + $0x18] sm:$0xff]
      %v468 = vld [vmem:[#allocation2 + $0x30] sm:$0xff]
      %v469 = vld [vmem:[#allocation2 + $0x38] sm:$0xff]
      %v470 = vld [vmem:[#allocation2 + $0x40] sm:$0xff]
      %v471 = vld [vmem:[#allocation2 + $0x48] sm:$0xff]
      %v472 = vld [vmem:[#allocation2 + $0x60] sm:$0xff]
      %v473 = vld [vmem:[#allocation2 + $0x68] sm:$0xff]
      %v474 = vld [vmem:[#allocation2 + $0x70] sm:$0xff]
      %v475 = vld [vmem:[#allocation2 + $0x78] sm:$0xff]
      %v476 = vld [vmem:[#allocation2 + $0x90] sm:$0xff]
      %v477 = vld [vmem:[#allocation2 + $0x98] sm:$0xff]
      %v478 = vld [vmem:[#allocation2 + $0xa0] sm:$0xff]
      %v479 = vld [vmem:[#allocation2 + $0xa8] sm:$0xff]
      %v480 = vpack.c.bf16 %v466, %v464
      %v481 = vpack.c.bf16 %v467, %v465
      %v482 = vpack.c.bf16 %v470, %v468
      %v483 = vpack.c.bf16 %v471, %v469
      %v484 = vpack.c.bf16 %v474, %v472
      %v485 = vpack.c.bf16 %v475, %v473
      %v486 = vpack.c.bf16 %v478, %v476
      %v487 = vpack.c.bf16 %v479, %v477
      %v488 = vld [vmem:[%s1] sm:$0xf]
      %v489 = vld [vmem:[%s1 + $0x4] sm:$0xf]
      %v490 = vld [vmem:[%s1 + $0x8] sm:$0xf]
      %v491 = vld [vmem:[%s1 + $0xc] sm:$0xf]
      %v492 = vld [vmem:[%s1 + $0x10] sm:$0xf]
      %v493 = vld [vmem:[%s1 + $0x14] sm:$0xf]
      %v494 = vld [vmem:[%s1 + $0x18] sm:$0xf]
      %v495 = vld [vmem:[%s1 + $0x1c] sm:$0xf]
      %v496 = vld [vmem:[%s1 + $0x20] sm:$0xf]
      %v497 = vld [vmem:[%s1 + $0x24] sm:$0xf]
      %v498 = vld [vmem:[%s1 + $0x28] sm:$0xf]
      %v499 = vld [vmem:[%s1 + $0x2c] sm:$0xf]
      %v500 = vld [vmem:[%s1 + $0x30] sm:$0xf]
      %v501 = vld [vmem:[%s1 + $0x34] sm:$0xf]
      %v502 = vld [vmem:[%s1 + $0x38] sm:$0xf]
      %v503 = vld [vmem:[%s1 + $0x3c] sm:$0xf]
      %v504 = vld [vmem:[%s1 + $0x40] sm:$0xf]
      %v505 = vld [vmem:[%s1 + $0x44] sm:$0xf]
      %v506 = vld [vmem:[%s1 + $0x48] sm:$0xf]
      %v507 = vld [vmem:[%s1 + $0x4c] sm:$0xf]
      %v508 = vld [vmem:[%s1 + $0x50] sm:$0xf]
      %v509 = vld [vmem:[%s1 + $0x54] sm:$0xf]
      %v510 = vld [vmem:[%s1 + $0x58] sm:$0xf]
      %v511 = vld [vmem:[%s1 + $0x5c] sm:$0xf]
      %v512 = vld [vmem:[%s1 + $0x60] sm:$0xf]
      %v513 = vld [vmem:[%s1 + $0x64] sm:$0xf]
      %v514 = vld [vmem:[%s1 + $0x68] sm:$0xf]
      %v515 = vld [vmem:[%s1 + $0x6c] sm:$0xf]
      %v516 = vld [vmem:[%s1 + $0x70] sm:$0xf]
      %v517 = vld [vmem:[%s1 + $0x74] sm:$0xf]
      %v518 = vld [vmem:[%s1 + $0x78] sm:$0xf]
      %v519 = vld [vmem:[%s1 + $0x7c] sm:$0xf]
      %v520 = vld [vmem:[#allocation2] sm:$0xfe]
      %v521 = vld [vmem:[#allocation2 + $0x8] sm:$0xfe]
      %v522 = vld [vmem:[#allocation2 + $0x20] sm:$0x1]
      %v523 = vld [vmem:[#allocation2 + $0x28] sm:$0x1]
      %v524 = vld [vmem:[#allocation2 + $0x30] sm:$0xfe]
      %v525 = vld [vmem:[#allocation2 + $0x38] sm:$0xfe]
      %v526 = vld [vmem:[#allocation2 + $0x50] sm:$0x1]
      %v527 = vld [vmem:[#allocation2 + $0x58] sm:$0x1]
      %v528 = vld [vmem:[#allocation2 + $0x60] sm:$0xfe]
      %v529 = vld [vmem:[#allocation2 + $0x68] sm:$0xfe]
      %v530 = vld [vmem:[#allocation2 + $0x80] sm:$0x1]
      %v531 = vld [vmem:[#allocation2 + $0x88] sm:$0x1]
      %v532 = vld [vmem:[#allocation2 + $0x90] sm:$0xfe]
      %v533 = vld [vmem:[#allocation2 + $0x98] sm:$0xfe]
      %v534 = vld [vmem:[#allocation2 + $0xb0] sm:$0x1]
      %v535 = vld [vmem:[#allocation2 + $0xb8] sm:$0x1]
      %vm560 = vcmask 1046528
      %v561 = vrot.slane %v520, 1
      %v562 = vrot.slane %v466, 1
      %v563 = vsel %vm560, %v561, %v562
      %v564 = vrot.slane %v521, 1
      %v565 = vrot.slane %v467, 1
      %v566 = vsel %vm560, %v564, %v565
      %v567 = vrot.slane %v522, 1
      %v568 = vsel %vm560, %v562, %v567
      %v569 = vrot.slane %v523, 1
      %v570 = vsel %vm560, %v565, %v569
      %v571 = vrot.slane %v524, 1
      %v572 = vrot.slane %v470, 1
      %v573 = vsel %vm560, %v571, %v572
      %v574 = vrot.slane %v525, 1
      %v575 = vrot.slane %v471, 1
      %v576 = vsel %vm560, %v574, %v575
      %v577 = vrot.slane %v526, 1
      %v578 = vsel %vm560, %v572, %v577
      %v579 = vrot.slane %v527, 1
      %v580 = vsel %vm560, %v575, %v579
      %v581 = vrot.slane %v528, 1
      %v582 = vrot.slane %v474, 1
      %v583 = vsel %vm560, %v581, %v582
      %v584 = vrot.slane %v529, 1
      %v585 = vrot.slane %v475, 1
      %v586 = vsel %vm560, %v584, %v585
      %v587 = vrot.slane %v530, 1
      %v588 = vsel %vm560, %v582, %v587
      %v589 = vrot.slane %v531, 1
      %v590 = vsel %vm560, %v585, %v589
      %v591 = vrot.slane %v532, 1
      %v592 = vrot.slane %v478, 1
      %v593 = vsel %vm560, %v591, %v592
      %v594 = vrot.slane %v533, 1
      %v595 = vrot.slane %v479, 1
      %v596 = vsel %vm560, %v594, %v595
      %v597 = vrot.slane %v534, 1
      %v598 = vsel %vm560, %v592, %v597
      %v599 = vrot.slane %v535, 1
      %v600 = vsel %vm560, %v595, %v599
      %v617 = vpack.c.bf16 %v568, %v563
      %v618 = vpack.c.bf16 %v570, %v566
      %v619 = vpack.c.bf16 %v578, %v573
      %v620 = vpack.c.bf16 %v580, %v576
      %v621 = vpack.c.bf16 %v588, %v583
      %v622 = vpack.c.bf16 %v590, %v586
      %v623 = vpack.c.bf16 %v598, %v593
      %v624 = vpack.c.bf16 %v600, %v596
      %s625 = scalar_lea.vmem %s1, 128
      %v626 = vld [vmem:[%s625] sm:$0xf]
      %v627 = vld [vmem:[%s625 + $0x4] sm:$0xf]
      %v628 = vld [vmem:[%s625 + $0x8] sm:$0xf]
      %v629 = vld [vmem:[%s625 + $0xc] sm:$0xf]
      %v630 = vld [vmem:[%s625 + $0x10] sm:$0xf]
      %v631 = vld [vmem:[%s625 + $0x14] sm:$0xf]
      %v632 = vld [vmem:[%s625 + $0x18] sm:$0xf]
      %v633 = vld [vmem:[%s625 + $0x1c] sm:$0xf]
      %v634 = vld [vmem:[%s625 + $0x20] sm:$0xf]
      %v635 = vld [vmem:[%s625 + $0x24] sm:$0xf]
      %v636 = vld [vmem:[%s625 + $0x28] sm:$0xf]
      %v637 = vld [vmem:[%s625 + $0x2c] sm:$0xf]
      %v638 = vld [vmem:[%s625 + $0x30] sm:$0xf]
      %v639 = vld [vmem:[%s625 + $0x34] sm:$0xf]
      %v640 = vld [vmem:[%s625 + $0x38] sm:$0xf]
      %v641 = vld [vmem:[%s625 + $0x3c] sm:$0xf]
      %v642 = vld [vmem:[%s625 + $0x40] sm:$0xf]
      %v643 = vld [vmem:[%s625 + $0x44] sm:$0xf]
      %v644 = vld [vmem:[%s625 + $0x48] sm:$0xf]
      %v645 = vld [vmem:[%s625 + $0x4c] sm:$0xf]
      %v646 = vld [vmem:[%s625 + $0x50] sm:$0xf]
      %v647 = vld [vmem:[%s625 + $0x54] sm:$0xf]
      %v648 = vld [vmem:[%s625 + $0x58] sm:$0xf]
      %v649 = vld [vmem:[%s625 + $0x5c] sm:$0xf]
      %v650 = vld [vmem:[%s625 + $0x60] sm:$0xf]
      %v651 = vld [vmem:[%s625 + $0x64] sm:$0xf]
      %v652 = vld [vmem:[%s625 + $0x68] sm:$0xf]
      %v653 = vld [vmem:[%s625 + $0x6c] sm:$0xf]
      %v654 = vld [vmem:[%s625 + $0x70] sm:$0xf]
      %v655 = vld [vmem:[%s625 + $0x74] sm:$0xf]
      %v656 = vld [vmem:[%s625 + $0x78] sm:$0xf]
      %v657 = vld [vmem:[%s625 + $0x7c] sm:$0xf]
      %v690 = vunpack.c.l.b16 %v626
      %v691 = vunpack.c.l.b16 %v627
      %v692 = vunpack.c.l.b16 %v628
      %v693 = vunpack.c.l.b16 %v629
      %v694 = vunpack.c.l.b16 %v630
      %v695 = vunpack.c.l.b16 %v631
      %v696 = vunpack.c.l.b16 %v632
      %v697 = vunpack.c.l.b16 %v633
      %v698 = vunpack.c.l.b16 %v634
      %v699 = vunpack.c.l.b16 %v635
      %v700 = vunpack.c.l.b16 %v636
      %v701 = vunpack.c.l.b16 %v637
      %v702 = vunpack.c.l.b16 %v638
      %v703 = vunpack.c.l.b16 %v639
      %v704 = vunpack.c.l.b16 %v640
      %v705 = vunpack.c.l.b16 %v641
      %v706 = vunpack.c.l.b16 %v642
      %v707 = vunpack.c.l.b16 %v643
      %v708 = vunpack.c.l.b16 %v644
      %v709 = vunpack.c.l.b16 %v645
      %v710 = vunpack.c.l.b16 %v646
      %v711 = vunpack.c.l.b16 %v647
      %v712 = vunpack.c.l.b16 %v648
      %v713 = vunpack.c.l.b16 %v649
      %v714 = vunpack.c.l.b16 %v650
      %v715 = vunpack.c.l.b16 %v651
      %v716 = vunpack.c.l.b16 %v652
      %v717 = vunpack.c.l.b16 %v653
      %v718 = vunpack.c.l.b16 %v654
      %v719 = vunpack.c.l.b16 %v655
      %v720 = vunpack.c.l.b16 %v656
      %v721 = vunpack.c.l.b16 %v657
      %v722 = vpack.c.b16 %v691, %v690
      %v723 = vpack.c.b16 %v693, %v692
      %v724 = vpack.c.b16 %v695, %v694
      %v725 = vpack.c.b16 %v697, %v696
      %v726 = vpack.c.b16 %v699, %v698
      %v727 = vpack.c.b16 %v701, %v700
      %v728 = vpack.c.b16 %v703, %v702
      %v729 = vpack.c.b16 %v705, %v704
      %v730 = vpack.c.b16 %v707, %v706
      %v731 = vpack.c.b16 %v709, %v708
      %v732 = vpack.c.b16 %v711, %v710
      %v733 = vpack.c.b16 %v713, %v712
      %v734 = vpack.c.b16 %v715, %v714
      %v735 = vpack.c.b16 %v717, %v716
      %v736 = vpack.c.b16 %v719, %v718
      %v737 = vpack.c.b16 %v721, %v720
      %754 = vmatprep.subr.bf16.mxu0 0
      %755 = vmatpush1.bf16.msra.mxu0 %v729
      %756 = vmatprep.subr.bf16.mxu0 0
      %757 = vmatpush1.bf16.msra.mxu0 %v728
      %758 = vmatprep.subr.bf16.mxu0 0
      %759 = vmatpush1.bf16.msra.mxu0 %v727
      %760 = vmatprep.subr.bf16.mxu0 0
      %761 = vmatpush1.bf16.msra.mxu0 %v726
      %762 = vmatprep.subr.bf16.mxu0 0
      %763 = vmatpush1.bf16.msra.mxu0 %v725
      %764 = vmatprep.subr.bf16.mxu0 0
      %765 = vmatpush1.bf16.msra.mxu0 %v724
      %766 = vmatprep.subr.bf16.mxu0 0
      %767 = vmatpush1.bf16.msra.mxu0 %v723
      %768 = vmatprep.subr.bf16.mxu0 0
      %769 = vmatpush1.bf16.msra.mxu0 %v722
      %770 = vmatprep.subr.bf16.mxu0 0
      %771 = vmatpush2.bf16.msra.mxu0 %v737
      %772 = vmatprep.subr.bf16.mxu0 0
      %773 = vmatpush2.bf16.msra.mxu0 %v736
      %774 = vmatprep.subr.bf16.mxu0 0
      %775 = vmatpush2.bf16.msra.mxu0 %v735
      %776 = vmatprep.subr.bf16.mxu0 0
      %777 = vmatpush2.bf16.msra.mxu0 %v734
      %778 = vmatprep.subr.bf16.mxu0 0
      %779 = vmatpush2.bf16.msra.mxu0 %v733
      %780 = vmatprep.subr.bf16.mxu0 0
      %781 = vmatpush2.bf16.msra.mxu0 %v732
      %782 = vmatprep.subr.bf16.mxu0 0
      %783 = vmatpush2.bf16.msra.mxu0 %v731
      %784 = vmatprep.subr.bf16.mxu0 0
      %785 = vmatpush2.bf16.msra.mxu0 %v730
      %786 = vmatprep.mubr.bf16.mxu0 %v618
      %787 = vmatmul.mubr.bf16.gmra.mxu0 %v617
      %v788 = vpop.f32.mrf.mxu0
      %v789 = vadd.f32 0.0, %v788
      %v790 = vpop.f32.mrf.mxu0
      %v791 = vpop.f32.mrf.mxu0
      %v792 = vadd.f32 0.0, %v791
      %v793 = vpop.f32.mrf.mxu0
      %794 = vmatprep.mubr.bf16.mxu0 %v620
      %795 = vmatmul.mubr.bf16.gmra.mxu0 %v619
      %v796 = vpop.f32.mrf.mxu0
      %v797 = vadd.f32 0.0, %v796
      %v798 = vpop.f32.mrf.mxu0
      %v799 = vpop.f32.mrf.mxu0
      %v800 = vadd.f32 0.0, %v799
      %v801 = vpop.f32.mrf.mxu0
      %802 = vmatprep.mubr.bf16.mxu0 %v622
      %803 = vmatmul.mubr.bf16.gmra.mxu0 %v621
      %v804 = vpop.f32.mrf.mxu0
      %v805 = vadd.f32 0.0, %v804
      %v806 = vpop.f32.mrf.mxu0
      %v807 = vpop.f32.mrf.mxu0
      %v808 = vadd.f32 0.0, %v807
      %v809 = vpop.f32.mrf.mxu0
      %810 = vmatprep.mubr.bf16.mxu0 %v624
      %811 = vmatmul.mubr.bf16.gmra.mxu0 %v623
      %v812 = vpop.f32.mrf.mxu0
      %v813 = vadd.f32 0.0, %v812
      %v814 = vpop.f32.mrf.mxu0
      %v815 = vpop.f32.mrf.mxu0
      %v816 = vadd.f32 0.0, %v815
      %v817 = vpop.f32.mrf.mxu0
      %818 = vdwg.mxu0
      %v851 = vunpack.c.l.b16 %v488
      %v852 = vunpack.c.l.b16 %v489
      %v853 = vunpack.c.l.b16 %v490
      %v854 = vunpack.c.l.b16 %v491
      %v855 = vunpack.c.l.b16 %v492
      %v856 = vunpack.c.l.b16 %v493
      %v857 = vunpack.c.l.b16 %v494
      %v858 = vunpack.c.l.b16 %v495
      %v859 = vunpack.c.l.b16 %v496
      %v860 = vunpack.c.l.b16 %v497
      %v861 = vunpack.c.l.b16 %v498
      %v862 = vunpack.c.l.b16 %v499
      %v863 = vunpack.c.l.b16 %v500
      %v864 = vunpack.c.l.b16 %v501
      %v865 = vunpack.c.l.b16 %v502
      %v866 = vunpack.c.l.b16 %v503
      %v867 = vunpack.c.l.b16 %v504
      %v868 = vunpack.c.l.b16 %v505
      %v869 = vunpack.c.l.b16 %v506
      %v870 = vunpack.c.l.b16 %v507
      %v871 = vunpack.c.l.b16 %v508
      %v872 = vunpack.c.l.b16 %v509
      %v873 = vunpack.c.l.b16 %v510
      %v874 = vunpack.c.l.b16 %v511
      %v875 = vunpack.c.l.b16 %v512
      %v876 = vunpack.c.l.b16 %v513
      %v877 = vunpack.c.l.b16 %v514
      %v878 = vunpack.c.l.b16 %v515
      %v879 = vunpack.c.l.b16 %v516
      %v880 = vunpack.c.l.b16 %v517
      %v881 = vunpack.c.l.b16 %v518
      %v882 = vunpack.c.l.b16 %v519
      %v883 = vpack.c.b16 %v852, %v851
      %v884 = vpack.c.b16 %v854, %v853
      %v885 = vpack.c.b16 %v856, %v855
      %v886 = vpack.c.b16 %v858, %v857
      %v887 = vpack.c.b16 %v860, %v859
      %v888 = vpack.c.b16 %v862, %v861
      %v889 = vpack.c.b16 %v864, %v863
      %v890 = vpack.c.b16 %v866, %v865
      %v891 = vpack.c.b16 %v868, %v867
      %v892 = vpack.c.b16 %v870, %v869
      %v893 = vpack.c.b16 %v872, %v871
      %v894 = vpack.c.b16 %v874, %v873
      %v895 = vpack.c.b16 %v876, %v875
      %v896 = vpack.c.b16 %v878, %v877
      %v897 = vpack.c.b16 %v880, %v879
      %v898 = vpack.c.b16 %v882, %v881
      %915 = vmatprep.subr.bf16.mxu0 0
      %916 = vmatpush1.bf16.msra.mxu0 %v890
      %917 = vmatprep.subr.bf16.mxu0 0
      %918 = vmatpush1.bf16.msra.mxu0 %v889
      %919 = vmatprep.subr.bf16.mxu0 0
      %920 = vmatpush1.bf16.msra.mxu0 %v888
      %921 = vmatprep.subr.bf16.mxu0 0
      %922 = vmatpush1.bf16.msra.mxu0 %v887
      %923 = vmatprep.subr.bf16.mxu0 0
      %924 = vmatpush1.bf16.msra.mxu0 %v886
      %925 = vmatprep.subr.bf16.mxu0 0
      %926 = vmatpush1.bf16.msra.mxu0 %v885
      %927 = vmatprep.subr.bf16.mxu0 0
      %928 = vmatpush1.bf16.msra.mxu0 %v884
      %929 = vmatprep.subr.bf16.mxu0 0
      %930 = vmatpush1.bf16.msra.mxu0 %v883
      %931 = vmatprep.subr.bf16.mxu0 0
      %932 = vmatpush2.bf16.msra.mxu0 %v898
      %933 = vmatprep.subr.bf16.mxu0 0
      %934 = vmatpush2.bf16.msra.mxu0 %v897
      %935 = vmatprep.subr.bf16.mxu0 0
      %936 = vmatpush2.bf16.msra.mxu0 %v896
      %937 = vmatprep.subr.bf16.mxu0 0
      %938 = vmatpush2.bf16.msra.mxu0 %v895
      %939 = vmatprep.subr.bf16.mxu0 0
      %940 = vmatpush2.bf16.msra.mxu0 %v894
      %941 = vmatprep.subr.bf16.mxu0 0
      %942 = vmatpush2.bf16.msra.mxu0 %v893
      %943 = vmatprep.subr.bf16.mxu0 0
      %944 = vmatpush2.bf16.msra.mxu0 %v892
      %945 = vmatprep.subr.bf16.mxu0 0
      %946 = vmatpush2.bf16.msra.mxu0 %v891
      %947 = vmatprep.mubr.bf16.mxu0 %v481
      %948 = vmatmul.mubr.bf16.gmra.mxu0 %v480
      %v949 = vpop.f32.mrf.mxu0
      %v950 = vadd.f32 %v789, %v949
      %v951 = vpop.f32.mrf.mxu0
      %v952 = vpop.f32.mrf.mxu0
      %v953 = vadd.f32 %v792, %v952
      %v954 = vpop.f32.mrf.mxu0
      %955 = vmatprep.mubr.bf16.mxu0 %v483
      %956 = vmatmul.mubr.bf16.gmra.mxu0 %v482
      %v957 = vpop.f32.mrf.mxu0
      %v958 = vadd.f32 %v797, %v957
      %v959 = vpop.f32.mrf.mxu0
      %v960 = vpop.f32.mrf.mxu0
      %v961 = vadd.f32 %v800, %v960
      %v962 = vpop.f32.mrf.mxu0
      %963 = vmatprep.mubr.bf16.mxu0 %v485
      %964 = vmatmul.mubr.bf16.gmra.mxu0 %v484
      %v965 = vpop.f32.mrf.mxu0
      %v966 = vadd.f32 %v805, %v965
      %v967 = vpop.f32.mrf.mxu0
      %v968 = vpop.f32.mrf.mxu0
      %v969 = vadd.f32 %v808, %v968
      %v970 = vpop.f32.mrf.mxu0
      %971 = vmatprep.mubr.bf16.mxu0 %v487
      %972 = vmatmul.mubr.bf16.gmra.mxu0 %v486
      %v973 = vpop.f32.mrf.mxu0
      %v974 = vadd.f32 %v813, %v973
      %v975 = vpop.f32.mrf.mxu0
      %v976 = vpop.f32.mrf.mxu0
      %v977 = vadd.f32 %v816, %v976
      %v978 = vpop.f32.mrf.mxu0
      %979 = vdwg.mxu0
      %v980 = vld [vmem:[#allocation2] sm:$0xfc]
      %v981 = vld [vmem:[#allocation2 + $0x8] sm:$0xfc]
      %v982 = vld [vmem:[#allocation2 + $0x20] sm:$0x3]
      %v983 = vld [vmem:[#allocation2 + $0x28] sm:$0x3]
      %v984 = vld [vmem:[#allocation2 + $0x30] sm:$0xfc]
      %v985 = vld [vmem:[#allocation2 + $0x38] sm:$0xfc]
      %v986 = vld [vmem:[#allocation2 + $0x50] sm:$0x3]
      %v987 = vld [vmem:[#allocation2 + $0x58] sm:$0x3]
      %v988 = vld [vmem:[#allocation2 + $0x60] sm:$0xfc]
      %v989 = vld [vmem:[#allocation2 + $0x68] sm:$0xfc]
      %v990 = vld [vmem:[#allocation2 + $0x80] sm:$0x3]
      %v991 = vld [vmem:[#allocation2 + $0x88] sm:$0x3]
      %v992 = vld [vmem:[#allocation2 + $0x90] sm:$0xfc]
      %v993 = vld [vmem:[#allocation2 + $0x98] sm:$0xfc]
      %v994 = vld [vmem:[#allocation2 + $0xb0] sm:$0x3]
      %v995 = vld [vmem:[#allocation2 + $0xb8] sm:$0x3]
      %vm1012 = vcmask 1045504
      %v1013 = vrot.slane %v980, 2
      %v1014 = vrot.slane %v466, 2
      %v1015 = vsel %vm1012, %v1013, %v1014
      %v1016 = vrot.slane %v981, 2
      %v1017 = vrot.slane %v467, 2
      %v1018 = vsel %vm1012, %v1016, %v1017
      %v1019 = vrot.slane %v982, 2
      %v1020 = vsel %vm1012, %v1014, %v1019
      %v1021 = vrot.slane %v983, 2
      %v1022 = vsel %vm1012, %v1017, %v1021
      %v1023 = vrot.slane %v984, 2
      %v1024 = vrot.slane %v470, 2
      %v1025 = vsel %vm1012, %v1023, %v1024
      %v1026 = vrot.slane %v985, 2
      %v1027 = vrot.slane %v471, 2
      %v1028 = vsel %vm1012, %v1026, %v1027
      %v1029 = vrot.slane %v986, 2
      %v1030 = vsel %vm1012, %v1024, %v1029
      %v1031 = vrot.slane %v987, 2
      %v1032 = vsel %vm1012, %v1027, %v1031
      %v1033 = vrot.slane %v988, 2
      %v1034 = vrot.slane %v474, 2
      %v1035 = vsel %vm1012, %v1033, %v1034
      %v1036 = vrot.slane %v989, 2
      %v1037 = vrot.slane %v475, 2
      %v1038 = vsel %vm1012, %v1036, %v1037
      %v1039 = vrot.slane %v990, 2
      %v1040 = vsel %vm1012, %v1034, %v1039
      %v1041 = vrot.slane %v991, 2
      %v1042 = vsel %vm1012, %v1037, %v1041
      %v1043 = vrot.slane %v992, 2
      %v1044 = vrot.slane %v478, 2
      %v1045 = vsel %vm1012, %v1043, %v1044
      %v1046 = vrot.slane %v993, 2
      %v1047 = vrot.slane %v479, 2
      %v1048 = vsel %vm1012, %v1046, %v1047
      %v1049 = vrot.slane %v994, 2
      %v1050 = vsel %vm1012, %v1044, %v1049
      %v1051 = vrot.slane %v995, 2
      %v1052 = vsel %vm1012, %v1047, %v1051
      %v1069 = vpack.c.bf16 %v1020, %v1015
      %v1070 = vpack.c.bf16 %v1022, %v1018
      %v1071 = vpack.c.bf16 %v1030, %v1025
      %v1072 = vpack.c.bf16 %v1032, %v1028
      %v1073 = vpack.c.bf16 %v1040, %v1035
      %v1074 = vpack.c.bf16 %v1042, %v1038
      %v1075 = vpack.c.bf16 %v1050, %v1045
      %v1076 = vpack.c.bf16 %v1052, %v1048
      %s1077 = scalar_lea.vmem %s1, 256
      %v1078 = vld [vmem:[%s1077] sm:$0xf]
      %v1079 = vld [vmem:[%s1077 + $0x4] sm:$0xf]
      %v1080 = vld [vmem:[%s1077 + $0x8] sm:$0xf]
      %v1081 = vld [vmem:[%s1077 + $0xc] sm:$0xf]
      %v1082 = vld [vmem:[%s1077 + $0x10] sm:$0xf]
      %v1083 = vld [vmem:[%s1077 + $0x14] sm:$0xf]
      %v1084 = vld [vmem:[%s1077 + $0x18] sm:$0xf]
      %v1085 = vld [vmem:[%s1077 + $0x1c] sm:$0xf]
      %v1086 = vld [vmem:[%s1077 + $0x20] sm:$0xf]
      %v1087 = vld [vmem:[%s1077 + $0x24] sm:$0xf]
      %v1088 = vld [vmem:[%s1077 + $0x28] sm:$0xf]
      %v1089 = vld [vmem:[%s1077 + $0x2c] sm:$0xf]
      %v1090 = vld [vmem:[%s1077 + $0x30] sm:$0xf]
      %v1091 = vld [vmem:[%s1077 + $0x34] sm:$0xf]
      %v1092 = vld [vmem:[%s1077 + $0x38] sm:$0xf]
      %v1093 = vld [vmem:[%s1077 + $0x3c] sm:$0xf]
      %v1094 = vld [vmem:[%s1077 + $0x40] sm:$0xf]
      %v1095 = vld [vmem:[%s1077 + $0x44] sm:$0xf]
      %v1096 = vld [vmem:[%s1077 + $0x48] sm:$0xf]
      %v1097 = vld [vmem:[%s1077 + $0x4c] sm:$0xf]
      %v1098 = vld [vmem:[%s1077 + $0x50] sm:$0xf]
      %v1099 = vld [vmem:[%s1077 + $0x54] sm:$0xf]
      %v1100 = vld [vmem:[%s1077 + $0x58] sm:$0xf]
      %v1101 = vld [vmem:[%s1077 + $0x5c] sm:$0xf]
      %v1102 = vld [vmem:[%s1077 + $0x60] sm:$0xf]
      %v1103 = vld [vmem:[%s1077 + $0x64] sm:$0xf]
      %v1104 = vld [vmem:[%s1077 + $0x68] sm:$0xf]
      %v1105 = vld [vmem:[%s1077 + $0x6c] sm:$0xf]
      %v1106 = vld [vmem:[%s1077 + $0x70] sm:$0xf]
      %v1107 = vld [vmem:[%s1077 + $0x74] sm:$0xf]
      %v1108 = vld [vmem:[%s1077 + $0x78] sm:$0xf]
      %v1109 = vld [vmem:[%s1077 + $0x7c] sm:$0xf]
      %v1142 = vunpack.c.l.b16 %v1078
      %v1143 = vunpack.c.l.b16 %v1079
      %v1144 = vunpack.c.l.b16 %v1080
      %v1145 = vunpack.c.l.b16 %v1081
      %v1146 = vunpack.c.l.b16 %v1082
      %v1147 = vunpack.c.l.b16 %v1083
      %v1148 = vunpack.c.l.b16 %v1084
      %v1149 = vunpack.c.l.b16 %v1085
      %v1150 = vunpack.c.l.b16 %v1086
      %v1151 = vunpack.c.l.b16 %v1087
      %v1152 = vunpack.c.l.b16 %v1088
      %v1153 = vunpack.c.l.b16 %v1089
      %v1154 = vunpack.c.l.b16 %v1090
      %v1155 = vunpack.c.l.b16 %v1091
      %v1156 = vunpack.c.l.b16 %v1092
      %v1157 = vunpack.c.l.b16 %v1093
      %v1158 = vunpack.c.l.b16 %v1094
      %v1159 = vunpack.c.l.b16 %v1095
      %v1160 = vunpack.c.l.b16 %v1096
      %v1161 = vunpack.c.l.b16 %v1097
      %v1162 = vunpack.c.l.b16 %v1098
      %v1163 = vunpack.c.l.b16 %v1099
      %v1164 = vunpack.c.l.b16 %v1100
      %v1165 = vunpack.c.l.b16 %v1101
      %v1166 = vunpack.c.l.b16 %v1102
      %v1167 = vunpack.c.l.b16 %v1103
      %v1168 = vunpack.c.l.b16 %v1104
      %v1169 = vunpack.c.l.b16 %v1105
      %v1170 = vunpack.c.l.b16 %v1106
      %v1171 = vunpack.c.l.b16 %v1107
      %v1172 = vunpack.c.l.b16 %v1108
      %v1173 = vunpack.c.l.b16 %v1109
      %v1174 = vpack.c.b16 %v1143, %v1142
      %v1175 = vpack.c.b16 %v1145, %v1144
      %v1176 = vpack.c.b16 %v1147, %v1146
      %v1177 = vpack.c.b16 %v1149, %v1148
      %v1178 = vpack.c.b16 %v1151, %v1150
      %v1179 = vpack.c.b16 %v1153, %v1152
      %v1180 = vpack.c.b16 %v1155, %v1154
      %v1181 = vpack.c.b16 %v1157, %v1156
      %v1182 = vpack.c.b16 %v1159, %v1158
      %v1183 = vpack.c.b16 %v1161, %v1160
      %v1184 = vpack.c.b16 %v1163, %v1162
      %v1185 = vpack.c.b16 %v1165, %v1164
      %v1186 = vpack.c.b16 %v1167, %v1166
      %v1187 = vpack.c.b16 %v1169, %v1168
      %v1188 = vpack.c.b16 %v1171, %v1170
      %v1189 = vpack.c.b16 %v1173, %v1172
      %1206 = vmatprep.subr.bf16.mxu0 0
      %1207 = vmatpush1.bf16.msra.mxu0 %v1181
      %1208 = vmatprep.subr.bf16.mxu0 0
      %1209 = vmatpush1.bf16.msra.mxu0 %v1180
      %1210 = vmatprep.subr.bf16.mxu0 0
      %1211 = vmatpush1.bf16.msra.mxu0 %v1179
      %1212 = vmatprep.subr.bf16.mxu0 0
      %1213 = vmatpush1.bf16.msra.mxu0 %v1178
      %1214 = vmatprep.subr.bf16.mxu0 0
      %1215 = vmatpush1.bf16.msra.mxu0 %v1177
      %1216 = vmatprep.subr.bf16.mxu0 0
      %1217 = vmatpush1.bf16.msra.mxu0 %v1176
      %1218 = vmatprep.subr.bf16.mxu0 0
      %1219 = vmatpush1.bf16.msra.mxu0 %v1175
      %1220 = vmatprep.subr.bf16.mxu0 0
      %1221 = vmatpush1.bf16.msra.mxu0 %v1174
      %1222 = vmatprep.subr.bf16.mxu0 0
      %1223 = vmatpush2.bf16.msra.mxu0 %v1189
      %1224 = vmatprep.subr.bf16.mxu0 0
      %1225 = vmatpush2.bf16.msra.mxu0 %v1188
      %1226 = vmatprep.subr.bf16.mxu0 0
      %1227 = vmatpush2.bf16.msra.mxu0 %v1187
      %1228 = vmatprep.subr.bf16.mxu0 0
      %1229 = vmatpush2.bf16.msra.mxu0 %v1186
      %1230 = vmatprep.subr.bf16.mxu0 0
      %1231 = vmatpush2.bf16.msra.mxu0 %v1185
      %1232 = vmatprep.subr.bf16.mxu0 0
      %1233 = vmatpush2.bf16.msra.mxu0 %v1184
      %1234 = vmatprep.subr.bf16.mxu0 0
      %1235 = vmatpush2.bf16.msra.mxu0 %v1183
      %1236 = vmatprep.subr.bf16.mxu0 0
      %1237 = vmatpush2.bf16.msra.mxu0 %v1182
      %1238 = vmatprep.mubr.bf16.mxu0 %v1070
      %1239 = vmatmul.mubr.bf16.gmra.mxu0 %v1069
      %v1240 = vpop.f32.mrf.mxu0
      %v1241 = vadd.f32 0.0, %v1240
      %v1242 = vpop.f32.mrf.mxu0
      %v1243 = vpop.f32.mrf.mxu0
      %v1244 = vadd.f32 0.0, %v1243
      %v1245 = vpop.f32.mrf.mxu0
      %1246 = vmatprep.mubr.bf16.mxu0 %v1072
      %1247 = vmatmul.mubr.bf16.gmra.mxu0 %v1071
      %v1248 = vpop.f32.mrf.mxu0
      %v1249 = vadd.f32 0.0, %v1248
      %v1250 = vpop.f32.mrf.mxu0
      %v1251 = vpop.f32.mrf.mxu0
      %v1252 = vadd.f32 0.0, %v1251
      %v1253 = vpop.f32.mrf.mxu0
      %1254 = vmatprep.mubr.bf16.mxu0 %v1074
      %1255 = vmatmul.mubr.bf16.gmra.mxu0 %v1073
      %v1256 = vpop.f32.mrf.mxu0
      %v1257 = vadd.f32 0.0, %v1256
      %v1258 = vpop.f32.mrf.mxu0
      %v1259 = vpop.f32.mrf.mxu0
      %v1260 = vadd.f32 0.0, %v1259
      %v1261 = vpop.f32.mrf.mxu0
      %1262 = vmatprep.mubr.bf16.mxu0 %v1076
      %1263 = vmatmul.mubr.bf16.gmra.mxu0 %v1075
      %v1264 = vpop.f32.mrf.mxu0
      %v1265 = vadd.f32 0.0, %v1264
      %v1266 = vpop.f32.mrf.mxu0
      %v1267 = vpop.f32.mrf.mxu0
      %v1268 = vadd.f32 0.0, %v1267
      %v1269 = vpop.f32.mrf.mxu0
      %1270 = vdwg.mxu0
      %v1271 = vadd.f32 %v950, %v1241
      %v1272 = vadd.f32 %v953, %v1244
      %v1273 = vadd.f32 %v958, %v1249
      %v1274 = vadd.f32 %v961, %v1252
      %v1275 = vadd.f32 %v966, %v1257
      %v1276 = vadd.f32 %v969, %v1260
      %v1277 = vadd.f32 %v974, %v1265
      %v1278 = vadd.f32 %v977, %v1268
      %v1279 = vld [vmem:[%s369] sm:$0xff]
      %v1280 = vld [vmem:[%s369 + $0x8] sm:$0xff]
      %v1281 = vld [vmem:[%s369 + $0x10] sm:$0xff]
      %v1282 = vld [vmem:[%s369 + $0x18] sm:$0xff]
      %v1283 = vld [vmem:[%s369 + $0x30] sm:$0xff]
      %v1284 = vld [vmem:[%s369 + $0x38] sm:$0xff]
      %v1285 = vld [vmem:[%s369 + $0x40] sm:$0xff]
      %v1286 = vld [vmem:[%s369 + $0x48] sm:$0xff]
      %v1287 = vld [vmem:[%s369 + $0x60] sm:$0xff]
      %v1288 = vld [vmem:[%s369 + $0x68] sm:$0xff]
      %v1289 = vld [vmem:[%s369 + $0x70] sm:$0xff]
      %v1290 = vld [vmem:[%s369 + $0x78] sm:$0xff]
      %v1291 = vld [vmem:[%s369 + $0x90] sm:$0xff]
      %v1292 = vld [vmem:[%s369 + $0x98] sm:$0xff]
      %v1293 = vld [vmem:[%s369 + $0xa0] sm:$0xff]
      %v1294 = vld [vmem:[%s369 + $0xa8] sm:$0xff]
      %v1295 = vpack.c.bf16 %v1281, %v1279
      %v1296 = vpack.c.bf16 %v1282, %v1280
      %v1297 = vpack.c.bf16 %v1285, %v1283
      %v1298 = vpack.c.bf16 %v1286, %v1284
      %v1299 = vpack.c.bf16 %v1289, %v1287
      %v1300 = vpack.c.bf16 %v1290, %v1288
      %v1301 = vpack.c.bf16 %v1293, %v1291
      %v1302 = vpack.c.bf16 %v1294, %v1292
      %s1303 = scalar_lea.vmem %s1, 384
      %v1304 = vld [vmem:[%s1303] sm:$0xf]
      %v1305 = vld [vmem:[%s1303 + $0x4] sm:$0xf]
      %v1306 = vld [vmem:[%s1303 + $0x8] sm:$0xf]
      %v1307 = vld [vmem:[%s1303 + $0xc] sm:$0xf]
      %v1308 = vld [vmem:[%s1303 + $0x10] sm:$0xf]
      %v1309 = vld [vmem:[%s1303 + $0x14] sm:$0xf]
      %v1310 = vld [vmem:[%s1303 + $0x18] sm:$0xf]
      %v1311 = vld [vmem:[%s1303 + $0x1c] sm:$0xf]
      %v1312 = vld [vmem:[%s1303 + $0x20] sm:$0xf]
      %v1313 = vld [vmem:[%s1303 + $0x24] sm:$0xf]
      %v1314 = vld [vmem:[%s1303 + $0x28] sm:$0xf]
      %v1315 = vld [vmem:[%s1303 + $0x2c] sm:$0xf]
      %v1316 = vld [vmem:[%s1303 + $0x30] sm:$0xf]
      %v1317 = vld [vmem:[%s1303 + $0x34] sm:$0xf]
      %v1318 = vld [vmem:[%s1303 + $0x38] sm:$0xf]
      %v1319 = vld [vmem:[%s1303 + $0x3c] sm:$0xf]
      %v1320 = vld [vmem:[%s1303 + $0x40] sm:$0xf]
      %v1321 = vld [vmem:[%s1303 + $0x44] sm:$0xf]
      %v1322 = vld [vmem:[%s1303 + $0x48] sm:$0xf]
      %v1323 = vld [vmem:[%s1303 + $0x4c] sm:$0xf]
      %v1324 = vld [vmem:[%s1303 + $0x50] sm:$0xf]
      %v1325 = vld [vmem:[%s1303 + $0x54] sm:$0xf]
      %v1326 = vld [vmem:[%s1303 + $0x58] sm:$0xf]
      %v1327 = vld [vmem:[%s1303 + $0x5c] sm:$0xf]
      %v1328 = vld [vmem:[%s1303 + $0x60] sm:$0xf]
      %v1329 = vld [vmem:[%s1303 + $0x64] sm:$0xf]
      %v1330 = vld [vmem:[%s1303 + $0x68] sm:$0xf]
      %v1331 = vld [vmem:[%s1303 + $0x6c] sm:$0xf]
      %v1332 = vld [vmem:[%s1303 + $0x70] sm:$0xf]
      %v1333 = vld [vmem:[%s1303 + $0x74] sm:$0xf]
      %v1334 = vld [vmem:[%s1303 + $0x78] sm:$0xf]
      %v1335 = vld [vmem:[%s1303 + $0x7c] sm:$0xf]
      %v1368 = vunpack.c.l.b16 %v1304
      %v1369 = vunpack.c.l.b16 %v1305
      %v1370 = vunpack.c.l.b16 %v1306
      %v1371 = vunpack.c.l.b16 %v1307
      %v1372 = vunpack.c.l.b16 %v1308
      %v1373 = vunpack.c.l.b16 %v1309
      %v1374 = vunpack.c.l.b16 %v1310
      %v1375 = vunpack.c.l.b16 %v1311
      %v1376 = vunpack.c.l.b16 %v1312
      %v1377 = vunpack.c.l.b16 %v1313
      %v1378 = vunpack.c.l.b16 %v1314
      %v1379 = vunpack.c.l.b16 %v1315
      %v1380 = vunpack.c.l.b16 %v1316
      %v1381 = vunpack.c.l.b16 %v1317
      %v1382 = vunpack.c.l.b16 %v1318
      %v1383 = vunpack.c.l.b16 %v1319
      %v1384 = vunpack.c.l.b16 %v1320
      %v1385 = vunpack.c.l.b16 %v1321
      %v1386 = vunpack.c.l.b16 %v1322
      %v1387 = vunpack.c.l.b16 %v1323
      %v1388 = vunpack.c.l.b16 %v1324
      %v1389 = vunpack.c.l.b16 %v1325
      %v1390 = vunpack.c.l.b16 %v1326
      %v1391 = vunpack.c.l.b16 %v1327
      %v1392 = vunpack.c.l.b16 %v1328
      %v1393 = vunpack.c.l.b16 %v1329
      %v1394 = vunpack.c.l.b16 %v1330
      %v1395 = vunpack.c.l.b16 %v1331
      %v1396 = vunpack.c.l.b16 %v1332
      %v1397 = vunpack.c.l.b16 %v1333
      %v1398 = vunpack.c.l.b16 %v1334
      %v1399 = vunpack.c.l.b16 %v1335
      %v1400 = vpack.c.b16 %v1369, %v1368
      %v1401 = vpack.c.b16 %v1371, %v1370
      %v1402 = vpack.c.b16 %v1373, %v1372
      %v1403 = vpack.c.b16 %v1375, %v1374
      %v1404 = vpack.c.b16 %v1377, %v1376
      %v1405 = vpack.c.b16 %v1379, %v1378
      %v1406 = vpack.c.b16 %v1381, %v1380
      %v1407 = vpack.c.b16 %v1383, %v1382
      %v1408 = vpack.c.b16 %v1385, %v1384
      %v1409 = vpack.c.b16 %v1387, %v1386
      %v1410 = vpack.c.b16 %v1389, %v1388
      %v1411 = vpack.c.b16 %v1391, %v1390
      %v1412 = vpack.c.b16 %v1393, %v1392
      %v1413 = vpack.c.b16 %v1395, %v1394
      %v1414 = vpack.c.b16 %v1397, %v1396
      %v1415 = vpack.c.b16 %v1399, %v1398
      %1432 = vmatprep.subr.bf16.mxu0 0
      %1433 = vmatpush1.bf16.msra.mxu0 %v1407
      %1434 = vmatprep.subr.bf16.mxu0 0
      %1435 = vmatpush1.bf16.msra.mxu0 %v1406
      %1436 = vmatprep.subr.bf16.mxu0 0
      %1437 = vmatpush1.bf16.msra.mxu0 %v1405
      %1438 = vmatprep.subr.bf16.mxu0 0
      %1439 = vmatpush1.bf16.msra.mxu0 %v1404
      %1440 = vmatprep.subr.bf16.mxu0 0
      %1441 = vmatpush1.bf16.msra.mxu0 %v1403
      %1442 = vmatprep.subr.bf16.mxu0 0
      %1443 = vmatpush1.bf16.msra.mxu0 %v1402
      %1444 = vmatprep.subr.bf16.mxu0 0
      %1445 = vmatpush1.bf16.msra.mxu0 %v1401
      %1446 = vmatprep.subr.bf16.mxu0 0
      %1447 = vmatpush1.bf16.msra.mxu0 %v1400
      %1448 = vmatprep.subr.bf16.mxu0 0
      %1449 = vmatpush2.bf16.msra.mxu0 %v1415
      %1450 = vmatprep.subr.bf16.mxu0 0
      %1451 = vmatpush2.bf16.msra.mxu0 %v1414
      %1452 = vmatprep.subr.bf16.mxu0 0
      %1453 = vmatpush2.bf16.msra.mxu0 %v1413
      %1454 = vmatprep.subr.bf16.mxu0 0
      %1455 = vmatpush2.bf16.msra.mxu0 %v1412
      %1456 = vmatprep.subr.bf16.mxu0 0
      %1457 = vmatpush2.bf16.msra.mxu0 %v1411
      %1458 = vmatprep.subr.bf16.mxu0 0
      %1459 = vmatpush2.bf16.msra.mxu0 %v1410
      %1460 = vmatprep.subr.bf16.mxu0 0
      %1461 = vmatpush2.bf16.msra.mxu0 %v1409
      %1462 = vmatprep.subr.bf16.mxu0 0
      %1463 = vmatpush2.bf16.msra.mxu0 %v1408
      %1464 = vmatprep.mubr.bf16.mxu0 %v1296
      %1465 = vmatmul.mubr.bf16.gmra.mxu0 %v1295
      %v1466 = vpop.f32.mrf.mxu0
      %v1467 = vadd.f32 0.0, %v1466
      %v1468 = vpop.f32.mrf.mxu0
      %v1469 = vpop.f32.mrf.mxu0
      %v1470 = vadd.f32 0.0, %v1469
      %v1471 = vpop.f32.mrf.mxu0
      %1472 = vmatprep.mubr.bf16.mxu0 %v1298
      %1473 = vmatmul.mubr.bf16.gmra.mxu0 %v1297
      %v1474 = vpop.f32.mrf.mxu0
      %v1475 = vadd.f32 0.0, %v1474
      %v1476 = vpop.f32.mrf.mxu0
      %v1477 = vpop.f32.mrf.mxu0
      %v1478 = vadd.f32 0.0, %v1477
      %v1479 = vpop.f32.mrf.mxu0
      %1480 = vmatprep.mubr.bf16.mxu0 %v1300
      %1481 = vmatmul.mubr.bf16.gmra.mxu0 %v1299
      %v1482 = vpop.f32.mrf.mxu0
      %v1483 = vadd.f32 0.0, %v1482
      %v1484 = vpop.f32.mrf.mxu0
      %v1485 = vpop.f32.mrf.mxu0
      %v1486 = vadd.f32 0.0, %v1485
      %v1487 = vpop.f32.mrf.mxu0
      %1488 = vmatprep.mubr.bf16.mxu0 %v1302
      %1489 = vmatmul.mubr.bf16.gmra.mxu0 %v1301
      %v1490 = vpop.f32.mrf.mxu0
      %v1491 = vadd.f32 0.0, %v1490
      %v1492 = vpop.f32.mrf.mxu0
      %v1493 = vpop.f32.mrf.mxu0
      %v1494 = vadd.f32 0.0, %v1493
      %v1495 = vpop.f32.mrf.mxu0
      %1496 = vdwg.mxu0
      %v1497 = vadd.f32 %v1271, %v1467
      %v1498 = vadd.f32 %v1272, %v1470
      %v1499 = vadd.f32 %v1273, %v1475
      %v1500 = vadd.f32 %v1274, %v1478
      %v1501 = vadd.f32 %v1275, %v1483
      %v1502 = vadd.f32 %v1276, %v1486
      %v1503 = vadd.f32 %v1277, %v1491
      %v1504 = vadd.f32 %v1278, %v1494
      %v1505 = vld [vmem:[%s369] sm:$0xfe]
      %v1506 = vld [vmem:[%s369 + $0x8] sm:$0xfe]
      %v1507 = vld [vmem:[%s369 + $0x10] sm:$0xff]
      %v1508 = vld [vmem:[%s369 + $0x18] sm:$0xff]
      %v1509 = vld [vmem:[%s369 + $0x20] sm:$0x1]
      %v1510 = vld [vmem:[%s369 + $0x28] sm:$0x1]
      %v1511 = vld [vmem:[%s369 + $0x30] sm:$0xfe]
      %v1512 = vld [vmem:[%s369 + $0x38] sm:$0xfe]
      %v1513 = vld [vmem:[%s369 + $0x40] sm:$0xff]
      %v1514 = vld [vmem:[%s369 + $0x48] sm:$0xff]
      %v1515 = vld [vmem:[%s369 + $0x50] sm:$0x1]
      %v1516 = vld [vmem:[%s369 + $0x58] sm:$0x1]
      %v1517 = vld [vmem:[%s369 + $0x60] sm:$0xfe]
      %v1518 = vld [vmem:[%s369 + $0x68] sm:$0xfe]
      %v1519 = vld [vmem:[%s369 + $0x70] sm:$0xff]
      %v1520 = vld [vmem:[%s369 + $0x78] sm:$0xff]
      %v1521 = vld [vmem:[%s369 + $0x80] sm:$0x1]
      %v1522 = vld [vmem:[%s369 + $0x88] sm:$0x1]
      %v1523 = vld [vmem:[%s369 + $0x90] sm:$0xfe]
      %v1524 = vld [vmem:[%s369 + $0x98] sm:$0xfe]
      %v1525 = vld [vmem:[%s369 + $0xa0] sm:$0xff]
      %v1526 = vld [vmem:[%s369 + $0xa8] sm:$0xff]
      %v1527 = vld [vmem:[%s369 + $0xb0] sm:$0x1]
      %v1528 = vld [vmem:[%s369 + $0xb8] sm:$0x1]
      %v1553 = vrot.slane %v1505, 1
      %v1554 = vrot.slane %v1507, 1
      %v1555 = vsel %vm560, %v1553, %v1554
      %v1556 = vrot.slane %v1506, 1
      %v1557 = vrot.slane %v1508, 1
      %v1558 = vsel %vm560, %v1556, %v1557
      %v1559 = vrot.slane %v1509, 1
      %v1560 = vsel %vm560, %v1554, %v1559
      %v1561 = vrot.slane %v1510, 1
      %v1562 = vsel %vm560, %v1557, %v1561
      %v1563 = vrot.slane %v1511, 1
      %v1564 = vrot.slane %v1513, 1
      %v1565 = vsel %vm560, %v1563, %v1564
      %v1566 = vrot.slane %v1512, 1
      %v1567 = vrot.slane %v1514, 1
      %v1568 = vsel %vm560, %v1566, %v1567
      %v1569 = vrot.slane %v1515, 1
      %v1570 = vsel %vm560, %v1564, %v1569
      %v1571 = vrot.slane %v1516, 1
      %v1572 = vsel %vm560, %v1567, %v1571
      %v1573 = vrot.slane %v1517, 1
      %v1574 = vrot.slane %v1519, 1
      %v1575 = vsel %vm560, %v1573, %v1574
      %v1576 = vrot.slane %v1518, 1
      %v1577 = vrot.slane %v1520, 1
      %v1578 = vsel %vm560, %v1576, %v1577
      %v1579 = vrot.slane %v1521, 1
      %v1580 = vsel %vm560, %v1574, %v1579
      %v1581 = vrot.slane %v1522, 1
      %v1582 = vsel %vm560, %v1577, %v1581
      %v1583 = vrot.slane %v1523, 1
      %v1584 = vrot.slane %v1525, 1
      %v1585 = vsel %vm560, %v1583, %v1584
      %v1586 = vrot.slane %v1524, 1
      %v1587 = vrot.slane %v1526, 1
      %v1588 = vsel %vm560, %v1586, %v1587
      %v1589 = vrot.slane %v1527, 1
      %v1590 = vsel %vm560, %v1584, %v1589
      %v1591 = vrot.slane %v1528, 1
      %v1592 = vsel %vm560, %v1587, %v1591
      %v1609 = vpack.c.bf16 %v1560, %v1555
      %v1610 = vpack.c.bf16 %v1562, %v1558
      %v1611 = vpack.c.bf16 %v1570, %v1565
      %v1612 = vpack.c.bf16 %v1572, %v1568
      %v1613 = vpack.c.bf16 %v1580, %v1575
      %v1614 = vpack.c.bf16 %v1582, %v1578
      %v1615 = vpack.c.bf16 %v1590, %v1585
      %v1616 = vpack.c.bf16 %v1592, %v1588
      %s1617 = scalar_lea.vmem %s1, 512
      %v1618 = vld [vmem:[%s1617] sm:$0xf]
      %v1619 = vld [vmem:[%s1617 + $0x4] sm:$0xf]
      %v1620 = vld [vmem:[%s1617 + $0x8] sm:$0xf]
      %v1621 = vld [vmem:[%s1617 + $0xc] sm:$0xf]
      %v1622 = vld [vmem:[%s1617 + $0x10] sm:$0xf]
      %v1623 = vld [vmem:[%s1617 + $0x14] sm:$0xf]
      %v1624 = vld [vmem:[%s1617 + $0x18] sm:$0xf]
      %v1625 = vld [vmem:[%s1617 + $0x1c] sm:$0xf]
      %v1626 = vld [vmem:[%s1617 + $0x20] sm:$0xf]
      %v1627 = vld [vmem:[%s1617 + $0x24] sm:$0xf]
      %v1628 = vld [vmem:[%s1617 + $0x28] sm:$0xf]
      %v1629 = vld [vmem:[%s1617 + $0x2c] sm:$0xf]
      %v1630 = vld [vmem:[%s1617 + $0x30] sm:$0xf]
      %v1631 = vld [vmem:[%s1617 + $0x34] sm:$0xf]
      %v1632 = vld [vmem:[%s1617 + $0x38] sm:$0xf]
      %v1633 = vld [vmem:[%s1617 + $0x3c] sm:$0xf]
      %v1634 = vld [vmem:[%s1617 + $0x40] sm:$0xf]
      %v1635 = vld [vmem:[%s1617 + $0x44] sm:$0xf]
      %v1636 = vld [vmem:[%s1617 + $0x48] sm:$0xf]
      %v1637 = vld [vmem:[%s1617 + $0x4c] sm:$0xf]
      %v1638 = vld [vmem:[%s1617 + $0x50] sm:$0xf]
      %v1639 = vld [vmem:[%s1617 + $0x54] sm:$0xf]
      %v1640 = vld [vmem:[%s1617 + $0x58] sm:$0xf]
      %v1641 = vld [vmem:[%s1617 + $0x5c] sm:$0xf]
      %v1642 = vld [vmem:[%s1617 + $0x60] sm:$0xf]
      %v1643 = vld [vmem:[%s1617 + $0x64] sm:$0xf]
      %v1644 = vld [vmem:[%s1617 + $0x68] sm:$0xf]
      %v1645 = vld [vmem:[%s1617 + $0x6c] sm:$0xf]
      %v1646 = vld [vmem:[%s1617 + $0x70] sm:$0xf]
      %v1647 = vld [vmem:[%s1617 + $0x74] sm:$0xf]
      %v1648 = vld [vmem:[%s1617 + $0x78] sm:$0xf]
      %v1649 = vld [vmem:[%s1617 + $0x7c] sm:$0xf]
      %v1682 = vunpack.c.l.b16 %v1618
      %v1683 = vunpack.c.l.b16 %v1619
      %v1684 = vunpack.c.l.b16 %v1620
      %v1685 = vunpack.c.l.b16 %v1621
      %v1686 = vunpack.c.l.b16 %v1622
      %v1687 = vunpack.c.l.b16 %v1623
      %v1688 = vunpack.c.l.b16 %v1624
      %v1689 = vunpack.c.l.b16 %v1625
      %v1690 = vunpack.c.l.b16 %v1626
      %v1691 = vunpack.c.l.b16 %v1627
      %v1692 = vunpack.c.l.b16 %v1628
      %v1693 = vunpack.c.l.b16 %v1629
      %v1694 = vunpack.c.l.b16 %v1630
      %v1695 = vunpack.c.l.b16 %v1631
      %v1696 = vunpack.c.l.b16 %v1632
      %v1697 = vunpack.c.l.b16 %v1633
      %v1698 = vunpack.c.l.b16 %v1634
      %v1699 = vunpack.c.l.b16 %v1635
      %v1700 = vunpack.c.l.b16 %v1636
      %v1701 = vunpack.c.l.b16 %v1637
      %v1702 = vunpack.c.l.b16 %v1638
      %v1703 = vunpack.c.l.b16 %v1639
      %v1704 = vunpack.c.l.b16 %v1640
      %v1705 = vunpack.c.l.b16 %v1641
      %v1706 = vunpack.c.l.b16 %v1642
      %v1707 = vunpack.c.l.b16 %v1643
      %v1708 = vunpack.c.l.b16 %v1644
      %v1709 = vunpack.c.l.b16 %v1645
      %v1710 = vunpack.c.l.b16 %v1646
      %v1711 = vunpack.c.l.b16 %v1647
      %v1712 = vunpack.c.l.b16 %v1648
      %v1713 = vunpack.c.l.b16 %v1649
      %v1714 = vpack.c.b16 %v1683, %v1682
      %v1715 = vpack.c.b16 %v1685, %v1684
      %v1716 = vpack.c.b16 %v1687, %v1686
      %v1717 = vpack.c.b16 %v1689, %v1688
      %v1718 = vpack.c.b16 %v1691, %v1690
      %v1719 = vpack.c.b16 %v1693, %v1692
      %v1720 = vpack.c.b16 %v1695, %v1694
      %v1721 = vpack.c.b16 %v1697, %v1696
      %v1722 = vpack.c.b16 %v1699, %v1698
      %v1723 = vpack.c.b16 %v1701, %v1700
      %v1724 = vpack.c.b16 %v1703, %v1702
      %v1725 = vpack.c.b16 %v1705, %v1704
      %v1726 = vpack.c.b16 %v1707, %v1706
      %v1727 = vpack.c.b16 %v1709, %v1708
      %v1728 = vpack.c.b16 %v1711, %v1710
      %v1729 = vpack.c.b16 %v1713, %v1712
      %1746 = vmatprep.subr.bf16.mxu0 0
      %1747 = vmatpush1.bf16.msra.mxu0 %v1721
      %1748 = vmatprep.subr.bf16.mxu0 0
      %1749 = vmatpush1.bf16.msra.mxu0 %v1720
      %1750 = vmatprep.subr.bf16.mxu0 0
      %1751 = vmatpush1.bf16.msra.mxu0 %v1719
      %1752 = vmatprep.subr.bf16.mxu0 0
      %1753 = vmatpush1.bf16.msra.mxu0 %v1718
      %1754 = vmatprep.subr.bf16.mxu0 0
      %1755 = vmatpush1.bf16.msra.mxu0 %v1717
      %1756 = vmatprep.subr.bf16.mxu0 0
      %1757 = vmatpush1.bf16.msra.mxu0 %v1716
      %1758 = vmatprep.subr.bf16.mxu0 0
      %1759 = vmatpush1.bf16.msra.mxu0 %v1715
      %1760 = vmatprep.subr.bf16.mxu0 0
      %1761 = vmatpush1.bf16.msra.mxu0 %v1714
      %1762 = vmatprep.subr.bf16.mxu0 0
      %1763 = vmatpush2.bf16.msra.mxu0 %v1729
      %1764 = vmatprep.subr.bf16.mxu0 0
      %1765 = vmatpush2.bf16.msra.mxu0 %v1728
      %1766 = vmatprep.subr.bf16.mxu0 0
      %1767 = vmatpush2.bf16.msra.mxu0 %v1727
      %1768 = vmatprep.subr.bf16.mxu0 0
      %1769 = vmatpush2.bf16.msra.mxu0 %v1726
      %1770 = vmatprep.subr.bf16.mxu0 0
      %1771 = vmatpush2.bf16.msra.mxu0 %v1725
      %1772 = vmatprep.subr.bf16.mxu0 0
      %1773 = vmatpush2.bf16.msra.mxu0 %v1724
      %1774 = vmatprep.subr.bf16.mxu0 0
      %1775 = vmatpush2.bf16.msra.mxu0 %v1723
      %1776 = vmatprep.subr.bf16.mxu0 0
      %1777 = vmatpush2.bf16.msra.mxu0 %v1722
      %1778 = vmatprep.mubr.bf16.mxu0 %v1610
      %1779 = vmatmul.mubr.bf16.gmra.mxu0 %v1609
      %v1780 = vpop.f32.mrf.mxu0
      %v1781 = vadd.f32 0.0, %v1780
      %v1782 = vpop.f32.mrf.mxu0
      %v1783 = vpop.f32.mrf.mxu0
      %v1784 = vadd.f32 0.0, %v1783
      %v1785 = vpop.f32.mrf.mxu0
      %1786 = vmatprep.mubr.bf16.mxu0 %v1612
      %1787 = vmatmul.mubr.bf16.gmra.mxu0 %v1611
      %v1788 = vpop.f32.mrf.mxu0
      %v1789 = vadd.f32 0.0, %v1788
      %v1790 = vpop.f32.mrf.mxu0
      %v1791 = vpop.f32.mrf.mxu0
      %v1792 = vadd.f32 0.0, %v1791
      %v1793 = vpop.f32.mrf.mxu0
      %1794 = vmatprep.mubr.bf16.mxu0 %v1614
      %1795 = vmatmul.mubr.bf16.gmra.mxu0 %v1613
      %v1796 = vpop.f32.mrf.mxu0
      %v1797 = vadd.f32 0.0, %v1796
      %v1798 = vpop.f32.mrf.mxu0
      %v1799 = vpop.f32.mrf.mxu0
      %v1800 = vadd.f32 0.0, %v1799
      %v1801 = vpop.f32.mrf.mxu0
      %1802 = vmatprep.mubr.bf16.mxu0 %v1616
      %1803 = vmatmul.mubr.bf16.gmra.mxu0 %v1615
      %v1804 = vpop.f32.mrf.mxu0
      %v1805 = vadd.f32 0.0, %v1804
      %v1806 = vpop.f32.mrf.mxu0
      %v1807 = vpop.f32.mrf.mxu0
      %v1808 = vadd.f32 0.0, %v1807
      %v1809 = vpop.f32.mrf.mxu0
      %1810 = vdwg.mxu0
      %v1811 = vadd.f32 %v1497, %v1781
      %v1812 = vadd.f32 %v1498, %v1784
      %v1813 = vadd.f32 %v1499, %v1789
      %v1814 = vadd.f32 %v1500, %v1792
      %v1815 = vadd.f32 %v1501, %v1797
      %v1816 = vadd.f32 %v1502, %v1800
      %v1817 = vadd.f32 %v1503, %v1805
      %v1818 = vadd.f32 %v1504, %v1808
      %v1819 = vld [vmem:[%s369] sm:$0xfc]
      %v1820 = vld [vmem:[%s369 + $0x8] sm:$0xfc]
      %v1821 = vld [vmem:[%s369 + $0x20] sm:$0x3]
      %v1822 = vld [vmem:[%s369 + $0x28] sm:$0x3]
      %v1823 = vld [vmem:[%s369 + $0x30] sm:$0xfc]
      %v1824 = vld [vmem:[%s369 + $0x38] sm:$0xfc]
      %v1825 = vld [vmem:[%s369 + $0x50] sm:$0x3]
      %v1826 = vld [vmem:[%s369 + $0x58] sm:$0x3]
      %v1827 = vld [vmem:[%s369 + $0x60] sm:$0xfc]
      %v1828 = vld [vmem:[%s369 + $0x68] sm:$0xfc]
      %v1829 = vld [vmem:[%s369 + $0x80] sm:$0x3]
      %v1830 = vld [vmem:[%s369 + $0x88] sm:$0x3]
      %v1831 = vld [vmem:[%s369 + $0x90] sm:$0xfc]
      %v1832 = vld [vmem:[%s369 + $0x98] sm:$0xfc]
      %v1833 = vld [vmem:[%s369 + $0xb0] sm:$0x3]
      %v1834 = vld [vmem:[%s369 + $0xb8] sm:$0x3]
      %v1851 = vrot.slane %v1819, 2
      %v1852 = vrot.slane %v1507, 2
      %v1853 = vsel %vm1012, %v1851, %v1852
      %v1854 = vrot.slane %v1820, 2
      %v1855 = vrot.slane %v1508, 2
      %v1856 = vsel %vm1012, %v1854, %v1855
      %v1857 = vrot.slane %v1821, 2
      %v1858 = vsel %vm1012, %v1852, %v1857
      %v1859 = vrot.slane %v1822, 2
      %v1860 = vsel %vm1012, %v1855, %v1859
      %v1861 = vrot.slane %v1823, 2
      %v1862 = vrot.slane %v1513, 2
      %v1863 = vsel %vm1012, %v1861, %v1862
      %v1864 = vrot.slane %v1824, 2
      %v1865 = vrot.slane %v1514, 2
      %v1866 = vsel %vm1012, %v1864, %v1865
      %v1867 = vrot.slane %v1825, 2
      %v1868 = vsel %vm1012, %v1862, %v1867
      %v1869 = vrot.slane %v1826, 2
      %v1870 = vsel %vm1012, %v1865, %v1869
      %v1871 = vrot.slane %v1827, 2
      %v1872 = vrot.slane %v1519, 2
      %v1873 = vsel %vm1012, %v1871, %v1872
      %v1874 = vrot.slane %v1828, 2
      %v1875 = vrot.slane %v1520, 2
      %v1876 = vsel %vm1012, %v1874, %v1875
      %v1877 = vrot.slane %v1829, 2
      %v1878 = vsel %vm1012, %v1872, %v1877
      %v1879 = vrot.slane %v1830, 2
      %v1880 = vsel %vm1012, %v1875, %v1879
      %v1881 = vrot.slane %v1831, 2
      %v1882 = vrot.slane %v1525, 2
      %v1883 = vsel %vm1012, %v1881, %v1882
      %v1884 = vrot.slane %v1832, 2
      %v1885 = vrot.slane %v1526, 2
      %v1886 = vsel %vm1012, %v1884, %v1885
      %v1887 = vrot.slane %v1833, 2
      %v1888 = vsel %vm1012, %v1882, %v1887
      %v1889 = vrot.slane %v1834, 2
      %v1890 = vsel %vm1012, %v1885, %v1889
      %v1907 = vpack.c.bf16 %v1858, %v1853
      %v1908 = vpack.c.bf16 %v1860, %v1856
      %v1909 = vpack.c.bf16 %v1868, %v1863
      %v1910 = vpack.c.bf16 %v1870, %v1866
      %v1911 = vpack.c.bf16 %v1878, %v1873
      %v1912 = vpack.c.bf16 %v1880, %v1876
      %v1913 = vpack.c.bf16 %v1888, %v1883
      %v1914 = vpack.c.bf16 %v1890, %v1886
      %s1915 = scalar_lea.vmem %s1, 640
      %v1916 = vld [vmem:[%s1915] sm:$0xf]
      %v1917 = vld [vmem:[%s1915 + $0x4] sm:$0xf]
      %v1918 = vld [vmem:[%s1915 + $0x8] sm:$0xf]
      %v1919 = vld [vmem:[%s1915 + $0xc] sm:$0xf]
      %v1920 = vld [vmem:[%s1915 + $0x10] sm:$0xf]
      %v1921 = vld [vmem:[%s1915 + $0x14] sm:$0xf]
      %v1922 = vld [vmem:[%s1915 + $0x18] sm:$0xf]
      %v1923 = vld [vmem:[%s1915 + $0x1c] sm:$0xf]
      %v1924 = vld [vmem:[%s1915 + $0x20] sm:$0xf]
      %v1925 = vld [vmem:[%s1915 + $0x24] sm:$0xf]
      %v1926 = vld [vmem:[%s1915 + $0x28] sm:$0xf]
      %v1927 = vld [vmem:[%s1915 + $0x2c] sm:$0xf]
      %v1928 = vld [vmem:[%s1915 + $0x30] sm:$0xf]
      %v1929 = vld [vmem:[%s1915 + $0x34] sm:$0xf]
      %v1930 = vld [vmem:[%s1915 + $0x38] sm:$0xf]
      %v1931 = vld [vmem:[%s1915 + $0x3c] sm:$0xf]
      %v1932 = vld [vmem:[%s1915 + $0x40] sm:$0xf]
      %v1933 = vld [vmem:[%s1915 + $0x44] sm:$0xf]
      %v1934 = vld [vmem:[%s1915 + $0x48] sm:$0xf]
      %v1935 = vld [vmem:[%s1915 + $0x4c] sm:$0xf]
      %v1936 = vld [vmem:[%s1915 + $0x50] sm:$0xf]
      %v1937 = vld [vmem:[%s1915 + $0x54] sm:$0xf]
      %v1938 = vld [vmem:[%s1915 + $0x58] sm:$0xf]
      %v1939 = vld [vmem:[%s1915 + $0x5c] sm:$0xf]
      %v1940 = vld [vmem:[%s1915 + $0x60] sm:$0xf]
      %v1941 = vld [vmem:[%s1915 + $0x64] sm:$0xf]
      %v1942 = vld [vmem:[%s1915 + $0x68] sm:$0xf]
      %v1943 = vld [vmem:[%s1915 + $0x6c] sm:$0xf]
      %v1944 = vld [vmem:[%s1915 + $0x70] sm:$0xf]
      %v1945 = vld [vmem:[%s1915 + $0x74] sm:$0xf]
      %v1946 = vld [vmem:[%s1915 + $0x78] sm:$0xf]
      %v1947 = vld [vmem:[%s1915 + $0x7c] sm:$0xf]
      %v1980 = vunpack.c.l.b16 %v1916
      %v1981 = vunpack.c.l.b16 %v1917
      %v1982 = vunpack.c.l.b16 %v1918
      %v1983 = vunpack.c.l.b16 %v1919
      %v1984 = vunpack.c.l.b16 %v1920
      %v1985 = vunpack.c.l.b16 %v1921
      %v1986 = vunpack.c.l.b16 %v1922
      %v1987 = vunpack.c.l.b16 %v1923
      %v1988 = vunpack.c.l.b16 %v1924
      %v1989 = vunpack.c.l.b16 %v1925
      %v1990 = vunpack.c.l.b16 %v1926
      %v1991 = vunpack.c.l.b16 %v1927
      %v1992 = vunpack.c.l.b16 %v1928
      %v1993 = vunpack.c.l.b16 %v1929
      %v1994 = vunpack.c.l.b16 %v1930
      %v1995 = vunpack.c.l.b16 %v1931
      %v1996 = vunpack.c.l.b16 %v1932
      %v1997 = vunpack.c.l.b16 %v1933
      %v1998 = vunpack.c.l.b16 %v1934
      %v1999 = vunpack.c.l.b16 %v1935
      %v2000 = vunpack.c.l.b16 %v1936
      %v2001 = vunpack.c.l.b16 %v1937
      %v2002 = vunpack.c.l.b16 %v1938
      %v2003 = vunpack.c.l.b16 %v1939
      %v2004 = vunpack.c.l.b16 %v1940
      %v2005 = vunpack.c.l.b16 %v1941
      %v2006 = vunpack.c.l.b16 %v1942
      %v2007 = vunpack.c.l.b16 %v1943
      %v2008 = vunpack.c.l.b16 %v1944
      %v2009 = vunpack.c.l.b16 %v1945
      %v2010 = vunpack.c.l.b16 %v1946
      %v2011 = vunpack.c.l.b16 %v1947
      %v2012 = vpack.c.b16 %v1981, %v1980
      %v2013 = vpack.c.b16 %v1983, %v1982
      %v2014 = vpack.c.b16 %v1985, %v1984
      %v2015 = vpack.c.b16 %v1987, %v1986
      %v2016 = vpack.c.b16 %v1989, %v1988
      %v2017 = vpack.c.b16 %v1991, %v1990
      %v2018 = vpack.c.b16 %v1993, %v1992
      %v2019 = vpack.c.b16 %v1995, %v1994
      %v2020 = vpack.c.b16 %v1997, %v1996
      %v2021 = vpack.c.b16 %v1999, %v1998
      %v2022 = vpack.c.b16 %v2001, %v2000
      %v2023 = vpack.c.b16 %v2003, %v2002
      %v2024 = vpack.c.b16 %v2005, %v2004
      %v2025 = vpack.c.b16 %v2007, %v2006
      %v2026 = vpack.c.b16 %v2009, %v2008
      %v2027 = vpack.c.b16 %v2011, %v2010
      %2044 = vmatprep.subr.bf16.mxu0 0
      %2045 = vmatpush1.bf16.msra.mxu0 %v2019
      %2046 = vmatprep.subr.bf16.mxu0 0
      %2047 = vmatpush1.bf16.msra.mxu0 %v2018
      %2048 = vmatprep.subr.bf16.mxu0 0
      %2049 = vmatpush1.bf16.msra.mxu0 %v2017
      %2050 = vmatprep.subr.bf16.mxu0 0
      %2051 = vmatpush1.bf16.msra.mxu0 %v2016
      %2052 = vmatprep.subr.bf16.mxu0 0
      %2053 = vmatpush1.bf16.msra.mxu0 %v2015
      %2054 = vmatprep.subr.bf16.mxu0 0
      %2055 = vmatpush1.bf16.msra.mxu0 %v2014
      %2056 = vmatprep.subr.bf16.mxu0 0
      %2057 = vmatpush1.bf16.msra.mxu0 %v2013
      %2058 = vmatprep.subr.bf16.mxu0 0
      %2059 = vmatpush1.bf16.msra.mxu0 %v2012
      %2060 = vmatprep.subr.bf16.mxu0 0
      %2061 = vmatpush2.bf16.msra.mxu0 %v2027
      %2062 = vmatprep.subr.bf16.mxu0 0
      %2063 = vmatpush2.bf16.msra.mxu0 %v2026
      %2064 = vmatprep.subr.bf16.mxu0 0
      %2065 = vmatpush2.bf16.msra.mxu0 %v2025
      %2066 = vmatprep.subr.bf16.mxu0 0
      %2067 = vmatpush2.bf16.msra.mxu0 %v2024
      %2068 = vmatprep.subr.bf16.mxu0 0
      %2069 = vmatpush2.bf16.msra.mxu0 %v2023
      %2070 = vmatprep.subr.bf16.mxu0 0
      %2071 = vmatpush2.bf16.msra.mxu0 %v2022
      %2072 = vmatprep.subr.bf16.mxu0 0
      %2073 = vmatpush2.bf16.msra.mxu0 %v2021
      %2074 = vmatprep.subr.bf16.mxu0 0
      %2075 = vmatpush2.bf16.msra.mxu0 %v2020
      %2076 = vmatprep.mubr.bf16.mxu0 %v1908
      %2077 = vmatmul.mubr.bf16.gmra.mxu0 %v1907
      %v2078 = vpop.f32.mrf.mxu0
      %v2079 = vadd.f32 0.0, %v2078
      %v2080 = vpop.f32.mrf.mxu0
      %v2081 = vpop.f32.mrf.mxu0
      %v2082 = vadd.f32 0.0, %v2081
      %v2083 = vpop.f32.mrf.mxu0
      %2084 = vmatprep.mubr.bf16.mxu0 %v1910
      %2085 = vmatmul.mubr.bf16.gmra.mxu0 %v1909
      %v2086 = vpop.f32.mrf.mxu0
      %v2087 = vadd.f32 0.0, %v2086
      %v2088 = vpop.f32.mrf.mxu0
      %v2089 = vpop.f32.mrf.mxu0
      %v2090 = vadd.f32 0.0, %v2089
      %v2091 = vpop.f32.mrf.mxu0
      %2092 = vmatprep.mubr.bf16.mxu0 %v1912
      %2093 = vmatmul.mubr.bf16.gmra.mxu0 %v1911
      %v2094 = vpop.f32.mrf.mxu0
      %v2095 = vadd.f32 0.0, %v2094
      %v2096 = vpop.f32.mrf.mxu0
      %v2097 = vpop.f32.mrf.mxu0
      %v2098 = vadd.f32 0.0, %v2097
      %v2099 = vpop.f32.mrf.mxu0
      %2100 = vmatprep.mubr.bf16.mxu0 %v1914
      %2101 = vmatmul.mubr.bf16.gmra.mxu0 %v1913
      %v2102 = vpop.f32.mrf.mxu0
      %v2103 = vadd.f32 0.0, %v2102
      %v2104 = vpop.f32.mrf.mxu0
      %v2105 = vpop.f32.mrf.mxu0
      %v2106 = vadd.f32 0.0, %v2105
      %v2107 = vpop.f32.mrf.mxu0
      %2108 = vdwg.mxu0
      %v2109 = vadd.f32 %v1811, %v2079
      %v2110 = vadd.f32 %v1812, %v2082
      %v2111 = vadd.f32 %v1813, %v2087
      %v2112 = vadd.f32 %v1814, %v2090
      %v2113 = vadd.f32 %v1815, %v2095
      %v2114 = vadd.f32 %v1816, %v2098
      %v2115 = vadd.f32 %v1817, %v2103
      %v2116 = vadd.f32 %v1818, %v2106
      %s2117 = scalar_lea.vmem [#allocation2], 96
      %v2118 = vld [vmem:[%s2117] sm:$0xff]
      %v2119 = vld [vmem:[%s2117 + $0x8] sm:$0xff]
      %v2120 = vld [vmem:[%s2117 + $0x10] sm:$0xff]
      %v2121 = vld [vmem:[%s2117 + $0x18] sm:$0xff]
      %v2122 = vld [vmem:[%s2117 + $0x30] sm:$0xff]
      %v2123 = vld [vmem:[%s2117 + $0x38] sm:$0xff]
      %v2124 = vld [vmem:[%s2117 + $0x40] sm:$0xff]
      %v2125 = vld [vmem:[%s2117 + $0x48] sm:$0xff]
      %v2126 = vld [vmem:[%s2117 + $0x60] sm:$0xff]
      %v2127 = vld [vmem:[%s2117 + $0x68] sm:$0xff]
      %v2128 = vld [vmem:[%s2117 + $0x70] sm:$0xff]
      %v2129 = vld [vmem:[%s2117 + $0x78] sm:$0xff]
      %v2130 = vld [vmem:[%s2117 + $0x90] sm:$0xff]
      %v2131 = vld [vmem:[%s2117 + $0x98] sm:$0xff]
      %v2132 = vld [vmem:[%s2117 + $0xa0] sm:$0xff]
      %v2133 = vld [vmem:[%s2117 + $0xa8] sm:$0xff]
      %v2134 = vpack.c.bf16 %v2120, %v2118
      %v2135 = vpack.c.bf16 %v2121, %v2119
      %v2136 = vpack.c.bf16 %v2124, %v2122
      %v2137 = vpack.c.bf16 %v2125, %v2123
      %v2138 = vpack.c.bf16 %v2128, %v2126
      %v2139 = vpack.c.bf16 %v2129, %v2127
      %v2140 = vpack.c.bf16 %v2132, %v2130
      %v2141 = vpack.c.bf16 %v2133, %v2131
      %s2142 = scalar_lea.vmem %s1, 768
      %v2143 = vld [vmem:[%s2142] sm:$0xf]
      %v2144 = vld [vmem:[%s2142 + $0x4] sm:$0xf]
      %v2145 = vld [vmem:[%s2142 + $0x8] sm:$0xf]
      %v2146 = vld [vmem:[%s2142 + $0xc] sm:$0xf]
      %v2147 = vld [vmem:[%s2142 + $0x10] sm:$0xf]
      %v2148 = vld [vmem:[%s2142 + $0x14] sm:$0xf]
      %v2149 = vld [vmem:[%s2142 + $0x18] sm:$0xf]
      %v2150 = vld [vmem:[%s2142 + $0x1c] sm:$0xf]
      %v2151 = vld [vmem:[%s2142 + $0x20] sm:$0xf]
      %v2152 = vld [vmem:[%s2142 + $0x24] sm:$0xf]
      %v2153 = vld [vmem:[%s2142 + $0x28] sm:$0xf]
      %v2154 = vld [vmem:[%s2142 + $0x2c] sm:$0xf]
      %v2155 = vld [vmem:[%s2142 + $0x30] sm:$0xf]
      %v2156 = vld [vmem:[%s2142 + $0x34] sm:$0xf]
      %v2157 = vld [vmem:[%s2142 + $0x38] sm:$0xf]
      %v2158 = vld [vmem:[%s2142 + $0x3c] sm:$0xf]
      %v2159 = vld [vmem:[%s2142 + $0x40] sm:$0xf]
      %v2160 = vld [vmem:[%s2142 + $0x44] sm:$0xf]
      %v2161 = vld [vmem:[%s2142 + $0x48] sm:$0xf]
      %v2162 = vld [vmem:[%s2142 + $0x4c] sm:$0xf]
      %v2163 = vld [vmem:[%s2142 + $0x50] sm:$0xf]
      %v2164 = vld [vmem:[%s2142 + $0x54] sm:$0xf]
      %v2165 = vld [vmem:[%s2142 + $0x58] sm:$0xf]
      %v2166 = vld [vmem:[%s2142 + $0x5c] sm:$0xf]
      %v2167 = vld [vmem:[%s2142 + $0x60] sm:$0xf]
      %v2168 = vld [vmem:[%s2142 + $0x64] sm:$0xf]
      %v2169 = vld [vmem:[%s2142 + $0x68] sm:$0xf]
      %v2170 = vld [vmem:[%s2142 + $0x6c] sm:$0xf]
      %v2171 = vld [vmem:[%s2142 + $0x70] sm:$0xf]
      %v2172 = vld [vmem:[%s2142 + $0x74] sm:$0xf]
      %v2173 = vld [vmem:[%s2142 + $0x78] sm:$0xf]
      %v2174 = vld [vmem:[%s2142 + $0x7c] sm:$0xf]
      %v2207 = vunpack.c.l.b16 %v2143
      %v2208 = vunpack.c.l.b16 %v2144
      %v2209 = vunpack.c.l.b16 %v2145
      %v2210 = vunpack.c.l.b16 %v2146
      %v2211 = vunpack.c.l.b16 %v2147
      %v2212 = vunpack.c.l.b16 %v2148
      %v2213 = vunpack.c.l.b16 %v2149
      %v2214 = vunpack.c.l.b16 %v2150
      %v2215 = vunpack.c.l.b16 %v2151
      %v2216 = vunpack.c.l.b16 %v2152
      %v2217 = vunpack.c.l.b16 %v2153
      %v2218 = vunpack.c.l.b16 %v2154
      %v2219 = vunpack.c.l.b16 %v2155
      %v2220 = vunpack.c.l.b16 %v2156
      %v2221 = vunpack.c.l.b16 %v2157
      %v2222 = vunpack.c.l.b16 %v2158
      %v2223 = vunpack.c.l.b16 %v2159
      %v2224 = vunpack.c.l.b16 %v2160
      %v2225 = vunpack.c.l.b16 %v2161
      %v2226 = vunpack.c.l.b16 %v2162
      %v2227 = vunpack.c.l.b16 %v2163
      %v2228 = vunpack.c.l.b16 %v2164
      %v2229 = vunpack.c.l.b16 %v2165
      %v2230 = vunpack.c.l.b16 %v2166
      %v2231 = vunpack.c.l.b16 %v2167
      %v2232 = vunpack.c.l.b16 %v2168
      %v2233 = vunpack.c.l.b16 %v2169
      %v2234 = vunpack.c.l.b16 %v2170
      %v2235 = vunpack.c.l.b16 %v2171
      %v2236 = vunpack.c.l.b16 %v2172
      %v2237 = vunpack.c.l.b16 %v2173
      %v2238 = vunpack.c.l.b16 %v2174
      %v2239 = vpack.c.b16 %v2208, %v2207
      %v2240 = vpack.c.b16 %v2210, %v2209
      %v2241 = vpack.c.b16 %v2212, %v2211
      %v2242 = vpack.c.b16 %v2214, %v2213
      %v2243 = vpack.c.b16 %v2216, %v2215
      %v2244 = vpack.c.b16 %v2218, %v2217
      %v2245 = vpack.c.b16 %v2220, %v2219
      %v2246 = vpack.c.b16 %v2222, %v2221
      %v2247 = vpack.c.b16 %v2224, %v2223
      %v2248 = vpack.c.b16 %v2226, %v2225
      %v2249 = vpack.c.b16 %v2228, %v2227
      %v2250 = vpack.c.b16 %v2230, %v2229
      %v2251 = vpack.c.b16 %v2232, %v2231
      %v2252 = vpack.c.b16 %v2234, %v2233
      %v2253 = vpack.c.b16 %v2236, %v2235
      %v2254 = vpack.c.b16 %v2238, %v2237
      %2271 = vmatprep.subr.bf16.mxu0 0
      %2272 = vmatpush1.bf16.msra.mxu0 %v2246
      %2273 = vmatprep.subr.bf16.mxu0 0
      %2274 = vmatpush1.bf16.msra.mxu0 %v2245
      %2275 = vmatprep.subr.bf16.mxu0 0
      %2276 = vmatpush1.bf16.msra.mxu0 %v2244
      %2277 = vmatprep.subr.bf16.mxu0 0
      %2278 = vmatpush1.bf16.msra.mxu0 %v2243
      %2279 = vmatprep.subr.bf16.mxu0 0
      %2280 = vmatpush1.bf16.msra.mxu0 %v2242
      %2281 = vmatprep.subr.bf16.mxu0 0
      %2282 = vmatpush1.bf16.msra.mxu0 %v2241
      %2283 = vmatprep.subr.bf16.mxu0 0
      %2284 = vmatpush1.bf16.msra.mxu0 %v2240
      %2285 = vmatprep.subr.bf16.mxu0 0
      %2286 = vmatpush1.bf16.msra.mxu0 %v2239
      %2287 = vmatprep.subr.bf16.mxu0 0
      %2288 = vmatpush2.bf16.msra.mxu0 %v2254
      %2289 = vmatprep.subr.bf16.mxu0 0
      %2290 = vmatpush2.bf16.msra.mxu0 %v2253
      %2291 = vmatprep.subr.bf16.mxu0 0
      %2292 = vmatpush2.bf16.msra.mxu0 %v2252
      %2293 = vmatprep.subr.bf16.mxu0 0
      %2294 = vmatpush2.bf16.msra.mxu0 %v2251
      %2295 = vmatprep.subr.bf16.mxu0 0
      %2296 = vmatpush2.bf16.msra.mxu0 %v2250
      %2297 = vmatprep.subr.bf16.mxu0 0
      %2298 = vmatpush2.bf16.msra.mxu0 %v2249
      %2299 = vmatprep.subr.bf16.mxu0 0
      %2300 = vmatpush2.bf16.msra.mxu0 %v2248
      %2301 = vmatprep.subr.bf16.mxu0 0
      %2302 = vmatpush2.bf16.msra.mxu0 %v2247
      %2303 = vmatprep.mubr.bf16.mxu0 %v2135
      %2304 = vmatmul.mubr.bf16.gmra.mxu0 %v2134
      %v2305 = vpop.f32.mrf.mxu0
      %v2306 = vadd.f32 0.0, %v2305
      %v2307 = vpop.f32.mrf.mxu0
      %v2308 = vpop.f32.mrf.mxu0
      %v2309 = vadd.f32 0.0, %v2308
      %v2310 = vpop.f32.mrf.mxu0
      %2311 = vmatprep.mubr.bf16.mxu0 %v2137
      %2312 = vmatmul.mubr.bf16.gmra.mxu0 %v2136
      %v2313 = vpop.f32.mrf.mxu0
      %v2314 = vadd.f32 0.0, %v2313
      %v2315 = vpop.f32.mrf.mxu0
      %v2316 = vpop.f32.mrf.mxu0
      %v2317 = vadd.f32 0.0, %v2316
      %v2318 = vpop.f32.mrf.mxu0
      %2319 = vmatprep.mubr.bf16.mxu0 %v2139
      %2320 = vmatmul.mubr.bf16.gmra.mxu0 %v2138
      %v2321 = vpop.f32.mrf.mxu0
      %v2322 = vadd.f32 0.0, %v2321
      %v2323 = vpop.f32.mrf.mxu0
      %v2324 = vpop.f32.mrf.mxu0
      %v2325 = vadd.f32 0.0, %v2324
      %v2326 = vpop.f32.mrf.mxu0
      %2327 = vmatprep.mubr.bf16.mxu0 %v2141
      %2328 = vmatmul.mubr.bf16.gmra.mxu0 %v2140
      %v2329 = vpop.f32.mrf.mxu0
      %v2330 = vadd.f32 0.0, %v2329
      %v2331 = vpop.f32.mrf.mxu0
      %v2332 = vpop.f32.mrf.mxu0
      %v2333 = vadd.f32 0.0, %v2332
      %v2334 = vpop.f32.mrf.mxu0
      %2335 = vdwg.mxu0
      %v2336 = vadd.f32 %v2109, %v2306
      %v2337 = vadd.f32 %v2110, %v2309
      %v2338 = vadd.f32 %v2111, %v2314
      %v2339 = vadd.f32 %v2112, %v2317
      %v2340 = vadd.f32 %v2113, %v2322
      %v2341 = vadd.f32 %v2114, %v2325
      %v2342 = vadd.f32 %v2115, %v2330
      %v2343 = vadd.f32 %v2116, %v2333
      %v2344 = vld [vmem:[%s2117] sm:$0xfe]
      %v2345 = vld [vmem:[%s2117 + $0x8] sm:$0xfe]
      %v2346 = vld [vmem:[%s2117 + $0x10] sm:$0xff]
      %v2347 = vld [vmem:[%s2117 + $0x18] sm:$0xff]
      %v2348 = vld [vmem:[%s2117 + $0x20] sm:$0x1]
      %v2349 = vld [vmem:[%s2117 + $0x28] sm:$0x1]
      %v2350 = vld [vmem:[%s2117 + $0x30] sm:$0xfe]
      %v2351 = vld [vmem:[%s2117 + $0x38] sm:$0xfe]
      %v2352 = vld [vmem:[%s2117 + $0x40] sm:$0xff]
      %v2353 = vld [vmem:[%s2117 + $0x48] sm:$0xff]
      %v2354 = vld [vmem:[%s2117 + $0x50] sm:$0x1]
      %v2355 = vld [vmem:[%s2117 + $0x58] sm:$0x1]
      %v2356 = vld [vmem:[%s2117 + $0x60] sm:$0xfe]
      %v2357 = vld [vmem:[%s2117 + $0x68] sm:$0xfe]
      %v2358 = vld [vmem:[%s2117 + $0x70] sm:$0xff]
      %v2359 = vld [vmem:[%s2117 + $0x78] sm:$0xff]
      %v2360 = vld [vmem:[%s2117 + $0x80] sm:$0x1]
      %v2361 = vld [vmem:[%s2117 + $0x88] sm:$0x1]
      %v2362 = vld [vmem:[%s2117 + $0x90] sm:$0xfe]
      %v2363 = vld [vmem:[%s2117 + $0x98] sm:$0xfe]
      %v2364 = vld [vmem:[%s2117 + $0xa0] sm:$0xff]
      %v2365 = vld [vmem:[%s2117 + $0xa8] sm:$0xff]
      %v2366 = vld [vmem:[%s2117 + $0xb0] sm:$0x1]
      %v2367 = vld [vmem:[%s2117 + $0xb8] sm:$0x1]
      %v2392 = vrot.slane %v2344, 1
      %v2393 = vrot.slane %v2346, 1
      %v2394 = vsel %vm560, %v2392, %v2393
      %v2395 = vrot.slane %v2345, 1
      %v2396 = vrot.slane %v2347, 1
      %v2397 = vsel %vm560, %v2395, %v2396
      %v2398 = vrot.slane %v2348, 1
      %v2399 = vsel %vm560, %v2393, %v2398
      %v2400 = vrot.slane %v2349, 1
      %v2401 = vsel %vm560, %v2396, %v2400
      %v2402 = vrot.slane %v2350, 1
      %v2403 = vrot.slane %v2352, 1
      %v2404 = vsel %vm560, %v2402, %v2403
      %v2405 = vrot.slane %v2351, 1
      %v2406 = vrot.slane %v2353, 1
      %v2407 = vsel %vm560, %v2405, %v2406
      %v2408 = vrot.slane %v2354, 1
      %v2409 = vsel %vm560, %v2403, %v2408
      %v2410 = vrot.slane %v2355, 1
      %v2411 = vsel %vm560, %v2406, %v2410
      %v2412 = vrot.slane %v2356, 1
      %v2413 = vrot.slane %v2358, 1
      %v2414 = vsel %vm560, %v2412, %v2413
      %v2415 = vrot.slane %v2357, 1
      %v2416 = vrot.slane %v2359, 1
      %v2417 = vsel %vm560, %v2415, %v2416
      %v2418 = vrot.slane %v2360, 1
      %v2419 = vsel %vm560, %v2413, %v2418
      %v2420 = vrot.slane %v2361, 1
      %v2421 = vsel %vm560, %v2416, %v2420
      %v2422 = vrot.slane %v2362, 1
      %v2423 = vrot.slane %v2364, 1
      %v2424 = vsel %vm560, %v2422, %v2423
      %v2425 = vrot.slane %v2363, 1
      %v2426 = vrot.slane %v2365, 1
      %v2427 = vsel %vm560, %v2425, %v2426
      %v2428 = vrot.slane %v2366, 1
      %v2429 = vsel %vm560, %v2423, %v2428
      %v2430 = vrot.slane %v2367, 1
      %v2431 = vsel %vm560, %v2426, %v2430
      %v2448 = vpack.c.bf16 %v2399, %v2394
      %v2449 = vpack.c.bf16 %v2401, %v2397
      %v2450 = vpack.c.bf16 %v2409, %v2404
      %v2451 = vpack.c.bf16 %v2411, %v2407
      %v2452 = vpack.c.bf16 %v2419, %v2414
      %v2453 = vpack.c.bf16 %v2421, %v2417
      %v2454 = vpack.c.bf16 %v2429, %v2424
      %v2455 = vpack.c.bf16 %v2431, %v2427
      %s2456 = scalar_lea.vmem %s1, 896
      %v2457 = vld [vmem:[%s2456] sm:$0xf]
      %v2458 = vld [vmem:[%s2456 + $0x4] sm:$0xf]
      %v2459 = vld [vmem:[%s2456 + $0x8] sm:$0xf]
      %v2460 = vld [vmem:[%s2456 + $0xc] sm:$0xf]
      %v2461 = vld [vmem:[%s2456 + $0x10] sm:$0xf]
      %v2462 = vld [vmem:[%s2456 + $0x14] sm:$0xf]
      %v2463 = vld [vmem:[%s2456 + $0x18] sm:$0xf]
      %v2464 = vld [vmem:[%s2456 + $0x1c] sm:$0xf]
      %v2465 = vld [vmem:[%s2456 + $0x20] sm:$0xf]
      %v2466 = vld [vmem:[%s2456 + $0x24] sm:$0xf]
      %v2467 = vld [vmem:[%s2456 + $0x28] sm:$0xf]
      %v2468 = vld [vmem:[%s2456 + $0x2c] sm:$0xf]
      %v2469 = vld [vmem:[%s2456 + $0x30] sm:$0xf]
      %v2470 = vld [vmem:[%s2456 + $0x34] sm:$0xf]
      %v2471 = vld [vmem:[%s2456 + $0x38] sm:$0xf]
      %v2472 = vld [vmem:[%s2456 + $0x3c] sm:$0xf]
      %v2473 = vld [vmem:[%s2456 + $0x40] sm:$0xf]
      %v2474 = vld [vmem:[%s2456 + $0x44] sm:$0xf]
      %v2475 = vld [vmem:[%s2456 + $0x48] sm:$0xf]
      %v2476 = vld [vmem:[%s2456 + $0x4c] sm:$0xf]
      %v2477 = vld [vmem:[%s2456 + $0x50] sm:$0xf]
      %v2478 = vld [vmem:[%s2456 + $0x54] sm:$0xf]
      %v2479 = vld [vmem:[%s2456 + $0x58] sm:$0xf]
      %v2480 = vld [vmem:[%s2456 + $0x5c] sm:$0xf]
      %v2481 = vld [vmem:[%s2456 + $0x60] sm:$0xf]
      %v2482 = vld [vmem:[%s2456 + $0x64] sm:$0xf]
      %v2483 = vld [vmem:[%s2456 + $0x68] sm:$0xf]
      %v2484 = vld [vmem:[%s2456 + $0x6c] sm:$0xf]
      %v2485 = vld [vmem:[%s2456 + $0x70] sm:$0xf]
      %v2486 = vld [vmem:[%s2456 + $0x74] sm:$0xf]
      %v2487 = vld [vmem:[%s2456 + $0x78] sm:$0xf]
      %v2488 = vld [vmem:[%s2456 + $0x7c] sm:$0xf]
      %v2521 = vunpack.c.l.b16 %v2457
      %v2522 = vunpack.c.l.b16 %v2458
      %v2523 = vunpack.c.l.b16 %v2459
      %v2524 = vunpack.c.l.b16 %v2460
      %v2525 = vunpack.c.l.b16 %v2461
      %v2526 = vunpack.c.l.b16 %v2462
      %v2527 = vunpack.c.l.b16 %v2463
      %v2528 = vunpack.c.l.b16 %v2464
      %v2529 = vunpack.c.l.b16 %v2465
      %v2530 = vunpack.c.l.b16 %v2466
      %v2531 = vunpack.c.l.b16 %v2467
      %v2532 = vunpack.c.l.b16 %v2468
      %v2533 = vunpack.c.l.b16 %v2469
      %v2534 = vunpack.c.l.b16 %v2470
      %v2535 = vunpack.c.l.b16 %v2471
      %v2536 = vunpack.c.l.b16 %v2472
      %v2537 = vunpack.c.l.b16 %v2473
      %v2538 = vunpack.c.l.b16 %v2474
      %v2539 = vunpack.c.l.b16 %v2475
      %v2540 = vunpack.c.l.b16 %v2476
      %v2541 = vunpack.c.l.b16 %v2477
      %v2542 = vunpack.c.l.b16 %v2478
      %v2543 = vunpack.c.l.b16 %v2479
      %v2544 = vunpack.c.l.b16 %v2480
      %v2545 = vunpack.c.l.b16 %v2481
      %v2546 = vunpack.c.l.b16 %v2482
      %v2547 = vunpack.c.l.b16 %v2483
      %v2548 = vunpack.c.l.b16 %v2484
      %v2549 = vunpack.c.l.b16 %v2485
      %v2550 = vunpack.c.l.b16 %v2486
      %v2551 = vunpack.c.l.b16 %v2487
      %v2552 = vunpack.c.l.b16 %v2488
      %v2553 = vpack.c.b16 %v2522, %v2521
      %v2554 = vpack.c.b16 %v2524, %v2523
      %v2555 = vpack.c.b16 %v2526, %v2525
      %v2556 = vpack.c.b16 %v2528, %v2527
      %v2557 = vpack.c.b16 %v2530, %v2529
      %v2558 = vpack.c.b16 %v2532, %v2531
      %v2559 = vpack.c.b16 %v2534, %v2533
      %v2560 = vpack.c.b16 %v2536, %v2535
      %v2561 = vpack.c.b16 %v2538, %v2537
      %v2562 = vpack.c.b16 %v2540, %v2539
      %v2563 = vpack.c.b16 %v2542, %v2541
      %v2564 = vpack.c.b16 %v2544, %v2543
      %v2565 = vpack.c.b16 %v2546, %v2545
      %v2566 = vpack.c.b16 %v2548, %v2547
      %v2567 = vpack.c.b16 %v2550, %v2549
      %v2568 = vpack.c.b16 %v2552, %v2551
      %2585 = vmatprep.subr.bf16.mxu0 0
      %2586 = vmatpush1.bf16.msra.mxu0 %v2560
      %2587 = vmatprep.subr.bf16.mxu0 0
      %2588 = vmatpush1.bf16.msra.mxu0 %v2559
      %2589 = vmatprep.subr.bf16.mxu0 0
      %2590 = vmatpush1.bf16.msra.mxu0 %v2558
      %2591 = vmatprep.subr.bf16.mxu0 0
      %2592 = vmatpush1.bf16.msra.mxu0 %v2557
      %2593 = vmatprep.subr.bf16.mxu0 0
      %2594 = vmatpush1.bf16.msra.mxu0 %v2556
      %2595 = vmatprep.subr.bf16.mxu0 0
      %2596 = vmatpush1.bf16.msra.mxu0 %v2555
      %2597 = vmatprep.subr.bf16.mxu0 0
      %2598 = vmatpush1.bf16.msra.mxu0 %v2554
      %2599 = vmatprep.subr.bf16.mxu0 0
      %2600 = vmatpush1.bf16.msra.mxu0 %v2553
      %2601 = vmatprep.subr.bf16.mxu0 0
      %2602 = vmatpush2.bf16.msra.mxu0 %v2568
      %2603 = vmatprep.subr.bf16.mxu0 0
      %2604 = vmatpush2.bf16.msra.mxu0 %v2567
      %2605 = vmatprep.subr.bf16.mxu0 0
      %2606 = vmatpush2.bf16.msra.mxu0 %v2566
      %2607 = vmatprep.subr.bf16.mxu0 0
      %2608 = vmatpush2.bf16.msra.mxu0 %v2565
      %2609 = vmatprep.subr.bf16.mxu0 0
      %2610 = vmatpush2.bf16.msra.mxu0 %v2564
      %2611 = vmatprep.subr.bf16.mxu0 0
      %2612 = vmatpush2.bf16.msra.mxu0 %v2563
      %2613 = vmatprep.subr.bf16.mxu0 0
      %2614 = vmatpush2.bf16.msra.mxu0 %v2562
      %2615 = vmatprep.subr.bf16.mxu0 0
      %2616 = vmatpush2.bf16.msra.mxu0 %v2561
      %2617 = vmatprep.mubr.bf16.mxu0 %v2449
      %2618 = vmatmul.mubr.bf16.gmra.mxu0 %v2448
      %v2619 = vpop.f32.mrf.mxu0
      %v2620 = vadd.f32 0.0, %v2619
      %v2621 = vpop.f32.mrf.mxu0
      %v2622 = vpop.f32.mrf.mxu0
      %v2623 = vadd.f32 0.0, %v2622
      %v2624 = vpop.f32.mrf.mxu0
      %2625 = vmatprep.mubr.bf16.mxu0 %v2451
      %2626 = vmatmul.mubr.bf16.gmra.mxu0 %v2450
      %v2627 = vpop.f32.mrf.mxu0
      %v2628 = vadd.f32 0.0, %v2627
      %v2629 = vpop.f32.mrf.mxu0
      %v2630 = vpop.f32.mrf.mxu0
      %v2631 = vadd.f32 0.0, %v2630
      %v2632 = vpop.f32.mrf.mxu0
      %2633 = vmatprep.mubr.bf16.mxu0 %v2453
      %2634 = vmatmul.mubr.bf16.gmra.mxu0 %v2452
      %v2635 = vpop.f32.mrf.mxu0
      %v2636 = vadd.f32 0.0, %v2635
      %v2637 = vpop.f32.mrf.mxu0
      %v2638 = vpop.f32.mrf.mxu0
      %v2639 = vadd.f32 0.0, %v2638
      %v2640 = vpop.f32.mrf.mxu0
      %2641 = vmatprep.mubr.bf16.mxu0 %v2455
      %2642 = vmatmul.mubr.bf16.gmra.mxu0 %v2454
      %v2643 = vpop.f32.mrf.mxu0
      %v2644 = vadd.f32 0.0, %v2643
      %v2645 = vpop.f32.mrf.mxu0
      %v2646 = vpop.f32.mrf.mxu0
      %v2647 = vadd.f32 0.0, %v2646
      %v2648 = vpop.f32.mrf.mxu0
      %2649 = vdwg.mxu0
      %v2650 = vadd.f32 %v2336, %v2620
      %v2651 = vadd.f32 %v2337, %v2623
      %v2652 = vadd.f32 %v2338, %v2628
      %v2653 = vadd.f32 %v2339, %v2631
      %v2654 = vadd.f32 %v2340, %v2636
      %v2655 = vadd.f32 %v2341, %v2639
      %v2656 = vadd.f32 %v2342, %v2644
      %v2657 = vadd.f32 %v2343, %v2647
      %v2658 = vld [vmem:[%s2117] sm:$0xfc]
      %v2659 = vld [vmem:[%s2117 + $0x8] sm:$0xfc]
      %v2660 = vld [vmem:[%s2117 + $0x20] sm:$0x3]
      %v2661 = vld [vmem:[%s2117 + $0x28] sm:$0x3]
      %v2662 = vld [vmem:[%s2117 + $0x30] sm:$0xfc]
      %v2663 = vld [vmem:[%s2117 + $0x38] sm:$0xfc]
      %v2664 = vld [vmem:[%s2117 + $0x50] sm:$0x3]
      %v2665 = vld [vmem:[%s2117 + $0x58] sm:$0x3]
      %v2666 = vld [vmem:[%s2117 + $0x60] sm:$0xfc]
      %v2667 = vld [vmem:[%s2117 + $0x68] sm:$0xfc]
      %v2668 = vld [vmem:[%s2117 + $0x80] sm:$0x3]
      %v2669 = vld [vmem:[%s2117 + $0x88] sm:$0x3]
      %v2670 = vld [vmem:[%s2117 + $0x90] sm:$0xfc]
      %v2671 = vld [vmem:[%s2117 + $0x98] sm:$0xfc]
      %v2672 = vld [vmem:[%s2117 + $0xb0] sm:$0x3]
      %v2673 = vld [vmem:[%s2117 + $0xb8] sm:$0x3]
      %v2690 = vrot.slane %v2658, 2
      %v2691 = vrot.slane %v2346, 2
      %v2692 = vsel %vm1012, %v2690, %v2691
      %v2693 = vrot.slane %v2659, 2
      %v2694 = vrot.slane %v2347, 2
      %v2695 = vsel %vm1012, %v2693, %v2694
      %v2696 = vrot.slane %v2660, 2
      %v2697 = vsel %vm1012, %v2691, %v2696
      %v2698 = vrot.slane %v2661, 2
      %v2699 = vsel %vm1012, %v2694, %v2698
      %v2700 = vrot.slane %v2662, 2
      %v2701 = vrot.slane %v2352, 2
      %v2702 = vsel %vm1012, %v2700, %v2701
      %v2703 = vrot.slane %v2663, 2
      %v2704 = vrot.slane %v2353, 2
      %v2705 = vsel %vm1012, %v2703, %v2704
      %v2706 = vrot.slane %v2664, 2
      %v2707 = vsel %vm1012, %v2701, %v2706
      %v2708 = vrot.slane %v2665, 2
      %v2709 = vsel %vm1012, %v2704, %v2708
      %v2710 = vrot.slane %v2666, 2
      %v2711 = vrot.slane %v2358, 2
      %v2712 = vsel %vm1012, %v2710, %v2711
      %v2713 = vrot.slane %v2667, 2
      %v2714 = vrot.slane %v2359, 2
      %v2715 = vsel %vm1012, %v2713, %v2714
      %v2716 = vrot.slane %v2668, 2
      %v2717 = vsel %vm1012, %v2711, %v2716
      %v2718 = vrot.slane %v2669, 2
      %v2719 = vsel %vm1012, %v2714, %v2718
      %v2720 = vrot.slane %v2670, 2
      %v2721 = vrot.slane %v2364, 2
      %v2722 = vsel %vm1012, %v2720, %v2721
      %v2723 = vrot.slane %v2671, 2
      %v2724 = vrot.slane %v2365, 2
      %v2725 = vsel %vm1012, %v2723, %v2724
      %v2726 = vrot.slane %v2672, 2
      %v2727 = vsel %vm1012, %v2721, %v2726
      %v2728 = vrot.slane %v2673, 2
      %v2729 = vsel %vm1012, %v2724, %v2728
      %v2746 = vpack.c.bf16 %v2697, %v2692
      %v2747 = vpack.c.bf16 %v2699, %v2695
      %v2748 = vpack.c.bf16 %v2707, %v2702
      %v2749 = vpack.c.bf16 %v2709, %v2705
      %v2750 = vpack.c.bf16 %v2717, %v2712
      %v2751 = vpack.c.bf16 %v2719, %v2715
      %v2752 = vpack.c.bf16 %v2727, %v2722
      %v2753 = vpack.c.bf16 %v2729, %v2725
      %s2754 = scalar_lea.vmem %s1, 1024
      %v2755 = vld [vmem:[%s2754] sm:$0xf]
      %v2756 = vld [vmem:[%s2754 + $0x4] sm:$0xf]
      %v2757 = vld [vmem:[%s2754 + $0x8] sm:$0xf]
      %v2758 = vld [vmem:[%s2754 + $0xc] sm:$0xf]
      %v2759 = vld [vmem:[%s2754 + $0x10] sm:$0xf]
      %v2760 = vld [vmem:[%s2754 + $0x14] sm:$0xf]
      %v2761 = vld [vmem:[%s2754 + $0x18] sm:$0xf]
      %v2762 = vld [vmem:[%s2754 + $0x1c] sm:$0xf]
      %v2763 = vld [vmem:[%s2754 + $0x20] sm:$0xf]
      %v2764 = vld [vmem:[%s2754 + $0x24] sm:$0xf]
      %v2765 = vld [vmem:[%s2754 + $0x28] sm:$0xf]
      %v2766 = vld [vmem:[%s2754 + $0x2c] sm:$0xf]
      %v2767 = vld [vmem:[%s2754 + $0x30] sm:$0xf]
      %v2768 = vld [vmem:[%s2754 + $0x34] sm:$0xf]
      %v2769 = vld [vmem:[%s2754 + $0x38] sm:$0xf]
      %v2770 = vld [vmem:[%s2754 + $0x3c] sm:$0xf]
      %v2771 = vld [vmem:[%s2754 + $0x40] sm:$0xf]
      %v2772 = vld [vmem:[%s2754 + $0x44] sm:$0xf]
      %v2773 = vld [vmem:[%s2754 + $0x48] sm:$0xf]
      %v2774 = vld [vmem:[%s2754 + $0x4c] sm:$0xf]
      %v2775 = vld [vmem:[%s2754 + $0x50] sm:$0xf]
      %v2776 = vld [vmem:[%s2754 + $0x54] sm:$0xf]
      %v2777 = vld [vmem:[%s2754 + $0x58] sm:$0xf]
      %v2778 = vld [vmem:[%s2754 + $0x5c] sm:$0xf]
      %v2779 = vld [vmem:[%s2754 + $0x60] sm:$0xf]
      %v2780 = vld [vmem:[%s2754 + $0x64] sm:$0xf]
      %v2781 = vld [vmem:[%s2754 + $0x68] sm:$0xf]
      %v2782 = vld [vmem:[%s2754 + $0x6c] sm:$0xf]
      %v2783 = vld [vmem:[%s2754 + $0x70] sm:$0xf]
      %v2784 = vld [vmem:[%s2754 + $0x74] sm:$0xf]
      %v2785 = vld [vmem:[%s2754 + $0x78] sm:$0xf]
      %v2786 = vld [vmem:[%s2754 + $0x7c] sm:$0xf]
      %v2819 = vunpack.c.l.b16 %v2755
      %v2820 = vunpack.c.l.b16 %v2756
      %v2821 = vunpack.c.l.b16 %v2757
      %v2822 = vunpack.c.l.b16 %v2758
      %v2823 = vunpack.c.l.b16 %v2759
      %v2824 = vunpack.c.l.b16 %v2760
      %v2825 = vunpack.c.l.b16 %v2761
      %v2826 = vunpack.c.l.b16 %v2762
      %v2827 = vunpack.c.l.b16 %v2763
      %v2828 = vunpack.c.l.b16 %v2764
      %v2829 = vunpack.c.l.b16 %v2765
      %v2830 = vunpack.c.l.b16 %v2766
      %v2831 = vunpack.c.l.b16 %v2767
      %v2832 = vunpack.c.l.b16 %v2768
      %v2833 = vunpack.c.l.b16 %v2769
      %v2834 = vunpack.c.l.b16 %v2770
      %v2835 = vunpack.c.l.b16 %v2771
      %v2836 = vunpack.c.l.b16 %v2772
      %v2837 = vunpack.c.l.b16 %v2773
      %v2838 = vunpack.c.l.b16 %v2774
      %v2839 = vunpack.c.l.b16 %v2775
      %v2840 = vunpack.c.l.b16 %v2776
      %v2841 = vunpack.c.l.b16 %v2777
      %v2842 = vunpack.c.l.b16 %v2778
      %v2843 = vunpack.c.l.b16 %v2779
      %v2844 = vunpack.c.l.b16 %v2780
      %v2845 = vunpack.c.l.b16 %v2781
      %v2846 = vunpack.c.l.b16 %v2782
      %v2847 = vunpack.c.l.b16 %v2783
      %v2848 = vunpack.c.l.b16 %v2784
      %v2849 = vunpack.c.l.b16 %v2785
      %v2850 = vunpack.c.l.b16 %v2786
      %v2851 = vpack.c.b16 %v2820, %v2819
      %v2852 = vpack.c.b16 %v2822, %v2821
      %v2853 = vpack.c.b16 %v2824, %v2823
      %v2854 = vpack.c.b16 %v2826, %v2825
      %v2855 = vpack.c.b16 %v2828, %v2827
      %v2856 = vpack.c.b16 %v2830, %v2829
      %v2857 = vpack.c.b16 %v2832, %v2831
      %v2858 = vpack.c.b16 %v2834, %v2833
      %v2859 = vpack.c.b16 %v2836, %v2835
      %v2860 = vpack.c.b16 %v2838, %v2837
      %v2861 = vpack.c.b16 %v2840, %v2839
      %v2862 = vpack.c.b16 %v2842, %v2841
      %v2863 = vpack.c.b16 %v2844, %v2843
      %v2864 = vpack.c.b16 %v2846, %v2845
      %v2865 = vpack.c.b16 %v2848, %v2847
      %v2866 = vpack.c.b16 %v2850, %v2849
      %2883 = vmatprep.subr.bf16.mxu0 0
      %2884 = vmatpush1.bf16.msra.mxu0 %v2858
      %2885 = vmatprep.subr.bf16.mxu0 0
      %2886 = vmatpush1.bf16.msra.mxu0 %v2857
      %2887 = vmatprep.subr.bf16.mxu0 0
      %2888 = vmatpush1.bf16.msra.mxu0 %v2856
      %2889 = vmatprep.subr.bf16.mxu0 0
      %2890 = vmatpush1.bf16.msra.mxu0 %v2855
      %2891 = vmatprep.subr.bf16.mxu0 0
      %2892 = vmatpush1.bf16.msra.mxu0 %v2854
      %2893 = vmatprep.subr.bf16.mxu0 0
      %2894 = vmatpush1.bf16.msra.mxu0 %v2853
      %2895 = vmatprep.subr.bf16.mxu0 0
      %2896 = vmatpush1.bf16.msra.mxu0 %v2852
      %2897 = vmatprep.subr.bf16.mxu0 0
      %2898 = vmatpush1.bf16.msra.mxu0 %v2851
      %2899 = vmatprep.subr.bf16.mxu0 0
      %2900 = vmatpush2.bf16.msra.mxu0 %v2866
      %2901 = vmatprep.subr.bf16.mxu0 0
      %2902 = vmatpush2.bf16.msra.mxu0 %v2865
      %2903 = vmatprep.subr.bf16.mxu0 0
      %2904 = vmatpush2.bf16.msra.mxu0 %v2864
      %2905 = vmatprep.subr.bf16.mxu0 0
      %2906 = vmatpush2.bf16.msra.mxu0 %v2863
      %2907 = vmatprep.subr.bf16.mxu0 0
      %2908 = vmatpush2.bf16.msra.mxu0 %v2862
      %2909 = vmatprep.subr.bf16.mxu0 0
      %2910 = vmatpush2.bf16.msra.mxu0 %v2861
      %2911 = vmatprep.subr.bf16.mxu0 0
      %2912 = vmatpush2.bf16.msra.mxu0 %v2860
      %2913 = vmatprep.subr.bf16.mxu0 0
      %2914 = vmatpush2.bf16.msra.mxu0 %v2859
      %2915 = vmatprep.mubr.bf16.mxu0 %v2747
      %2916 = vmatmul.mubr.bf16.gmra.mxu0 %v2746
      %v2917 = vpop.f32.mrf.mxu0
      %v2918 = vadd.f32 0.0, %v2917
      %v2919 = vpop.f32.mrf.mxu0
      %v2920 = vpop.f32.mrf.mxu0
      %v2921 = vadd.f32 0.0, %v2920
      %v2922 = vpop.f32.mrf.mxu0
      %2923 = vmatprep.mubr.bf16.mxu0 %v2749
      %2924 = vmatmul.mubr.bf16.gmra.mxu0 %v2748
      %v2925 = vpop.f32.mrf.mxu0
      %v2926 = vadd.f32 0.0, %v2925
      %v2927 = vpop.f32.mrf.mxu0
      %v2928 = vpop.f32.mrf.mxu0
      %v2929 = vadd.f32 0.0, %v2928
      %v2930 = vpop.f32.mrf.mxu0
      %2931 = vmatprep.mubr.bf16.mxu0 %v2751
      %2932 = vmatmul.mubr.bf16.gmra.mxu0 %v2750
      %v2933 = vpop.f32.mrf.mxu0
      %v2934 = vadd.f32 0.0, %v2933
      %v2935 = vpop.f32.mrf.mxu0
      %v2936 = vpop.f32.mrf.mxu0
      %v2937 = vadd.f32 0.0, %v2936
      %v2938 = vpop.f32.mrf.mxu0
      %2939 = vmatprep.mubr.bf16.mxu0 %v2753
      %2940 = vmatmul.mubr.bf16.gmra.mxu0 %v2752
      %v2941 = vpop.f32.mrf.mxu0
      %v2942 = vadd.f32 0.0, %v2941
      %v2943 = vpop.f32.mrf.mxu0
      %v2944 = vpop.f32.mrf.mxu0
      %v2945 = vadd.f32 0.0, %v2944
      %v2946 = vpop.f32.mrf.mxu0
      %2947 = vdwg.mxu0
      %v2948 = vadd.f32 %v2650, %v2918
      %v2949 = vadd.f32 %v2651, %v2921
      %v2950 = vadd.f32 %v2652, %v2926
      %v2951 = vadd.f32 %v2653, %v2929
      %v2952 = vadd.f32 %v2654, %v2934
      %v2953 = vadd.f32 %v2655, %v2937
      %v2954 = vadd.f32 %v2656, %v2942
      %v2955 = vadd.f32 %v2657, %v2945
      %v2956 = vld [vmem:[%s2] sm:$0x1]
      %v2958 = vlaneseq
      %v2959 = vshrl.u32 %v2958, 7
      %v2960 = vsub.s32 0, %v2959
      %v2961 = vrot.slane %v2956, %v2960
      %v2963 = vadd.f32 %v2948, %v2961
      %v2964 = vadd.f32 %v2949, %v2961
      %v2965 = vadd.f32 %v2950, %v2961
      %v2966 = vadd.f32 %v2951, %v2961
      %v2967 = vadd.f32 %v2952, %v2961
      %v2968 = vadd.f32 %v2953, %v2961
      %v2969 = vadd.f32 %v2954, %v2961
      %v2970 = vadd.f32 %v2955, %v2961
      %v2971 = vld [vmem:[%s3] sm:$0x1]
      %v2973 = vlaneseq
      %v2974 = vshrl.u32 %v2973, 7
      %v2975 = vsub.s32 0, %v2974
      %v2976 = vrot.slane %v2971, %v2975
      %v2978 = vmul.f32 %v2963, %v2976
      %v2979 = vmul.f32 %v2964, %v2976
      %v2980 = vmul.f32 %v2965, %v2976
      %v2981 = vmul.f32 %v2966, %v2976
      %v2982 = vmul.f32 %v2967, %v2976
      %v2983 = vmul.f32 %v2968, %v2976
      %v2984 = vmul.f32 %v2969, %v2976
      %v2985 = vmul.f32 %v2970, %v2976
      %v2986 = vld [vmem:[%s4] sm:$0x1]
      %v2988 = vlaneseq
      %v2989 = vshrl.u32 %v2988, 7
      %v2990 = vsub.s32 0, %v2989
      %v2991 = vrot.slane %v2986, %v2990
      %v2993 = vadd.f32 %v2978, %v2991
      %v2994 = vadd.f32 %v2979, %v2991
      %v2995 = vadd.f32 %v2980, %v2991
      %v2996 = vadd.f32 %v2981, %v2991
      %v2997 = vadd.f32 %v2982, %v2991
      %v2998 = vadd.f32 %v2983, %v2991
      %v2999 = vadd.f32 %v2984, %v2991
      %v3000 = vadd.f32 %v2985, %v2991
      %vm3001 = vcmp.ge.f32.partialorder %v2993, 0.0
      %vm3002 = vcmp.ge.f32.partialorder %v2994, 0.0
      %vm3003 = vcmp.ge.f32.partialorder %v2995, 0.0
      %vm3004 = vcmp.ge.f32.partialorder %v2996, 0.0
      %vm3005 = vcmp.ge.f32.partialorder %v2997, 0.0
      %vm3006 = vcmp.ge.f32.partialorder %v2998, 0.0
      %vm3007 = vcmp.ge.f32.partialorder %v2999, 0.0
      %vm3008 = vcmp.ge.f32.partialorder %v3000, 0.0
      %v3009 = vmul.f32 %v2993, 0.01
      %v3010 = vmul.f32 %v2994, 0.01
      %v3011 = vmul.f32 %v2995, 0.01
      %v3012 = vmul.f32 %v2996, 0.01
      %v3013 = vmul.f32 %v2997, 0.01
      %v3014 = vmul.f32 %v2998, 0.01
      %v3015 = vmul.f32 %v2999, 0.01
      %v3016 = vmul.f32 %v3000, 0.01
      %v3017 = vsel %vm3001, %v2993, %v3009
      %v3018 = vsel %vm3002, %v2994, %v3010
      %v3019 = vsel %vm3003, %v2995, %v3011
      %v3020 = vsel %vm3004, %v2996, %v3012
      %v3021 = vsel %vm3005, %v2997, %v3013
      %v3022 = vsel %vm3006, %v2998, %v3014
      %v3023 = vsel %vm3007, %v2999, %v3015
      %v3024 = vsel %vm3008, %v3000, %v3016
      %v3025 = vpack.c.bf16 %v3018, %v3017
      %v3026 = vpack.c.bf16 %v3020, %v3019
      %v3027 = vpack.c.bf16 %v3022, %v3021
      %v3028 = vpack.c.bf16 %v3024, %v3023
      %v3033 = vunpack.c.l.b16 %v3025
      %v3034 = vunpack.c.h.b16 %v3025
      %v3035 = vunpack.c.l.b16 %v3026
      %v3036 = vunpack.c.h.b16 %v3026
      %v3037 = vunpack.c.l.b16 %v3027
      %v3038 = vunpack.c.h.b16 %v3027
      %v3039 = vunpack.c.l.b16 %v3028
      %v3040 = vunpack.c.h.b16 %v3028
      %v3041 = vpack.c.b16 %v3033, %v3033
      %v3042 = vpack.c.b16 %v3034, %v3034
      %v3043 = vpack.c.b16 %v3035, %v3035
      %v3044 = vpack.c.b16 %v3036, %v3036
      %v3045 = vpack.c.b16 %v3037, %v3037
      %v3046 = vpack.c.b16 %v3038, %v3038
      %v3047 = vpack.c.b16 %v3039, %v3039
      %v3048 = vpack.c.b16 %v3040, %v3040
      %3057 = vst [vmem:[%s246] sm:$0xf] %v3041
      %3058 = vst [vmem:[%s246 + $0x4] sm:$0xf] %v3042
      %3059 = vst [vmem:[%s246 + $0x8] sm:$0xf] %v3043
      %3060 = vst [vmem:[%s246 + $0xc] sm:$0xf] %v3044
      %3061 = vst [vmem:[%s246 + $0x10] sm:$0xf] %v3045
      %3062 = vst [vmem:[%s246 + $0x14] sm:$0xf] %v3046
      %3063 = vst [vmem:[%s246 + $0x18] sm:$0xf] %v3047
      %3064 = vst [vmem:[%s246 + $0x1c] sm:$0xf] %v3048
      %p3065 = scmp.lt.s32.totalorder %s20, 1
      %s3066 = scalar_select %p3065, %s20, 1
      %p3067 = scmp.lt.s32.totalorder %s21, 1
      %s3068 = scalar_select %p3067, %s21, 1
      %s3069 = smul.addr %s3068, 8
      %s3070 = smul.addr %s3066, 16
      %s3071 = sadd.s32 %s3069, %s3070
      %s3072 = smul.addr %s3071, 4
      %s3073 = scalar_lea.vmem %s5, %s3072
      // Predicated region
      $region49: #{upblock_forward.4} parent=39 // pred_check
        %p3074 = pneg %p158
      $region50: #{upblock_forward.4} parent=39 // pred_check_branch
        %3076 = sbr.rel (%p3074) target = $region52
      $region51: #{upblock_forward.4} parent=39 // pred_region
        _
      $region52: #{upblock_forward.4} parent=39 // pred_fallthru
        _
    $region40: #{upblock_forward.4} parent=5 // pred_fallthru
      _
    %p3077 = scmp.le.s32.totalorder 2, %s11
    // Predicated region
    $region53: #{upblock_forward.4} parent=5 // pred_check
      %p3078 = pneg %p3077
    $region54: #{upblock_forward.4} parent=5 // pred_check_branch
      %3080 = sbr.rel (%p3078) target = $region56
    $region55: #{upblock_forward.4} parent=5 // pred_region
      %s3081 = ssub.s32 %s11, 2
      // Predicated region
      $region57: #{upblock_forward.4} parent=55 // pred_check
        %p3082 = pneg %p164
      $region58: #{upblock_forward.4} parent=55 // pred_check_branch
        %3084 = sbr.rel (%p3082) target = $region60
      $region59: #{upblock_forward.4} parent=55 // pred_region
        %p3085 = scmp.lt.s32.totalorder %s22, 1
        %s3086 = scalar_select %p3085, %s22, 1
        %p3087 = scmp.lt.s32.totalorder %s23, 1
        %s3088 = scalar_select %p3087, %s23, 1
        %s3089 = smul.addr %s3088, 8
        %s3090 = smul.addr %s3086, 16
        %s3091 = sadd.s32 %s3089, %s3090
        %s3092 = smul.addr %s3091, 4
        %s3093 = scalar_lea.vmem %s5, %s3092
      $region60: #{upblock_forward.4} parent=55 // pred_fallthru
        _
    $region56: #{upblock_forward.4} parent=5 // pred_fallthru
      _
  $region6: #{upblock_forward.4} parent=0 // loop_footer
    %s15 = sadd.s32 1, %s11
  $region7: #{upblock_forward.4} parent=0 // loop_footer_branch
    %10 = sbr.rel target = $region3
  $region8: #{upblock_forward.4} parent=0 // loop_exit
    _

// kernel: upblock_forward.5
$region0: #{upblock_forward.5}
  #allocation0 [shape = 'u32[]', space=smem, size = 0x4, offset = 0x4, fixed_abs, tag = 'smem constant byte address 0x4 - core index']
  #allocation1 [shape = 'u32[144,128]{1,0:T(1,128)}', space=vmem, size = 0x12000, scoped, tag = 'internal scratch']
  #allocation2 [shape = 'f32[6,18,128]{2,1,0:T(8,128)}', space=vmem, size = 0x12000, scoped, tag = 'scratch operand']
  %s0 = inlined_call_operand.vmem [shape: bf16[2,8,16,128], index: 0, kind: input, shape index: {}]
  %s1 = inlined_call_operand.vmem [shape: bf16[9,128,128], index: 1, kind: input, shape index: {}]
  %s2 = inlined_call_operand.vmem [shape: f32[1,128], index: 2, kind: input, shape index: {}]
  %s3 = inlined_call_operand.vmem [shape: f32[1,128], index: 3, kind: input, shape index: {}]
  %s4 = inlined_call_operand.vmem [shape: f32[1,128], index: 4, kind: input, shape index: {}]
  %s5 = inlined_call_operand.vmem [shape: f32[2,2,64,128], index: 5, kind: output, shape index: {}]
  %s6 = sld [smem:[#allocation0]]
  $region61: #{upblock_forward.5} parent=0
    _
  %s8 = ssub.s32 1, %s6
  %s9 = scalar_select 0, %s8, %s6
  loop: start=0, step=1, limit=6
  $region2: #{upblock_forward.5} parent=0 // loop_pre_header
    _
  $region3: #{upblock_forward.5} parent=0 // loop_header
    %s11 = sphi 0, %s15
    %p12 = scmp.ge.s32.totalorder %s11, 6
    %s18 = sphi 0, %s30
    %s19 = sphi 0, %s26
    %s20 = sphi 0, %s18
    %s21 = sphi 0, %s19
    %s22 = sphi 0, %s20
    %s23 = sphi 0, %s21
    %s33 = sphi 0, %s35
    %s36 = sphi 0, %s33
    %s37 = sphi 0, %s36
    %s53 = sphi 0, %s37
    %s57 = sphi 0, %s57
    %s59 = sphi 0, %s57
    %s60 = sphi 0, %s59
    %s74 = sphi 0, %s60
    %s78 = sphi 0, %s78
    %s80 = sphi 0, %s78
    %s81 = sphi 0, %s80
    %s95 = sphi 0, %s81
    %s99 = sphi 0, %s99
    %s101 = sphi 0, %s99
    %s102 = sphi 0, %s101
    %s116 = sphi 0, %s102
    %s120 = sphi 0, %s120
    %s122 = sphi 0, %s120
    %s123 = sphi 0, %s122
    %s137 = sphi 0, %s123
    %s145 = sphi 0, %s147
    %s148 = sphi 0, %s145
    %s149 = sphi 0, %s148
    %s165 = sphi 0, %s149
  $region4: #{upblock_forward.5} parent=0 // loop_header_branch
    %14 = sbr.rel (%p12) target = $region8
  $region5: #{upblock_forward.5} parent=0 // loop_body
    %s16 = ssub.s32 %s11, 1
    %s17 = ssub.s32 %s11, 2
    %s24 = sadd.s32 1, %s19
    %p25 = scmp.ge.s32.totalorder %s24, 2
    %s26 = scalar_select %p25, 0, %s24
    %s27 = sadd.s32 1, %s18
    %s28 = scalar_select %p25, %s27, %s18
    %p29 = scmp.ge.s32.totalorder %s28, 2
    %s30 = scalar_select %p29, 0, %s28
    %s31 = ssub.s32 %s18, %s30
    %p32 = scmp.eq.s32.totalorder %s31, 0
    %s34 = sadd.s32 %s33, 1
    %s35 = scalar_select %p32, %s33, %s34
    %p38 = pneg %p32
    %p39 = scmp.eq.s32.totalorder %s11, 3
    %p40 = por %p38, %p39
    %p41 = scmp.ne.s32.totalorder %s33, %s36
    %p42 = scmp.eq.s32.totalorder %s11, 0
    %p43 = por %p41, %p42
    %p44 = scmp.ne.s32.totalorder %s33, %s36
    %p45 = scmp.eq.s32.totalorder %s16, 3
    %p46 = por %p44, %p45
    %p47 = scmp.ne.s32.totalorder %s36, %s37
    %p48 = scmp.eq.s32.totalorder %s16, 0
    %p49 = por %p47, %p48
    %p50 = scmp.ne.s32.totalorder %s36, %s37
    %p51 = scmp.eq.s32.totalorder %s17, 3
    %p52 = por %p50, %p51
    %p54 = scmp.ne.s32.totalorder %s37, %s53
    %p55 = scmp.eq.s32.totalorder %s17, 0
    %p56 = por %p54, %p55
    %s58 = sadd.s32 %s57, 1
    %p61 = scmp.eq.s32.totalorder %s11, 3
    %p62 = scmp.ne.s32.totalorder %s57, %s59
    %p63 = scmp.eq.s32.totalorder %s11, 0
    %p64 = por %p62, %p63
    %p65 = scmp.ne.s32.totalorder %s57, %s59
    %p66 = scmp.eq.s32.totalorder %s16, 3
    %p67 = por %p65, %p66
    %p68 = scmp.ne.s32.totalorder %s59, %s60
    %p69 = scmp.eq.s32.totalorder %s16, 0
    %p70 = por %p68, %p69
    %p71 = scmp.ne.s32.totalorder %s59, %s60
    %p72 = scmp.eq.s32.totalorder %s17, 3
    %p73 = por %p71, %p72
    %p75 = scmp.ne.s32.totalorder %s60, %s74
    %p76 = scmp.eq.s32.totalorder %s17, 0
    %p77 = por %p75, %p76
    %s79 = sadd.s32 %s78, 1
    %p82 = scmp.eq.s32.totalorder %s11, 3
    %p83 = scmp.ne.s32.totalorder %s78, %s80
    %p84 = scmp.eq.s32.totalorder %s11, 0
    %p85 = por %p83, %p84
    %p86 = scmp.ne.s32.totalorder %s78, %s80
    %p87 = scmp.eq.s32.totalorder %s16, 3
    %p88 = por %p86, %p87
    %p89 = scmp.ne.s32.totalorder %s80, %s81
    %p90 = scmp.eq.s32.totalorder %s16, 0
    %p91 = por %p89, %p90
    %p92 = scmp.ne.s32.totalorder %s80, %s81
    %p93 = scmp.eq.s32.totalorder %s17, 3
    %p94 = por %p92, %p93
    %p96 = scmp.ne.s32.totalorder %s81, %s95
    %p97 = scmp.eq.s32.totalorder %s17, 0
    %p98 = por %p96, %p97
    %s100 = sadd.s32 %s99, 1
    %p103 = scmp.eq.s32.totalorder %s11, 3
    %p104 = scmp.ne.s32.totalorder %s99, %s101
    %p105 = scmp.eq.s32.totalorder %s11, 0
    %p106 = por %p104, %p105
    %p107 = scmp.ne.s32.totalorder %s99, %s101
    %p108 = scmp.eq.s32.totalorder %s16, 3
    %p109 = por %p107, %p108
    %p110 = scmp.ne.s32.totalorder %s101, %s102
    %p111 = scmp.eq.s32.totalorder %s16, 0
    %p112 = por %p110, %p111
    %p113 = scmp.ne.s32.totalorder %s101, %s102
    %p114 = scmp.eq.s32.totalorder %s17, 3
    %p115 = por %p113, %p114
    %p117 = scmp.ne.s32.totalorder %s102, %s116
    %p118 = scmp.eq.s32.totalorder %s17, 0
    %p119 = por %p117, %p118
    %s121 = sadd.s32 %s120, 1
    %p124 = scmp.eq.s32.totalorder %s11, 3
    %p125 = scmp.ne.s32.totalorder %s120, %s122
    %p126 = scmp.eq.s32.totalorder %s11, 0
    %p127 = por %p125, %p126
    %p128 = scmp.ne.s32.totalorder %s120, %s122
    %p129 = scmp.eq.s32.totalorder %s16, 3
    %p130 = por %p128, %p129
    %p131 = scmp.ne.s32.totalorder %s122, %s123
    %p132 = scmp.eq.s32.totalorder %s16, 0
    %p133 = por %p131, %p132
    %p134 = scmp.ne.s32.totalorder %s122, %s123
    %p135 = scmp.eq.s32.totalorder %s17, 3
    %p136 = por %p134, %p135
    %p138 = scmp.ne.s32.totalorder %s123, %s137
    %p139 = scmp.eq.s32.totalorder %s17, 0
    %p140 = por %p138, %p139
    %s141 = ssub.s32 %s18, %s30
    %s142 = ssub.s32 %s19, %s26
    %s143 = sor.u32 %s141, %s142
    %p144 = scmp.eq.s32.totalorder %s143, 0
    %s146 = sadd.s32 %s145, 1
    %s147 = scalar_select %p144, %s145, %s146
    %p150 = pneg %p144
    %p151 = scmp.eq.s32.totalorder %s11, 3
    %p152 = por %p150, %p151
    %p153 = scmp.ne.s32.totalorder %s145, %s148
    %p154 = scmp.eq.s32.totalorder %s11, 0
    %p155 = por %p153, %p154
    %p156 = scmp.ne.s32.totalorder %s145, %s148
    %p157 = scmp.eq.s32.totalorder %s16, 3
    %p158 = por %p156, %p157
    %p159 = scmp.ne.s32.totalorder %s148, %s149
    %p160 = scmp.eq.s32.totalorder %s16, 0
    %p161 = por %p159, %p160
    %p162 = scmp.ne.s32.totalorder %s148, %s149
    %p163 = scmp.eq.s32.totalorder %s17, 3
    %p164 = por %p162, %p163
    %p166 = scmp.ne.s32.totalorder %s149, %s165
    %p167 = scmp.eq.s32.totalorder %s17, 0
    %p168 = por %p166, %p167
    %p169 = scmp.le.s32.totalorder 1, %s11
    %p170 = scmp.lt.s32.totalorder %s11, 5
    %p171 = pnand %p169, %p170
    %p172 = pneg %p171
    // Predicated region
    $region9: #{upblock_forward.5} parent=5 // pred_check
      _
    $region10: #{upblock_forward.5} parent=5 // pred_check_branch
      %174 = sbr.rel (%p171) target = $region12
    $region11: #{upblock_forward.5} parent=5 // pred_region
      %s175 = ssub.s32 %s11, 1
      // Predicated region
      $region13: #{upblock_forward.5} parent=11 // pred_check
        %p176 = pneg %p70
      $region14: #{upblock_forward.5} parent=11 // pred_check_branch
        %178 = sbr.rel (%p176) target = $region16
      $region15: #{upblock_forward.5} parent=11 // pred_region
        _
      $region16: #{upblock_forward.5} parent=11 // pred_fallthru
        _
      // Predicated region
      $region17: #{upblock_forward.5} parent=11 // pred_check
        %p179 = pneg %p91
      $region18: #{upblock_forward.5} parent=11 // pred_check_branch
        %181 = sbr.rel (%p179) target = $region20
      $region19: #{upblock_forward.5} parent=11 // pred_region
        _
      $region20: #{upblock_forward.5} parent=11 // pred_fallthru
        _
      // Predicated region
      $region21: #{upblock_forward.5} parent=11 // pred_check
        %p182 = pneg %p112
      $region22: #{upblock_forward.5} parent=11 // pred_check_branch
        %184 = sbr.rel (%p182) target = $region24
      $region23: #{upblock_forward.5} parent=11 // pred_region
        _
      $region24: #{upblock_forward.5} parent=11 // pred_fallthru
        _
      // Predicated region
      $region25: #{upblock_forward.5} parent=11 // pred_check
        %p185 = pneg %p133
      $region26: #{upblock_forward.5} parent=11 // pred_check_branch
        %187 = sbr.rel (%p185) target = $region28
      $region27: #{upblock_forward.5} parent=11 // pred_region
        _
      $region28: #{upblock_forward.5} parent=11 // pred_fallthru
        _
    $region12: #{upblock_forward.5} parent=5 // pred_fallthru
      _
    %p188 = scmp.lt.s32.totalorder %s11, 4
    // Predicated region
    $region29: #{upblock_forward.5} parent=5 // pred_check
      %p189 = pneg %p188
    $region30: #{upblock_forward.5} parent=5 // pred_check_branch
      %191 = sbr.rel (%p189) target = $region32
    $region31: #{upblock_forward.5} parent=5 // pred_region
      // Predicated region
      $region33: #{upblock_forward.5} parent=31 // pred_check
        %p192 = pneg %p43
      $region34: #{upblock_forward.5} parent=31 // pred_check_branch
        %194 = sbr.rel (%p192) target = $region36
      $region35: #{upblock_forward.5} parent=31 // pred_region
        %p195 = scmp.lt.s32.totalorder %s18, 1
        %s196 = scalar_select %p195, %s18, 1
        %s197 = smul.addr %s196, 16
        %s198 = smul.addr %s197, 4
        %s199 = scalar_lea.vmem %s0, %s198
      $region36: #{upblock_forward.5} parent=31 // pred_fallthru
        _
    $region32: #{upblock_forward.5} parent=5 // pred_fallthru
      _
    %p200 = scmp.le.s32.totalorder 1, %s11
    %p201 = scmp.lt.s32.totalorder %s11, 5
    %p202 = pnand %p200, %p201
    %p203 = pneg %p202
    // Predicated region
    $region37: #{upblock_forward.5} parent=5 // pred_check
      _
    $region38: #{upblock_forward.5} parent=5 // pred_check_branch
      %205 = sbr.rel (%p202) target = $region40
    $region39: #{upblock_forward.5} parent=5 // pred_region
      %s206 = ssub.s32 %s11, 1
      %p207 = scmp.lt.s32.totalorder %s20, 1
      %s208 = scalar_select %p207, %s20, 1
      %s209 = smul.addr %s208, 16
      %s210 = smul.addr %s209, 4
      %s211 = scalar_lea.vmem %s0, %s210
      %p212 = pneg %p49
      %p213 = pneg %p46
      %p214 = pneg %p70
      %p215 = pneg %p67
      %p216 = pneg %p91
      %p217 = pneg %p88
      %p218 = pneg %p112
      %p219 = pneg %p109
      %p220 = pneg %p133
      %p221 = pneg %p130
      %p222 = pneg %p161
      %p223 = pneg %p158
      %p224 = scmp.lt.s32.totalorder %s20, 1
      %s225 = scalar_select %p224, %s20, 1
      %p226 = scmp.lt.s32.totalorder %s21, 1
      %s227 = scalar_select %p226, %s21, 1
      %s228 = smul.addr %s227, 8
      %s229 = smul.addr %s225, 16
      %s230 = sadd.s32 %s228, %s229
      %s231 = smul.addr %s230, 8
      %s232 = scalar_lea.vmem %s5, %s231
      %p233 = scmp.lt.s32.totalorder %s20, 1
      %s234 = scalar_select %p233, %s20, 1
      %s235 = smul.addr %s234, 16
      %s236 = smul.addr %s235, 4
      %s237 = scalar_lea.vmem %s0, %s236
      %p238 = scmp.lt.s32.totalorder %s20, 1
      %s239 = scalar_select %p238, %s20, 1
      %p240 = scmp.lt.s32.totalorder %s21, 1
      %s241 = scalar_select %p240, %s21, 1
      %s242 = smul.addr %s241, 8
      %s243 = smul.addr %s239, 16
      %s244 = sadd.s32 %s242, %s243
      %s245 = smul.addr %s244, 8
      %s246 = scalar_lea.vmem %s5, %s245
      %s248 = smul.u32 %s21, 4
      %249 = vst [vmem:[#allocation2] sm:$0xff] 0.0
      %250 = vst [vmem:[#allocation2 + $0x8] sm:$0xff] 0.0
      %251 = vst [vmem:[#allocation2 + $0x10] sm:$0x3] 0.0
      %252 = vst [vmem:[#allocation2 + $0x18] sm:$0xff] 0.0
      %253 = vst [vmem:[#allocation2 + $0x20] sm:$0xff] 0.0
      %254 = vst [vmem:[#allocation2 + $0x28] sm:$0x3] 0.0
      %255 = vst [vmem:[#allocation2 + $0x30] sm:$0xff] 0.0
      %256 = vst [vmem:[#allocation2 + $0x38] sm:$0xff] 0.0
      %257 = vst [vmem:[#allocation2 + $0x40] sm:$0x3] 0.0
      %258 = vst [vmem:[#allocation2 + $0x48] sm:$0xff] 0.0
      %259 = vst [vmem:[#allocation2 + $0x50] sm:$0xff] 0.0
      %260 = vst [vmem:[#allocation2 + $0x58] sm:$0x3] 0.0
      %261 = vst [vmem:[#allocation2 + $0x60] sm:$0xff] 0.0
      %262 = vst [vmem:[#allocation2 + $0x68] sm:$0xff] 0.0
      %263 = vst [vmem:[#allocation2 + $0x70] sm:$0x3] 0.0
      %264 = vst [vmem:[#allocation2 + $0x78] sm:$0xff] 0.0
      %265 = vst [vmem:[#allocation2 + $0x80] sm:$0xff] 0.0
      %266 = vst [vmem:[#allocation2 + $0x88] sm:$0x3] 0.0
      %s267 = smul.u32 %s248, 2
      %s268 = smul.addr %s267, 4
      %s269 = scalar_lea.vmem %s237, %s268
      %v270 = vld [vmem:[%s269] sm:$0xf]
      %v271 = vld [vmem:[%s269 + $0x4] sm:$0xf]
      %v272 = vld [vmem:[%s269 + $0x8] sm:$0xf]
      %v273 = vld [vmem:[%s269 + $0xc] sm:$0xf]
      %v274 = vld [vmem:[%s269 + $0x10] sm:$0xf]
      %v275 = vld [vmem:[%s269 + $0x14] sm:$0xf]
      %v276 = vld [vmem:[%s269 + $0x18] sm:$0xf]
      %v277 = vld [vmem:[%s269 + $0x1c] sm:$0xf]
      %v278 = vunpack.c.l.bf16 %v270
      %v279 = vunpack.c.l.bf16 %v271
      %v280 = vunpack.c.l.bf16 %v272
      %v281 = vunpack.c.l.bf16 %v273
      %v282 = vunpack.c.l.bf16 %v274
      %v283 = vunpack.c.l.bf16 %v275
      %v284 = vunpack.c.l.bf16 %v276
      %v285 = vunpack.c.l.bf16 %v277
      %s286 = scalar_lea.vmem [#allocation2], 24
      %287 = vst [vmem:[%s286 + $0x1] sm:$0xff] %v278
      %288 = vst [vmem:[%s286 + $0x9] sm:$0xff] %v279
      %289 = vst [vmem:[%s286 + $0x19] sm:$0xff] %v280
      %290 = vst [vmem:[%s286 + $0x21] sm:$0xff] %v281
      %291 = vst [vmem:[%s286 + $0x31] sm:$0xff] %v282
      %292 = vst [vmem:[%s286 + $0x39] sm:$0xff] %v283
      %293 = vst [vmem:[%s286 + $0x49] sm:$0xff] %v284
      %294 = vst [vmem:[%s286 + $0x51] sm:$0xff] %v285
      %p295 = scmp.gt.s32.totalorder %s21, 0
      // Predicated region
      $region41: #{upblock_forward.5} parent=39 // pred_check
        %p296 = pneg %p295
      $region42: #{upblock_forward.5} parent=39 // pred_check_branch
        %298 = sbr.rel (%p296) target = $region44
      $region43: #{upblock_forward.5} parent=39 // pred_region
        %s299 = ssub.s32 %s248, 1
        %s300 = smul.u32 %s299, 2
        %s301 = smul.addr %s300, 4
        %s302 = scalar_lea.vmem %s237, %s301
        %v303 = vld [vmem:[%s302] sm:$0xf]
        %v304 = vld [vmem:[%s302 + $0x4] sm:$0xf]
        %v305 = vunpack.c.l.bf16 %v303
        %v306 = vunpack.c.l.bf16 %v304
        %307 = vst [vmem:[#allocation2 + $0x1] sm:$0xff] %v305
        %308 = vst [vmem:[#allocation2 + $0x9] sm:$0xff] %v306
      $region44: #{upblock_forward.5} parent=39 // pred_fallthru
        _
      %s309 = sadd.s32 %s21, 1
      %p310 = scmp.lt.s32.totalorder %s309, 2
      // Predicated region
      $region45: #{upblock_forward.5} parent=39 // pred_check
        %p311 = pneg %p310
      $region46: #{upblock_forward.5} parent=39 // pred_check_branch
        %313 = sbr.rel (%p311) target = $region48
      $region47: #{upblock_forward.5} parent=39 // pred_region
        %s314 = sadd.s32 %s248, 4
        %s315 = smul.u32 %s314, 2
        %s316 = smul.addr %s315, 4
        %s317 = scalar_lea.vmem %s237, %s316
        %v318 = vld [vmem:[%s317] sm:$0xf]
        %v319 = vld [vmem:[%s317 + $0x4] sm:$0xf]
        %v320 = vunpack.c.l.bf16 %v318
        %v321 = vunpack.c.l.bf16 %v319
        %s322 = scalar_lea.vmem [#allocation2], 120
        %323 = vst [vmem:[%s322 + $0x1] sm:$0xff] %v320
        %324 = vst [vmem:[%s322 + $0x9] sm:$0xff] %v321
      $region48: #{upblock_forward.5} parent=39 // pred_fallthru
        _
      %v325 = vld [vmem:[#allocation2] sm:$0xff]
      %v326 = vld [vmem:[#allocation2 + $0x8] sm:$0xff]
      %v327 = vld [vmem:[#allocation2 + $0x18] sm:$0xff]
      %v328 = vld [vmem:[#allocation2 + $0x20] sm:$0xff]
      %v329 = vld [vmem:[#allocation2 + $0x30] sm:$0xff]
      %v330 = vld [vmem:[#allocation2 + $0x38] sm:$0xff]
      %v331 = vld [vmem:[#allocation2 + $0x48] sm:$0xff]
      %v332 = vld [vmem:[#allocation2 + $0x50] sm:$0xff]
      %v333 = vpack.c.bf16 %v326, %v325
      %v334 = vpack.c.bf16 %v328, %v327
      %v335 = vpack.c.bf16 %v330, %v329
      %v336 = vpack.c.bf16 %v332, %v331
      %v337 = vld [vmem:[%s1] sm:$0xf]
      %v338 = vld [vmem:[%s1 + $0x4] sm:$0xf]
      %v339 = vld [vmem:[%s1 + $0x8] sm:$0xf]
      %v340 = vld [vmem:[%s1 + $0xc] sm:$0xf]
      %v341 = vld [vmem:[%s1 + $0x10] sm:$0xf]
      %v342 = vld [vmem:[%s1 + $0x14] sm:$0xf]
      %v343 = vld [vmem:[%s1 + $0x18] sm:$0xf]
      %v344 = vld [vmem:[%s1 + $0x1c] sm:$0xf]
      %v345 = vld [vmem:[%s1 + $0x20] sm:$0xf]
      %v346 = vld [vmem:[%s1 + $0x24] sm:$0xf]
      %v347 = vld [vmem:[%s1 + $0x28] sm:$0xf]
      %v348 = vld [vmem:[%s1 + $0x2c] sm:$0xf]
      %v349 = vld [vmem:[%s1 + $0x30] sm:$0xf]
      %v350 = vld [vmem:[%s1 + $0x34] sm:$0xf]
      %v351 = vld [vmem:[%s1 + $0x38] sm:$0xf]
      %v352 = vld [vmem:[%s1 + $0x3c] sm:$0xf]
      %v353 = vld [vmem:[#allocation2 + $0x1] sm:$0xff]
      %v354 = vld [vmem:[#allocation2 + $0x9] sm:$0xff]
      %v355 = vld [vmem:[#allocation2 + $0x19] sm:$0xff]
      %v356 = vld [vmem:[#allocation2 + $0x21] sm:$0xff]
      %v357 = vld [vmem:[#allocation2 + $0x31] sm:$0xff]
      %v358 = vld [vmem:[#allocation2 + $0x39] sm:$0xff]
      %v359 = vld [vmem:[#allocation2 + $0x49] sm:$0xff]
      %v360 = vld [vmem:[#allocation2 + $0x51] sm:$0xff]
      %v361 = vpack.c.bf16 %v354, %v353
      %v362 = vpack.c.bf16 %v356, %v355
      %v363 = vpack.c.bf16 %v358, %v357
      %v364 = vpack.c.bf16 %v360, %v359
      %s365 = scalar_lea.vmem %s1, 64
      %v366 = vld [vmem:[%s365] sm:$0xf]
      %v367 = vld [vmem:[%s365 + $0x4] sm:$0xf]
      %v368 = vld [vmem:[%s365 + $0x8] sm:$0xf]
      %v369 = vld [vmem:[%s365 + $0xc] sm:$0xf]
      %v370 = vld [vmem:[%s365 + $0x10] sm:$0xf]
      %v371 = vld [vmem:[%s365 + $0x14] sm:$0xf]
      %v372 = vld [vmem:[%s365 + $0x18] sm:$0xf]
      %v373 = vld [vmem:[%s365 + $0x1c] sm:$0xf]
      %v374 = vld [vmem:[%s365 + $0x20] sm:$0xf]
      %v375 = vld [vmem:[%s365 + $0x24] sm:$0xf]
      %v376 = vld [vmem:[%s365 + $0x28] sm:$0xf]
      %v377 = vld [vmem:[%s365 + $0x2c] sm:$0xf]
      %v378 = vld [vmem:[%s365 + $0x30] sm:$0xf]
      %v379 = vld [vmem:[%s365 + $0x34] sm:$0xf]
      %v380 = vld [vmem:[%s365 + $0x38] sm:$0xf]
      %v381 = vld [vmem:[%s365 + $0x3c] sm:$0xf]
      %v398 = vunpack.c.l.b16 %v366
      %v399 = vunpack.c.l.b16 %v367
      %v400 = vunpack.c.l.b16 %v368
      %v401 = vunpack.c.l.b16 %v369
      %v402 = vunpack.c.l.b16 %v370
      %v403 = vunpack.c.l.b16 %v371
      %v404 = vunpack.c.l.b16 %v372
      %v405 = vunpack.c.l.b16 %v373
      %v406 = vunpack.c.l.b16 %v374
      %v407 = vunpack.c.l.b16 %v375
      %v408 = vunpack.c.l.b16 %v376
      %v409 = vunpack.c.l.b16 %v377
      %v410 = vunpack.c.l.b16 %v378
      %v411 = vunpack.c.l.b16 %v379
      %v412 = vunpack.c.l.b16 %v380
      %v413 = vunpack.c.l.b16 %v381
      %v414 = vpack.c.b16 %v399, %v398
      %v415 = vpack.c.b16 %v401, %v400
      %v416 = vpack.c.b16 %v403, %v402
      %v417 = vpack.c.b16 %v405, %v404
      %v418 = vpack.c.b16 %v407, %v406
      %v419 = vpack.c.b16 %v409, %v408
      %v420 = vpack.c.b16 %v411, %v410
      %v421 = vpack.c.b16 %v413, %v412
      %430 = vmatprep.subr.bf16.mxu0 0
      %431 = vmatpush1.bf16.msra.mxu0 %v421
      %432 = vmatprep.subr.bf16.mxu0 0
      %433 = vmatpush1.bf16.msra.mxu0 %v420
      %434 = vmatprep.subr.bf16.mxu0 0
      %435 = vmatpush1.bf16.msra.mxu0 %v419
      %436 = vmatprep.subr.bf16.mxu0 0
      %437 = vmatpush1.bf16.msra.mxu0 %v418
      %438 = vmatprep.subr.bf16.mxu0 0
      %439 = vmatpush1.bf16.msra.mxu0 %v417
      %440 = vmatprep.subr.bf16.mxu0 0
      %441 = vmatpush1.bf16.msra.mxu0 %v416
      %442 = vmatprep.subr.bf16.mxu0 0
      %443 = vmatpush1.bf16.msra.mxu0 %v415
      %444 = vmatprep.subr.bf16.mxu0 0
      %445 = vmatpush1.bf16.msra.mxu0 %v414
      %446 = vmatprep.subr.bf16.mxu0 0
      %447 = vmatpush2.bf16.msra.mxu0 0
      %448 = vmatprep.subr.bf16.mxu0 0
      %449 = vmatpush2.bf16.msra.mxu0 0
      %450 = vmatprep.subr.bf16.mxu0 0
      %451 = vmatpush2.bf16.msra.mxu0 0
      %452 = vmatprep.subr.bf16.mxu0 0
      %453 = vmatpush2.bf16.msra.mxu0 0
      %454 = vmatprep.subr.bf16.mxu0 0
      %455 = vmatpush2.bf16.msra.mxu0 0
      %456 = vmatprep.subr.bf16.mxu0 0
      %457 = vmatpush2.bf16.msra.mxu0 0
      %458 = vmatprep.subr.bf16.mxu0 0
      %459 = vmatpush2.bf16.msra.mxu0 0
      %460 = vmatprep.subr.bf16.mxu0 0
      %461 = vmatpush2.bf16.msra.mxu0 0
      %462 = vmatprep.mubr.bf16.mxu0 0
      %463 = vmatmul.mubr.bf16.gmra.mxu0 %v361
      %v464 = vpop.f32.mrf.mxu0
      %v465 = vadd.f32 0.0, %v464
      %v466 = vpop.f32.mrf.mxu0
      %v467 = vpop.f32.mrf.mxu0
      %v468 = vadd.f32 0.0, %v467
      %v469 = vpop.f32.mrf.mxu0
      %470 = vmatprep.mubr.bf16.mxu0 0
      %471 = vmatmul.mubr.bf16.gmra.mxu0 %v362
      %v472 = vpop.f32.mrf.mxu0
      %v473 = vadd.f32 0.0, %v472
      %v474 = vpop.f32.mrf.mxu0
      %v475 = vpop.f32.mrf.mxu0
      %v476 = vadd.f32 0.0, %v475
      %v477 = vpop.f32.mrf.mxu0
      %478 = vmatprep.mubr.bf16.mxu0 0
      %479 = vmatmul.mubr.bf16.gmra.mxu0 %v363
      %v480 = vpop.f32.mrf.mxu0
      %v481 = vadd.f32 0.0, %v480
      %v482 = vpop.f32.mrf.mxu0
      %v483 = vpop.f32.mrf.mxu0
      %v484 = vadd.f32 0.0, %v483
      %v485 = vpop.f32.mrf.mxu0
      %486 = vmatprep.mubr.bf16.mxu0 0
      %487 = vmatmul.mubr.bf16.gmra.mxu0 %v364
      %v488 = vpop.f32.mrf.mxu0
      %v489 = vadd.f32 0.0, %v488
      %v490 = vpop.f32.mrf.mxu0
      %v491 = vpop.f32.mrf.mxu0
      %v492 = vadd.f32 0.0, %v491
      %v493 = vpop.f32.mrf.mxu0
      %494 = vdwg.mxu0
      %v511 = vunpack.c.l.b16 %v337
      %v512 = vunpack.c.l.b16 %v338
      %v513 = vunpack.c.l.b16 %v339
      %v514 = vunpack.c.l.b16 %v340
      %v515 = vunpack.c.l.b16 %v341
      %v516 = vunpack.c.l.b16 %v342
      %v517 = vunpack.c.l.b16 %v343
      %v518 = vunpack.c.l.b16 %v344
      %v519 = vunpack.c.l.b16 %v345
      %v520 = vunpack.c.l.b16 %v346
      %v521 = vunpack.c.l.b16 %v347
      %v522 = vunpack.c.l.b16 %v348
      %v523 = vunpack.c.l.b16 %v349
      %v524 = vunpack.c.l.b16 %v350
      %v525 = vunpack.c.l.b16 %v351
      %v526 = vunpack.c.l.b16 %v352
      %v527 = vpack.c.b16 %v512, %v511
      %v528 = vpack.c.b16 %v514, %v513
      %v529 = vpack.c.b16 %v516, %v515
      %v530 = vpack.c.b16 %v518, %v517
      %v531 = vpack.c.b16 %v520, %v519
      %v532 = vpack.c.b16 %v522, %v521
      %v533 = vpack.c.b16 %v524, %v523
      %v534 = vpack.c.b16 %v526, %v525
      %543 = vmatprep.subr.bf16.mxu0 0
      %544 = vmatpush1.bf16.msra.mxu0 %v534
      %545 = vmatprep.subr.bf16.mxu0 0
      %546 = vmatpush1.bf16.msra.mxu0 %v533
      %547 = vmatprep.subr.bf16.mxu0 0
      %548 = vmatpush1.bf16.msra.mxu0 %v532
      %549 = vmatprep.subr.bf16.mxu0 0
      %550 = vmatpush1.bf16.msra.mxu0 %v531
      %551 = vmatprep.subr.bf16.mxu0 0
      %552 = vmatpush1.bf16.msra.mxu0 %v530
      %553 = vmatprep.subr.bf16.mxu0 0
      %554 = vmatpush1.bf16.msra.mxu0 %v529
      %555 = vmatprep.subr.bf16.mxu0 0
      %556 = vmatpush1.bf16.msra.mxu0 %v528
      %557 = vmatprep.subr.bf16.mxu0 0
      %558 = vmatpush1.bf16.msra.mxu0 %v527
      %559 = vmatprep.subr.bf16.mxu0 0
      %560 = vmatpush2.bf16.msra.mxu0 0
      %561 = vmatprep.subr.bf16.mxu0 0
      %562 = vmatpush2.bf16.msra.mxu0 0
      %563 = vmatprep.subr.bf16.mxu0 0
      %564 = vmatpush2.bf16.msra.mxu0 0
      %565 = vmatprep.subr.bf16.mxu0 0
      %566 = vmatpush2.bf16.msra.mxu0 0
      %567 = vmatprep.subr.bf16.mxu0 0
      %568 = vmatpush2.bf16.msra.mxu0 0
      %569 = vmatprep.subr.bf16.mxu0 0
      %570 = vmatpush2.bf16.msra.mxu0 0
      %571 = vmatprep.subr.bf16.mxu0 0
      %572 = vmatpush2.bf16.msra.mxu0 0
      %573 = vmatprep.subr.bf16.mxu0 0
      %574 = vmatpush2.bf16.msra.mxu0 0
      %575 = vmatprep.mubr.bf16.mxu0 0
      %576 = vmatmul.mubr.bf16.gmra.mxu0 %v333
      %v577 = vpop.f32.mrf.mxu0
      %v578 = vadd.f32 %v465, %v577
      %v579 = vpop.f32.mrf.mxu0
      %v580 = vpop.f32.mrf.mxu0
      %v581 = vadd.f32 %v468, %v580
      %v582 = vpop.f32.mrf.mxu0
      %583 = vmatprep.mubr.bf16.mxu0 0
      %584 = vmatmul.mubr.bf16.gmra.mxu0 %v334
      %v585 = vpop.f32.mrf.mxu0
      %v586 = vadd.f32 %v473, %v585
      %v587 = vpop.f32.mrf.mxu0
      %v588 = vpop.f32.mrf.mxu0
      %v589 = vadd.f32 %v476, %v588
      %v590 = vpop.f32.mrf.mxu0
      %591 = vmatprep.mubr.bf16.mxu0 0
      %592 = vmatmul.mubr.bf16.gmra.mxu0 %v335
      %v593 = vpop.f32.mrf.mxu0
      %v594 = vadd.f32 %v481, %v593
      %v595 = vpop.f32.mrf.mxu0
      %v596 = vpop.f32.mrf.mxu0
      %v597 = vadd.f32 %v484, %v596
      %v598 = vpop.f32.mrf.mxu0
      %599 = vmatprep.mubr.bf16.mxu0 0
      %600 = vmatmul.mubr.bf16.gmra.mxu0 %v336
      %v601 = vpop.f32.mrf.mxu0
      %v602 = vadd.f32 %v489, %v601
      %v603 = vpop.f32.mrf.mxu0
      %v604 = vpop.f32.mrf.mxu0
      %v605 = vadd.f32 %v492, %v604
      %v606 = vpop.f32.mrf.mxu0
      %607 = vdwg.mxu0
      %v608 = vld [vmem:[#allocation2 + $0x2] sm:$0xff]
      %v609 = vld [vmem:[#allocation2 + $0xa] sm:$0xff]
      %v610 = vld [vmem:[#allocation2 + $0x1a] sm:$0xff]
      %v611 = vld [vmem:[#allocation2 + $0x22] sm:$0xff]
      %v612 = vld [vmem:[#allocation2 + $0x32] sm:$0xff]
      %v613 = vld [vmem:[#allocation2 + $0x3a] sm:$0xff]
      %v614 = vld [vmem:[#allocation2 + $0x4a] sm:$0xff]
      %v615 = vld [vmem:[#allocation2 + $0x52] sm:$0xff]
      %v616 = vpack.c.bf16 %v609, %v608
      %v617 = vpack.c.bf16 %v611, %v610
      %v618 = vpack.c.bf16 %v613, %v612
      %v619 = vpack.c.bf16 %v615, %v614
      %s620 = scalar_lea.vmem %s1, 128
      %v621 = vld [vmem:[%s620] sm:$0xf]
      %v622 = vld [vmem:[%s620 + $0x4] sm:$0xf]
      %v623 = vld [vmem:[%s620 + $0x8] sm:$0xf]
      %v624 = vld [vmem:[%s620 + $0xc] sm:$0xf]
      %v625 = vld [vmem:[%s620 + $0x10] sm:$0xf]
      %v626 = vld [vmem:[%s620 + $0x14] sm:$0xf]
      %v627 = vld [vmem:[%s620 + $0x18] sm:$0xf]
      %v628 = vld [vmem:[%s620 + $0x1c] sm:$0xf]
      %v629 = vld [vmem:[%s620 + $0x20] sm:$0xf]
      %v630 = vld [vmem:[%s620 + $0x24] sm:$0xf]
      %v631 = vld [vmem:[%s620 + $0x28] sm:$0xf]
      %v632 = vld [vmem:[%s620 + $0x2c] sm:$0xf]
      %v633 = vld [vmem:[%s620 + $0x30] sm:$0xf]
      %v634 = vld [vmem:[%s620 + $0x34] sm:$0xf]
      %v635 = vld [vmem:[%s620 + $0x38] sm:$0xf]
      %v636 = vld [vmem:[%s620 + $0x3c] sm:$0xf]
      %v653 = vunpack.c.l.b16 %v621
      %v654 = vunpack.c.l.b16 %v622
      %v655 = vunpack.c.l.b16 %v623
      %v656 = vunpack.c.l.b16 %v624
      %v657 = vunpack.c.l.b16 %v625
      %v658 = vunpack.c.l.b16 %v626
      %v659 = vunpack.c.l.b16 %v627
      %v660 = vunpack.c.l.b16 %v628
      %v661 = vunpack.c.l.b16 %v629
      %v662 = vunpack.c.l.b16 %v630
      %v663 = vunpack.c.l.b16 %v631
      %v664 = vunpack.c.l.b16 %v632
      %v665 = vunpack.c.l.b16 %v633
      %v666 = vunpack.c.l.b16 %v634
      %v667 = vunpack.c.l.b16 %v635
      %v668 = vunpack.c.l.b16 %v636
      %v669 = vpack.c.b16 %v654, %v653
      %v670 = vpack.c.b16 %v656, %v655
      %v671 = vpack.c.b16 %v658, %v657
      %v672 = vpack.c.b16 %v660, %v659
      %v673 = vpack.c.b16 %v662, %v661
      %v674 = vpack.c.b16 %v664, %v663
      %v675 = vpack.c.b16 %v666, %v665
      %v676 = vpack.c.b16 %v668, %v667
      %685 = vmatprep.subr.bf16.mxu0 0
      %686 = vmatpush1.bf16.msra.mxu0 %v676
      %687 = vmatprep.subr.bf16.mxu0 0
      %688 = vmatpush1.bf16.msra.mxu0 %v675
      %689 = vmatprep.subr.bf16.mxu0 0
      %690 = vmatpush1.bf16.msra.mxu0 %v674
      %691 = vmatprep.subr.bf16.mxu0 0
      %692 = vmatpush1.bf16.msra.mxu0 %v673
      %693 = vmatprep.subr.bf16.mxu0 0
      %694 = vmatpush1.bf16.msra.mxu0 %v672
      %695 = vmatprep.subr.bf16.mxu0 0
      %696 = vmatpush1.bf16.msra.mxu0 %v671
      %697 = vmatprep.subr.bf16.mxu0 0
      %698 = vmatpush1.bf16.msra.mxu0 %v670
      %699 = vmatprep.subr.bf16.mxu0 0
      %700 = vmatpush1.bf16.msra.mxu0 %v669
      %701 = vmatprep.subr.bf16.mxu0 0
      %702 = vmatpush2.bf16.msra.mxu0 0
      %703 = vmatprep.subr.bf16.mxu0 0
      %704 = vmatpush2.bf16.msra.mxu0 0
      %705 = vmatprep.subr.bf16.mxu0 0
      %706 = vmatpush2.bf16.msra.mxu0 0
      %707 = vmatprep.subr.bf16.mxu0 0
      %708 = vmatpush2.bf16.msra.mxu0 0
      %709 = vmatprep.subr.bf16.mxu0 0
      %710 = vmatpush2.bf16.msra.mxu0 0
      %711 = vmatprep.subr.bf16.mxu0 0
      %712 = vmatpush2.bf16.msra.mxu0 0
      %713 = vmatprep.subr.bf16.mxu0 0
      %714 = vmatpush2.bf16.msra.mxu0 0
      %715 = vmatprep.subr.bf16.mxu0 0
      %716 = vmatpush2.bf16.msra.mxu0 0
      %717 = vmatprep.mubr.bf16.mxu0 0
      %718 = vmatmul.mubr.bf16.gmra.mxu0 %v616
      %v719 = vpop.f32.mrf.mxu0
      %v720 = vadd.f32 0.0, %v719
      %v721 = vpop.f32.mrf.mxu0
      %v722 = vpop.f32.mrf.mxu0
      %v723 = vadd.f32 0.0, %v722
      %v724 = vpop.f32.mrf.mxu0
      %725 = vmatprep.mubr.bf16.mxu0 0
      %726 = vmatmul.mubr.bf16.gmra.mxu0 %v617
      %v727 = vpop.f32.mrf.mxu0
      %v728 = vadd.f32 0.0, %v727
      %v729 = vpop.f32.mrf.mxu0
      %v730 = vpop.f32.mrf.mxu0
      %v731 = vadd.f32 0.0, %v730
      %v732 = vpop.f32.mrf.mxu0
      %733 = vmatprep.mubr.bf16.mxu0 0
      %734 = vmatmul.mubr.bf16.gmra.mxu0 %v618
      %v735 = vpop.f32.mrf.mxu0
      %v736 = vadd.f32 0.0, %v735
      %v737 = vpop.f32.mrf.mxu0
      %v738 = vpop.f32.mrf.mxu0
      %v739 = vadd.f32 0.0, %v738
      %v740 = vpop.f32.mrf.mxu0
      %741 = vmatprep.mubr.bf16.mxu0 0
      %742 = vmatmul.mubr.bf16.gmra.mxu0 %v619
      %v743 = vpop.f32.mrf.mxu0
      %v744 = vadd.f32 0.0, %v743
      %v745 = vpop.f32.mrf.mxu0
      %v746 = vpop.f32.mrf.mxu0
      %v747 = vadd.f32 0.0, %v746
      %v748 = vpop.f32.mrf.mxu0
      %749 = vdwg.mxu0
      %v750 = vadd.f32 %v578, %v720
      %v751 = vadd.f32 %v581, %v723
      %v752 = vadd.f32 %v586, %v728
      %v753 = vadd.f32 %v589, %v731
      %v754 = vadd.f32 %v594, %v736
      %v755 = vadd.f32 %v597, %v739
      %v756 = vadd.f32 %v602, %v744
      %v757 = vadd.f32 %v605, %v747
      %v758 = vld [vmem:[%s286] sm:$0xff]
      %v759 = vld [vmem:[%s286 + $0x8] sm:$0xff]
      %v760 = vld [vmem:[%s286 + $0x18] sm:$0xff]
      %v761 = vld [vmem:[%s286 + $0x20] sm:$0xff]
      %v762 = vld [vmem:[%s286 + $0x30] sm:$0xff]
      %v763 = vld [vmem:[%s286 + $0x38] sm:$0xff]
      %v764 = vld [vmem:[%s286 + $0x48] sm:$0xff]
      %v765 = vld [vmem:[%s286 + $0x50] sm:$0xff]
      %v766 = vpack.c.bf16 %v759, %v758
      %v767 = vpack.c.bf16 %v761, %v760
      %v768 = vpack.c.bf16 %v763, %v762
      %v769 = vpack.c.bf16 %v765, %v764
      %s770 = scalar_lea.vmem %s1, 192
      %v771 = vld [vmem:[%s770] sm:$0xf]
      %v772 = vld [vmem:[%s770 + $0x4] sm:$0xf]
      %v773 = vld [vmem:[%s770 + $0x8] sm:$0xf]
      %v774 = vld [vmem:[%s770 + $0xc] sm:$0xf]
      %v775 = vld [vmem:[%s770 + $0x10] sm:$0xf]
      %v776 = vld [vmem:[%s770 + $0x14] sm:$0xf]
      %v777 = vld [vmem:[%s770 + $0x18] sm:$0xf]
      %v778 = vld [vmem:[%s770 + $0x1c] sm:$0xf]
      %v779 = vld [vmem:[%s770 + $0x20] sm:$0xf]
      %v780 = vld [vmem:[%s770 + $0x24] sm:$0xf]
      %v781 = vld [vmem:[%s770 + $0x28] sm:$0xf]
      %v782 = vld [vmem:[%s770 + $0x2c] sm:$0xf]
      %v783 = vld [vmem:[%s770 + $0x30] sm:$0xf]
      %v784 = vld [vmem:[%s770 + $0x34] sm:$0xf]
      %v785 = vld [vmem:[%s770 + $0x38] sm:$0xf]
      %v786 = vld [vmem:[%s770 + $0x3c] sm:$0xf]
      %v803 = vunpack.c.l.b16 %v771
      %v804 = vunpack.c.l.b16 %v772
      %v805 = vunpack.c.l.b16 %v773
      %v806 = vunpack.c.l.b16 %v774
      %v807 = vunpack.c.l.b16 %v775
      %v808 = vunpack.c.l.b16 %v776
      %v809 = vunpack.c.l.b16 %v777
      %v810 = vunpack.c.l.b16 %v778
      %v811 = vunpack.c.l.b16 %v779
      %v812 = vunpack.c.l.b16 %v780
      %v813 = vunpack.c.l.b16 %v781
      %v814 = vunpack.c.l.b16 %v782
      %v815 = vunpack.c.l.b16 %v783
      %v816 = vunpack.c.l.b16 %v784
      %v817 = vunpack.c.l.b16 %v785
      %v818 = vunpack.c.l.b16 %v786
      %v819 = vpack.c.b16 %v804, %v803
      %v820 = vpack.c.b16 %v806, %v805
      %v821 = vpack.c.b16 %v808, %v807
      %v822 = vpack.c.b16 %v810, %v809
      %v823 = vpack.c.b16 %v812, %v811
      %v824 = vpack.c.b16 %v814, %v813
      %v825 = vpack.c.b16 %v816, %v815
      %v826 = vpack.c.b16 %v818, %v817
      %835 = vmatprep.subr.bf16.mxu0 0
      %836 = vmatpush1.bf16.msra.mxu0 %v826
      %837 = vmatprep.subr.bf16.mxu0 0
      %838 = vmatpush1.bf16.msra.mxu0 %v825
      %839 = vmatprep.subr.bf16.mxu0 0
      %840 = vmatpush1.bf16.msra.mxu0 %v824
      %841 = vmatprep.subr.bf16.mxu0 0
      %842 = vmatpush1.bf16.msra.mxu0 %v823
      %843 = vmatprep.subr.bf16.mxu0 0
      %844 = vmatpush1.bf16.msra.mxu0 %v822
      %845 = vmatprep.subr.bf16.mxu0 0
      %846 = vmatpush1.bf16.msra.mxu0 %v821
      %847 = vmatprep.subr.bf16.mxu0 0
      %848 = vmatpush1.bf16.msra.mxu0 %v820
      %849 = vmatprep.subr.bf16.mxu0 0
      %850 = vmatpush1.bf16.msra.mxu0 %v819
      %851 = vmatprep.subr.bf16.mxu0 0
      %852 = vmatpush2.bf16.msra.mxu0 0
      %853 = vmatprep.subr.bf16.mxu0 0
      %854 = vmatpush2.bf16.msra.mxu0 0
      %855 = vmatprep.subr.bf16.mxu0 0
      %856 = vmatpush2.bf16.msra.mxu0 0
      %857 = vmatprep.subr.bf16.mxu0 0
      %858 = vmatpush2.bf16.msra.mxu0 0
      %859 = vmatprep.subr.bf16.mxu0 0
      %860 = vmatpush2.bf16.msra.mxu0 0
      %861 = vmatprep.subr.bf16.mxu0 0
      %862 = vmatpush2.bf16.msra.mxu0 0
      %863 = vmatprep.subr.bf16.mxu0 0
      %864 = vmatpush2.bf16.msra.mxu0 0
      %865 = vmatprep.subr.bf16.mxu0 0
      %866 = vmatpush2.bf16.msra.mxu0 0
      %867 = vmatprep.mubr.bf16.mxu0 0
      %868 = vmatmul.mubr.bf16.gmra.mxu0 %v766
      %v869 = vpop.f32.mrf.mxu0
      %v870 = vadd.f32 0.0, %v869
      %v871 = vpop.f32.mrf.mxu0
      %v872 = vpop.f32.mrf.mxu0
      %v873 = vadd.f32 0.0, %v872
      %v874 = vpop.f32.mrf.mxu0
      %875 = vmatprep.mubr.bf16.mxu0 0
      %876 = vmatmul.mubr.bf16.gmra.mxu0 %v767
      %v877 = vpop.f32.mrf.mxu0
      %v878 = vadd.f32 0.0, %v877
      %v879 = vpop.f32.mrf.mxu0
      %v880 = vpop.f32.mrf.mxu0
      %v881 = vadd.f32 0.0, %v880
      %v882 = vpop.f32.mrf.mxu0
      %883 = vmatprep.mubr.bf16.mxu0 0
      %884 = vmatmul.mubr.bf16.gmra.mxu0 %v768
      %v885 = vpop.f32.mrf.mxu0
      %v886 = vadd.f32 0.0, %v885
      %v887 = vpop.f32.mrf.mxu0
      %v888 = vpop.f32.mrf.mxu0
      %v889 = vadd.f32 0.0, %v888
      %v890 = vpop.f32.mrf.mxu0
      %891 = vmatprep.mubr.bf16.mxu0 0
      %892 = vmatmul.mubr.bf16.gmra.mxu0 %v769
      %v893 = vpop.f32.mrf.mxu0
      %v894 = vadd.f32 0.0, %v893
      %v895 = vpop.f32.mrf.mxu0
      %v896 = vpop.f32.mrf.mxu0
      %v897 = vadd.f32 0.0, %v896
      %v898 = vpop.f32.mrf.mxu0
      %899 = vdwg.mxu0
      %v900 = vadd.f32 %v750, %v870
      %v901 = vadd.f32 %v751, %v873
      %v902 = vadd.f32 %v752, %v878
      %v903 = vadd.f32 %v753, %v881
      %v904 = vadd.f32 %v754, %v886
      %v905 = vadd.f32 %v755, %v889
      %v906 = vadd.f32 %v756, %v894
      %v907 = vadd.f32 %v757, %v897
      %v908 = vld [vmem:[%s286 + $0x1] sm:$0xff]
      %v909 = vld [vmem:[%s286 + $0x9] sm:$0xff]
      %v910 = vld [vmem:[%s286 + $0x19] sm:$0xff]
      %v911 = vld [vmem:[%s286 + $0x21] sm:$0xff]
      %v912 = vld [vmem:[%s286 + $0x31] sm:$0xff]
      %v913 = vld [vmem:[%s286 + $0x39] sm:$0xff]
      %v914 = vld [vmem:[%s286 + $0x49] sm:$0xff]
      %v915 = vld [vmem:[%s286 + $0x51] sm:$0xff]
      %v916 = vpack.c.bf16 %v909, %v908
      %v917 = vpack.c.bf16 %v911, %v910
      %v918 = vpack.c.bf16 %v913, %v912
      %v919 = vpack.c.bf16 %v915, %v914
      %s920 = scalar_lea.vmem %s1, 256
      %v921 = vld [vmem:[%s920] sm:$0xf]
      %v922 = vld [vmem:[%s920 + $0x4] sm:$0xf]
      %v923 = vld [vmem:[%s920 + $0x8] sm:$0xf]
      %v924 = vld [vmem:[%s920 + $0xc] sm:$0xf]
      %v925 = vld [vmem:[%s920 + $0x10] sm:$0xf]
      %v926 = vld [vmem:[%s920 + $0x14] sm:$0xf]
      %v927 = vld [vmem:[%s920 + $0x18] sm:$0xf]
      %v928 = vld [vmem:[%s920 + $0x1c] sm:$0xf]
      %v929 = vld [vmem:[%s920 + $0x20] sm:$0xf]
      %v930 = vld [vmem:[%s920 + $0x24] sm:$0xf]
      %v931 = vld [vmem:[%s920 + $0x28] sm:$0xf]
      %v932 = vld [vmem:[%s920 + $0x2c] sm:$0xf]
      %v933 = vld [vmem:[%s920 + $0x30] sm:$0xf]
      %v934 = vld [vmem:[%s920 + $0x34] sm:$0xf]
      %v935 = vld [vmem:[%s920 + $0x38] sm:$0xf]
      %v936 = vld [vmem:[%s920 + $0x3c] sm:$0xf]
      %v953 = vunpack.c.l.b16 %v921
      %v954 = vunpack.c.l.b16 %v922
      %v955 = vunpack.c.l.b16 %v923
      %v956 = vunpack.c.l.b16 %v924
      %v957 = vunpack.c.l.b16 %v925
      %v958 = vunpack.c.l.b16 %v926
      %v959 = vunpack.c.l.b16 %v927
      %v960 = vunpack.c.l.b16 %v928
      %v961 = vunpack.c.l.b16 %v929
      %v962 = vunpack.c.l.b16 %v930
      %v963 = vunpack.c.l.b16 %v931
      %v964 = vunpack.c.l.b16 %v932
      %v965 = vunpack.c.l.b16 %v933
      %v966 = vunpack.c.l.b16 %v934
      %v967 = vunpack.c.l.b16 %v935
      %v968 = vunpack.c.l.b16 %v936
      %v969 = vpack.c.b16 %v954, %v953
      %v970 = vpack.c.b16 %v956, %v955
      %v971 = vpack.c.b16 %v958, %v957
      %v972 = vpack.c.b16 %v960, %v959
      %v973 = vpack.c.b16 %v962, %v961
      %v974 = vpack.c.b16 %v964, %v963
      %v975 = vpack.c.b16 %v966, %v965
      %v976 = vpack.c.b16 %v968, %v967
      %985 = vmatprep.subr.bf16.mxu0 0
      %986 = vmatpush1.bf16.msra.mxu0 %v976
      %987 = vmatprep.subr.bf16.mxu0 0
      %988 = vmatpush1.bf16.msra.mxu0 %v975
      %989 = vmatprep.subr.bf16.mxu0 0
      %990 = vmatpush1.bf16.msra.mxu0 %v974
      %991 = vmatprep.subr.bf16.mxu0 0
      %992 = vmatpush1.bf16.msra.mxu0 %v973
      %993 = vmatprep.subr.bf16.mxu0 0
      %994 = vmatpush1.bf16.msra.mxu0 %v972
      %995 = vmatprep.subr.bf16.mxu0 0
      %996 = vmatpush1.bf16.msra.mxu0 %v971
      %997 = vmatprep.subr.bf16.mxu0 0
      %998 = vmatpush1.bf16.msra.mxu0 %v970
      %999 = vmatprep.subr.bf16.mxu0 0
      %1000 = vmatpush1.bf16.msra.mxu0 %v969
      %1001 = vmatprep.subr.bf16.mxu0 0
      %1002 = vmatpush2.bf16.msra.mxu0 0
      %1003 = vmatprep.subr.bf16.mxu0 0
      %1004 = vmatpush2.bf16.msra.mxu0 0
      %1005 = vmatprep.subr.bf16.mxu0 0
      %1006 = vmatpush2.bf16.msra.mxu0 0
      %1007 = vmatprep.subr.bf16.mxu0 0
      %1008 = vmatpush2.bf16.msra.mxu0 0
      %1009 = vmatprep.subr.bf16.mxu0 0
      %1010 = vmatpush2.bf16.msra.mxu0 0
      %1011 = vmatprep.subr.bf16.mxu0 0
      %1012 = vmatpush2.bf16.msra.mxu0 0
      %1013 = vmatprep.subr.bf16.mxu0 0
      %1014 = vmatpush2.bf16.msra.mxu0 0
      %1015 = vmatprep.subr.bf16.mxu0 0
      %1016 = vmatpush2.bf16.msra.mxu0 0
      %1017 = vmatprep.mubr.bf16.mxu0 0
      %1018 = vmatmul.mubr.bf16.gmra.mxu0 %v916
      %v1019 = vpop.f32.mrf.mxu0
      %v1020 = vadd.f32 0.0, %v1019
      %v1021 = vpop.f32.mrf.mxu0
      %v1022 = vpop.f32.mrf.mxu0
      %v1023 = vadd.f32 0.0, %v1022
      %v1024 = vpop.f32.mrf.mxu0
      %1025 = vmatprep.mubr.bf16.mxu0 0
      %1026 = vmatmul.mubr.bf16.gmra.mxu0 %v917
      %v1027 = vpop.f32.mrf.mxu0
      %v1028 = vadd.f32 0.0, %v1027
      %v1029 = vpop.f32.mrf.mxu0
      %v1030 = vpop.f32.mrf.mxu0
      %v1031 = vadd.f32 0.0, %v1030
      %v1032 = vpop.f32.mrf.mxu0
      %1033 = vmatprep.mubr.bf16.mxu0 0
      %1034 = vmatmul.mubr.bf16.gmra.mxu0 %v918
      %v1035 = vpop.f32.mrf.mxu0
      %v1036 = vadd.f32 0.0, %v1035
      %v1037 = vpop.f32.mrf.mxu0
      %v1038 = vpop.f32.mrf.mxu0
      %v1039 = vadd.f32 0.0, %v1038
      %v1040 = vpop.f32.mrf.mxu0
      %1041 = vmatprep.mubr.bf16.mxu0 0
      %1042 = vmatmul.mubr.bf16.gmra.mxu0 %v919
      %v1043 = vpop.f32.mrf.mxu0
      %v1044 = vadd.f32 0.0, %v1043
      %v1045 = vpop.f32.mrf.mxu0
      %v1046 = vpop.f32.mrf.mxu0
      %v1047 = vadd.f32 0.0, %v1046
      %v1048 = vpop.f32.mrf.mxu0
      %1049 = vdwg.mxu0
      %v1050 = vadd.f32 %v900, %v1020
      %v1051 = vadd.f32 %v901, %v1023
      %v1052 = vadd.f32 %v902, %v1028
      %v1053 = vadd.f32 %v903, %v1031
      %v1054 = vadd.f32 %v904, %v1036
      %v1055 = vadd.f32 %v905, %v1039
      %v1056 = vadd.f32 %v906, %v1044
      %v1057 = vadd.f32 %v907, %v1047
      %v1058 = vld [vmem:[%s286 + $0x2] sm:$0xff]
      %v1059 = vld [vmem:[%s286 + $0xa] sm:$0xff]
      %v1060 = vld [vmem:[%s286 + $0x1a] sm:$0xff]
      %v1061 = vld [vmem:[%s286 + $0x22] sm:$0xff]
      %v1062 = vld [vmem:[%s286 + $0x32] sm:$0xff]
      %v1063 = vld [vmem:[%s286 + $0x3a] sm:$0xff]
      %v1064 = vld [vmem:[%s286 + $0x4a] sm:$0xff]
      %v1065 = vld [vmem:[%s286 + $0x52] sm:$0xff]
      %v1066 = vpack.c.bf16 %v1059, %v1058
      %v1067 = vpack.c.bf16 %v1061, %v1060
      %v1068 = vpack.c.bf16 %v1063, %v1062
      %v1069 = vpack.c.bf16 %v1065, %v1064
      %s1070 = scalar_lea.vmem %s1, 320
      %v1071 = vld [vmem:[%s1070] sm:$0xf]
      %v1072 = vld [vmem:[%s1070 + $0x4] sm:$0xf]
      %v1073 = vld [vmem:[%s1070 + $0x8] sm:$0xf]
      %v1074 = vld [vmem:[%s1070 + $0xc] sm:$0xf]
      %v1075 = vld [vmem:[%s1070 + $0x10] sm:$0xf]
      %v1076 = vld [vmem:[%s1070 + $0x14] sm:$0xf]
      %v1077 = vld [vmem:[%s1070 + $0x18] sm:$0xf]
      %v1078 = vld [vmem:[%s1070 + $0x1c] sm:$0xf]
      %v1079 = vld [vmem:[%s1070 + $0x20] sm:$0xf]
      %v1080 = vld [vmem:[%s1070 + $0x24] sm:$0xf]
      %v1081 = vld [vmem:[%s1070 + $0x28] sm:$0xf]
      %v1082 = vld [vmem:[%s1070 + $0x2c] sm:$0xf]
      %v1083 = vld [vmem:[%s1070 + $0x30] sm:$0xf]
      %v1084 = vld [vmem:[%s1070 + $0x34] sm:$0xf]
      %v1085 = vld [vmem:[%s1070 + $0x38] sm:$0xf]
      %v1086 = vld [vmem:[%s1070 + $0x3c] sm:$0xf]
      %v1103 = vunpack.c.l.b16 %v1071
      %v1104 = vunpack.c.l.b16 %v1072
      %v1105 = vunpack.c.l.b16 %v1073
      %v1106 = vunpack.c.l.b16 %v1074
      %v1107 = vunpack.c.l.b16 %v1075
      %v1108 = vunpack.c.l.b16 %v1076
      %v1109 = vunpack.c.l.b16 %v1077
      %v1110 = vunpack.c.l.b16 %v1078
      %v1111 = vunpack.c.l.b16 %v1079
      %v1112 = vunpack.c.l.b16 %v1080
      %v1113 = vunpack.c.l.b16 %v1081
      %v1114 = vunpack.c.l.b16 %v1082
      %v1115 = vunpack.c.l.b16 %v1083
      %v1116 = vunpack.c.l.b16 %v1084
      %v1117 = vunpack.c.l.b16 %v1085
      %v1118 = vunpack.c.l.b16 %v1086
      %v1119 = vpack.c.b16 %v1104, %v1103
      %v1120 = vpack.c.b16 %v1106, %v1105
      %v1121 = vpack.c.b16 %v1108, %v1107
      %v1122 = vpack.c.b16 %v1110, %v1109
      %v1123 = vpack.c.b16 %v1112, %v1111
      %v1124 = vpack.c.b16 %v1114, %v1113
      %v1125 = vpack.c.b16 %v1116, %v1115
      %v1126 = vpack.c.b16 %v1118, %v1117
      %1135 = vmatprep.subr.bf16.mxu0 0
      %1136 = vmatpush1.bf16.msra.mxu0 %v1126
      %1137 = vmatprep.subr.bf16.mxu0 0
      %1138 = vmatpush1.bf16.msra.mxu0 %v1125
      %1139 = vmatprep.subr.bf16.mxu0 0
      %1140 = vmatpush1.bf16.msra.mxu0 %v1124
      %1141 = vmatprep.subr.bf16.mxu0 0
      %1142 = vmatpush1.bf16.msra.mxu0 %v1123
      %1143 = vmatprep.subr.bf16.mxu0 0
      %1144 = vmatpush1.bf16.msra.mxu0 %v1122
      %1145 = vmatprep.subr.bf16.mxu0 0
      %1146 = vmatpush1.bf16.msra.mxu0 %v1121
      %1147 = vmatprep.subr.bf16.mxu0 0
      %1148 = vmatpush1.bf16.msra.mxu0 %v1120
      %1149 = vmatprep.subr.bf16.mxu0 0
      %1150 = vmatpush1.bf16.msra.mxu0 %v1119
      %1151 = vmatprep.subr.bf16.mxu0 0
      %1152 = vmatpush2.bf16.msra.mxu0 0
      %1153 = vmatprep.subr.bf16.mxu0 0
      %1154 = vmatpush2.bf16.msra.mxu0 0
      %1155 = vmatprep.subr.bf16.mxu0 0
      %1156 = vmatpush2.bf16.msra.mxu0 0
      %1157 = vmatprep.subr.bf16.mxu0 0
      %1158 = vmatpush2.bf16.msra.mxu0 0
      %1159 = vmatprep.subr.bf16.mxu0 0
      %1160 = vmatpush2.bf16.msra.mxu0 0
      %1161 = vmatprep.subr.bf16.mxu0 0
      %1162 = vmatpush2.bf16.msra.mxu0 0
      %1163 = vmatprep.subr.bf16.mxu0 0
      %1164 = vmatpush2.bf16.msra.mxu0 0
      %1165 = vmatprep.subr.bf16.mxu0 0
      %1166 = vmatpush2.bf16.msra.mxu0 0
      %1167 = vmatprep.mubr.bf16.mxu0 0
      %1168 = vmatmul.mubr.bf16.gmra.mxu0 %v1066
      %v1169 = vpop.f32.mrf.mxu0
      %v1170 = vadd.f32 0.0, %v1169
      %v1171 = vpop.f32.mrf.mxu0
      %v1172 = vpop.f32.mrf.mxu0
      %v1173 = vadd.f32 0.0, %v1172
      %v1174 = vpop.f32.mrf.mxu0
      %1175 = vmatprep.mubr.bf16.mxu0 0
      %1176 = vmatmul.mubr.bf16.gmra.mxu0 %v1067
      %v1177 = vpop.f32.mrf.mxu0
      %v1178 = vadd.f32 0.0, %v1177
      %v1179 = vpop.f32.mrf.mxu0
      %v1180 = vpop.f32.mrf.mxu0
      %v1181 = vadd.f32 0.0, %v1180
      %v1182 = vpop.f32.mrf.mxu0
      %1183 = vmatprep.mubr.bf16.mxu0 0
      %1184 = vmatmul.mubr.bf16.gmra.mxu0 %v1068
      %v1185 = vpop.f32.mrf.mxu0
      %v1186 = vadd.f32 0.0, %v1185
      %v1187 = vpop.f32.mrf.mxu0
      %v1188 = vpop.f32.mrf.mxu0
      %v1189 = vadd.f32 0.0, %v1188
      %v1190 = vpop.f32.mrf.mxu0
      %1191 = vmatprep.mubr.bf16.mxu0 0
      %1192 = vmatmul.mubr.bf16.gmra.mxu0 %v1069
      %v1193 = vpop.f32.mrf.mxu0
      %v1194 = vadd.f32 0.0, %v1193
      %v1195 = vpop.f32.mrf.mxu0
      %v1196 = vpop.f32.mrf.mxu0
      %v1197 = vadd.f32 0.0, %v1196
      %v1198 = vpop.f32.mrf.mxu0
      %1199 = vdwg.mxu0
      %v1200 = vadd.f32 %v1050, %v1170
      %v1201 = vadd.f32 %v1051, %v1173
      %v1202 = vadd.f32 %v1052, %v1178
      %v1203 = vadd.f32 %v1053, %v1181
      %v1204 = vadd.f32 %v1054, %v1186
      %v1205 = vadd.f32 %v1055, %v1189
      %v1206 = vadd.f32 %v1056, %v1194
      %v1207 = vadd.f32 %v1057, %v1197
      %s1208 = scalar_lea.vmem [#allocation2], 48
      %v1209 = vld [vmem:[%s1208] sm:$0xff]
      %v1210 = vld [vmem:[%s1208 + $0x8] sm:$0xff]
      %v1211 = vld [vmem:[%s1208 + $0x18] sm:$0xff]
      %v1212 = vld [vmem:[%s1208 + $0x20] sm:$0xff]
      %v1213 = vld [vmem:[%s1208 + $0x30] sm:$0xff]
      %v1214 = vld [vmem:[%s1208 + $0x38] sm:$0xff]
      %v1215 = vld [vmem:[%s1208 + $0x48] sm:$0xff]
      %v1216 = vld [vmem:[%s1208 + $0x50] sm:$0xff]
      %v1217 = vpack.c.bf16 %v1210, %v1209
      %v1218 = vpack.c.bf16 %v1212, %v1211
      %v1219 = vpack.c.bf16 %v1214, %v1213
      %v1220 = vpack.c.bf16 %v1216, %v1215
      %s1221 = scalar_lea.vmem %s1, 384
      %v1222 = vld [vmem:[%s1221] sm:$0xf]
      %v1223 = vld [vmem:[%s1221 + $0x4] sm:$0xf]
      %v1224 = vld [vmem:[%s1221 + $0x8] sm:$0xf]
      %v1225 = vld [vmem:[%s1221 + $0xc] sm:$0xf]
      %v1226 = vld [vmem:[%s1221 + $0x10] sm:$0xf]
      %v1227 = vld [vmem:[%s1221 + $0x14] sm:$0xf]
      %v1228 = vld [vmem:[%s1221 + $0x18] sm:$0xf]
      %v1229 = vld [vmem:[%s1221 + $0x1c] sm:$0xf]
      %v1230 = vld [vmem:[%s1221 + $0x20] sm:$0xf]
      %v1231 = vld [vmem:[%s1221 + $0x24] sm:$0xf]
      %v1232 = vld [vmem:[%s1221 + $0x28] sm:$0xf]
      %v1233 = vld [vmem:[%s1221 + $0x2c] sm:$0xf]
      %v1234 = vld [vmem:[%s1221 + $0x30] sm:$0xf]
      %v1235 = vld [vmem:[%s1221 + $0x34] sm:$0xf]
      %v1236 = vld [vmem:[%s1221 + $0x38] sm:$0xf]
      %v1237 = vld [vmem:[%s1221 + $0x3c] sm:$0xf]
      %v1254 = vunpack.c.l.b16 %v1222
      %v1255 = vunpack.c.l.b16 %v1223
      %v1256 = vunpack.c.l.b16 %v1224
      %v1257 = vunpack.c.l.b16 %v1225
      %v1258 = vunpack.c.l.b16 %v1226
      %v1259 = vunpack.c.l.b16 %v1227
      %v1260 = vunpack.c.l.b16 %v1228
      %v1261 = vunpack.c.l.b16 %v1229
      %v1262 = vunpack.c.l.b16 %v1230
      %v1263 = vunpack.c.l.b16 %v1231
      %v1264 = vunpack.c.l.b16 %v1232
      %v1265 = vunpack.c.l.b16 %v1233
      %v1266 = vunpack.c.l.b16 %v1234
      %v1267 = vunpack.c.l.b16 %v1235
      %v1268 = vunpack.c.l.b16 %v1236
      %v1269 = vunpack.c.l.b16 %v1237
      %v1270 = vpack.c.b16 %v1255, %v1254
      %v1271 = vpack.c.b16 %v1257, %v1256
      %v1272 = vpack.c.b16 %v1259, %v1258
      %v1273 = vpack.c.b16 %v1261, %v1260
      %v1274 = vpack.c.b16 %v1263, %v1262
      %v1275 = vpack.c.b16 %v1265, %v1264
      %v1276 = vpack.c.b16 %v1267, %v1266
      %v1277 = vpack.c.b16 %v1269, %v1268
      %1286 = vmatprep.subr.bf16.mxu0 0
      %1287 = vmatpush1.bf16.msra.mxu0 %v1277
      %1288 = vmatprep.subr.bf16.mxu0 0
      %1289 = vmatpush1.bf16.msra.mxu0 %v1276
      %1290 = vmatprep.subr.bf16.mxu0 0
      %1291 = vmatpush1.bf16.msra.mxu0 %v1275
      %1292 = vmatprep.subr.bf16.mxu0 0
      %1293 = vmatpush1.bf16.msra.mxu0 %v1274
      %1294 = vmatprep.subr.bf16.mxu0 0
      %1295 = vmatpush1.bf16.msra.mxu0 %v1273
      %1296 = vmatprep.subr.bf16.mxu0 0
      %1297 = vmatpush1.bf16.msra.mxu0 %v1272
      %1298 = vmatprep.subr.bf16.mxu0 0
      %1299 = vmatpush1.bf16.msra.mxu0 %v1271
      %1300 = vmatprep.subr.bf16.mxu0 0
      %1301 = vmatpush1.bf16.msra.mxu0 %v1270
      %1302 = vmatprep.subr.bf16.mxu0 0
      %1303 = vmatpush2.bf16.msra.mxu0 0
      %1304 = vmatprep.subr.bf16.mxu0 0
      %1305 = vmatpush2.bf16.msra.mxu0 0
      %1306 = vmatprep.subr.bf16.mxu0 0
      %1307 = vmatpush2.bf16.msra.mxu0 0
      %1308 = vmatprep.subr.bf16.mxu0 0
      %1309 = vmatpush2.bf16.msra.mxu0 0
      %1310 = vmatprep.subr.bf16.mxu0 0
      %1311 = vmatpush2.bf16.msra.mxu0 0
      %1312 = vmatprep.subr.bf16.mxu0 0
      %1313 = vmatpush2.bf16.msra.mxu0 0
      %1314 = vmatprep.subr.bf16.mxu0 0
      %1315 = vmatpush2.bf16.msra.mxu0 0
      %1316 = vmatprep.subr.bf16.mxu0 0
      %1317 = vmatpush2.bf16.msra.mxu0 0
      %1318 = vmatprep.mubr.bf16.mxu0 0
      %1319 = vmatmul.mubr.bf16.gmra.mxu0 %v1217
      %v1320 = vpop.f32.mrf.mxu0
      %v1321 = vadd.f32 0.0, %v1320
      %v1322 = vpop.f32.mrf.mxu0
      %v1323 = vpop.f32.mrf.mxu0
      %v1324 = vadd.f32 0.0, %v1323
      %v1325 = vpop.f32.mrf.mxu0
      %1326 = vmatprep.mubr.bf16.mxu0 0
      %1327 = vmatmul.mubr.bf16.gmra.mxu0 %v1218
      %v1328 = vpop.f32.mrf.mxu0
      %v1329 = vadd.f32 0.0, %v1328
      %v1330 = vpop.f32.mrf.mxu0
      %v1331 = vpop.f32.mrf.mxu0
      %v1332 = vadd.f32 0.0, %v1331
      %v1333 = vpop.f32.mrf.mxu0
      %1334 = vmatprep.mubr.bf16.mxu0 0
      %1335 = vmatmul.mubr.bf16.gmra.mxu0 %v1219
      %v1336 = vpop.f32.mrf.mxu0
      %v1337 = vadd.f32 0.0, %v1336
      %v1338 = vpop.f32.mrf.mxu0
      %v1339 = vpop.f32.mrf.mxu0
      %v1340 = vadd.f32 0.0, %v1339
      %v1341 = vpop.f32.mrf.mxu0
      %1342 = vmatprep.mubr.bf16.mxu0 0
      %1343 = vmatmul.mubr.bf16.gmra.mxu0 %v1220
      %v1344 = vpop.f32.mrf.mxu0
      %v1345 = vadd.f32 0.0, %v1344
      %v1346 = vpop.f32.mrf.mxu0
      %v1347 = vpop.f32.mrf.mxu0
      %v1348 = vadd.f32 0.0, %v1347
      %v1349 = vpop.f32.mrf.mxu0
      %1350 = vdwg.mxu0
      %v1351 = vadd.f32 %v1200, %v1321
      %v1352 = vadd.f32 %v1201, %v1324
      %v1353 = vadd.f32 %v1202, %v1329
      %v1354 = vadd.f32 %v1203, %v1332
      %v1355 = vadd.f32 %v1204, %v1337
      %v1356 = vadd.f32 %v1205, %v1340
      %v1357 = vadd.f32 %v1206, %v1345
      %v1358 = vadd.f32 %v1207, %v1348
      %v1359 = vld [vmem:[%s1208 + $0x1] sm:$0xff]
      %v1360 = vld [vmem:[%s1208 + $0x9] sm:$0xff]
      %v1361 = vld [vmem:[%s1208 + $0x19] sm:$0xff]
      %v1362 = vld [vmem:[%s1208 + $0x21] sm:$0xff]
      %v1363 = vld [vmem:[%s1208 + $0x31] sm:$0xff]
      %v1364 = vld [vmem:[%s1208 + $0x39] sm:$0xff]
      %v1365 = vld [vmem:[%s1208 + $0x49] sm:$0xff]
      %v1366 = vld [vmem:[%s1208 + $0x51] sm:$0xff]
      %v1367 = vpack.c.bf16 %v1360, %v1359
      %v1368 = vpack.c.bf16 %v1362, %v1361
      %v1369 = vpack.c.bf16 %v1364, %v1363
      %v1370 = vpack.c.bf16 %v1366, %v1365
      %s1371 = scalar_lea.vmem %s1, 448
      %v1372 = vld [vmem:[%s1371] sm:$0xf]
      %v1373 = vld [vmem:[%s1371 + $0x4] sm:$0xf]
      %v1374 = vld [vmem:[%s1371 + $0x8] sm:$0xf]
      %v1375 = vld [vmem:[%s1371 + $0xc] sm:$0xf]
      %v1376 = vld [vmem:[%s1371 + $0x10] sm:$0xf]
      %v1377 = vld [vmem:[%s1371 + $0x14] sm:$0xf]
      %v1378 = vld [vmem:[%s1371 + $0x18] sm:$0xf]
      %v1379 = vld [vmem:[%s1371 + $0x1c] sm:$0xf]
      %v1380 = vld [vmem:[%s1371 + $0x20] sm:$0xf]
      %v1381 = vld [vmem:[%s1371 + $0x24] sm:$0xf]
      %v1382 = vld [vmem:[%s1371 + $0x28] sm:$0xf]
      %v1383 = vld [vmem:[%s1371 + $0x2c] sm:$0xf]
      %v1384 = vld [vmem:[%s1371 + $0x30] sm:$0xf]
      %v1385 = vld [vmem:[%s1371 + $0x34] sm:$0xf]
      %v1386 = vld [vmem:[%s1371 + $0x38] sm:$0xf]
      %v1387 = vld [vmem:[%s1371 + $0x3c] sm:$0xf]
      %v1404 = vunpack.c.l.b16 %v1372
      %v1405 = vunpack.c.l.b16 %v1373
      %v1406 = vunpack.c.l.b16 %v1374
      %v1407 = vunpack.c.l.b16 %v1375
      %v1408 = vunpack.c.l.b16 %v1376
      %v1409 = vunpack.c.l.b16 %v1377
      %v1410 = vunpack.c.l.b16 %v1378
      %v1411 = vunpack.c.l.b16 %v1379
      %v1412 = vunpack.c.l.b16 %v1380
      %v1413 = vunpack.c.l.b16 %v1381
      %v1414 = vunpack.c.l.b16 %v1382
      %v1415 = vunpack.c.l.b16 %v1383
      %v1416 = vunpack.c.l.b16 %v1384
      %v1417 = vunpack.c.l.b16 %v1385
      %v1418 = vunpack.c.l.b16 %v1386
      %v1419 = vunpack.c.l.b16 %v1387
      %v1420 = vpack.c.b16 %v1405, %v1404
      %v1421 = vpack.c.b16 %v1407, %v1406
      %v1422 = vpack.c.b16 %v1409, %v1408
      %v1423 = vpack.c.b16 %v1411, %v1410
      %v1424 = vpack.c.b16 %v1413, %v1412
      %v1425 = vpack.c.b16 %v1415, %v1414
      %v1426 = vpack.c.b16 %v1417, %v1416
      %v1427 = vpack.c.b16 %v1419, %v1418
      %1436 = vmatprep.subr.bf16.mxu0 0
      %1437 = vmatpush1.bf16.msra.mxu0 %v1427
      %1438 = vmatprep.subr.bf16.mxu0 0
      %1439 = vmatpush1.bf16.msra.mxu0 %v1426
      %1440 = vmatprep.subr.bf16.mxu0 0
      %1441 = vmatpush1.bf16.msra.mxu0 %v1425
      %1442 = vmatprep.subr.bf16.mxu0 0
      %1443 = vmatpush1.bf16.msra.mxu0 %v1424
      %1444 = vmatprep.subr.bf16.mxu0 0
      %1445 = vmatpush1.bf16.msra.mxu0 %v1423
      %1446 = vmatprep.subr.bf16.mxu0 0
      %1447 = vmatpush1.bf16.msra.mxu0 %v1422
      %1448 = vmatprep.subr.bf16.mxu0 0
      %1449 = vmatpush1.bf16.msra.mxu0 %v1421
      %1450 = vmatprep.subr.bf16.mxu0 0
      %1451 = vmatpush1.bf16.msra.mxu0 %v1420
      %1452 = vmatprep.subr.bf16.mxu0 0
      %1453 = vmatpush2.bf16.msra.mxu0 0
      %1454 = vmatprep.subr.bf16.mxu0 0
      %1455 = vmatpush2.bf16.msra.mxu0 0
      %1456 = vmatprep.subr.bf16.mxu0 0
      %1457 = vmatpush2.bf16.msra.mxu0 0
      %1458 = vmatprep.subr.bf16.mxu0 0
      %1459 = vmatpush2.bf16.msra.mxu0 0
      %1460 = vmatprep.subr.bf16.mxu0 0
      %1461 = vmatpush2.bf16.msra.mxu0 0
      %1462 = vmatprep.subr.bf16.mxu0 0
      %1463 = vmatpush2.bf16.msra.mxu0 0
      %1464 = vmatprep.subr.bf16.mxu0 0
      %1465 = vmatpush2.bf16.msra.mxu0 0
      %1466 = vmatprep.subr.bf16.mxu0 0
      %1467 = vmatpush2.bf16.msra.mxu0 0
      %1468 = vmatprep.mubr.bf16.mxu0 0
      %1469 = vmatmul.mubr.bf16.gmra.mxu0 %v1367
      %v1470 = vpop.f32.mrf.mxu0
      %v1471 = vadd.f32 0.0, %v1470
      %v1472 = vpop.f32.mrf.mxu0
      %v1473 = vpop.f32.mrf.mxu0
      %v1474 = vadd.f32 0.0, %v1473
      %v1475 = vpop.f32.mrf.mxu0
      %1476 = vmatprep.mubr.bf16.mxu0 0
      %1477 = vmatmul.mubr.bf16.gmra.mxu0 %v1368
      %v1478 = vpop.f32.mrf.mxu0
      %v1479 = vadd.f32 0.0, %v1478
      %v1480 = vpop.f32.mrf.mxu0
      %v1481 = vpop.f32.mrf.mxu0
      %v1482 = vadd.f32 0.0, %v1481
      %v1483 = vpop.f32.mrf.mxu0
      %1484 = vmatprep.mubr.bf16.mxu0 0
      %1485 = vmatmul.mubr.bf16.gmra.mxu0 %v1369
      %v1486 = vpop.f32.mrf.mxu0
      %v1487 = vadd.f32 0.0, %v1486
      %v1488 = vpop.f32.mrf.mxu0
      %v1489 = vpop.f32.mrf.mxu0
      %v1490 = vadd.f32 0.0, %v1489
      %v1491 = vpop.f32.mrf.mxu0
      %1492 = vmatprep.mubr.bf16.mxu0 0
      %1493 = vmatmul.mubr.bf16.gmra.mxu0 %v1370
      %v1494 = vpop.f32.mrf.mxu0
      %v1495 = vadd.f32 0.0, %v1494
      %v1496 = vpop.f32.mrf.mxu0
      %v1497 = vpop.f32.mrf.mxu0
      %v1498 = vadd.f32 0.0, %v1497
      %v1499 = vpop.f32.mrf.mxu0
      %1500 = vdwg.mxu0
      %v1501 = vadd.f32 %v1351, %v1471
      %v1502 = vadd.f32 %v1352, %v1474
      %v1503 = vadd.f32 %v1353, %v1479
      %v1504 = vadd.f32 %v1354, %v1482
      %v1505 = vadd.f32 %v1355, %v1487
      %v1506 = vadd.f32 %v1356, %v1490
      %v1507 = vadd.f32 %v1357, %v1495
      %v1508 = vadd.f32 %v1358, %v1498
      %v1509 = vld [vmem:[%s1208 + $0x2] sm:$0xff]
      %v1510 = vld [vmem:[%s1208 + $0xa] sm:$0xff]
      %v1511 = vld [vmem:[%s1208 + $0x1a] sm:$0xff]
      %v1512 = vld [vmem:[%s1208 + $0x22] sm:$0xff]
      %v1513 = vld [vmem:[%s1208 + $0x32] sm:$0xff]
      %v1514 = vld [vmem:[%s1208 + $0x3a] sm:$0xff]
      %v1515 = vld [vmem:[%s1208 + $0x4a] sm:$0xff]
      %v1516 = vld [vmem:[%s1208 + $0x52] sm:$0xff]
      %v1517 = vpack.c.bf16 %v1510, %v1509
      %v1518 = vpack.c.bf16 %v1512, %v1511
      %v1519 = vpack.c.bf16 %v1514, %v1513
      %v1520 = vpack.c.bf16 %v1516, %v1515
      %s1521 = scalar_lea.vmem %s1, 512
      %v1522 = vld [vmem:[%s1521] sm:$0xf]
      %v1523 = vld [vmem:[%s1521 + $0x4] sm:$0xf]
      %v1524 = vld [vmem:[%s1521 + $0x8] sm:$0xf]
      %v1525 = vld [vmem:[%s1521 + $0xc] sm:$0xf]
      %v1526 = vld [vmem:[%s1521 + $0x10] sm:$0xf]
      %v1527 = vld [vmem:[%s1521 + $0x14] sm:$0xf]
      %v1528 = vld [vmem:[%s1521 + $0x18] sm:$0xf]
      %v1529 = vld [vmem:[%s1521 + $0x1c] sm:$0xf]
      %v1530 = vld [vmem:[%s1521 + $0x20] sm:$0xf]
      %v1531 = vld [vmem:[%s1521 + $0x24] sm:$0xf]
      %v1532 = vld [vmem:[%s1521 + $0x28] sm:$0xf]
      %v1533 = vld [vmem:[%s1521 + $0x2c] sm:$0xf]
      %v1534 = vld [vmem:[%s1521 + $0x30] sm:$0xf]
      %v1535 = vld [vmem:[%s1521 + $0x34] sm:$0xf]
      %v1536 = vld [vmem:[%s1521 + $0x38] sm:$0xf]
      %v1537 = vld [vmem:[%s1521 + $0x3c] sm:$0xf]
      %v1554 = vunpack.c.l.b16 %v1522
      %v1555 = vunpack.c.l.b16 %v1523
      %v1556 = vunpack.c.l.b16 %v1524
      %v1557 = vunpack.c.l.b16 %v1525
      %v1558 = vunpack.c.l.b16 %v1526
      %v1559 = vunpack.c.l.b16 %v1527
      %v1560 = vunpack.c.l.b16 %v1528
      %v1561 = vunpack.c.l.b16 %v1529
      %v1562 = vunpack.c.l.b16 %v1530
      %v1563 = vunpack.c.l.b16 %v1531
      %v1564 = vunpack.c.l.b16 %v1532
      %v1565 = vunpack.c.l.b16 %v1533
      %v1566 = vunpack.c.l.b16 %v1534
      %v1567 = vunpack.c.l.b16 %v1535
      %v1568 = vunpack.c.l.b16 %v1536
      %v1569 = vunpack.c.l.b16 %v1537
      %v1570 = vpack.c.b16 %v1555, %v1554
      %v1571 = vpack.c.b16 %v1557, %v1556
      %v1572 = vpack.c.b16 %v1559, %v1558
      %v1573 = vpack.c.b16 %v1561, %v1560
      %v1574 = vpack.c.b16 %v1563, %v1562
      %v1575 = vpack.c.b16 %v1565, %v1564
      %v1576 = vpack.c.b16 %v1567, %v1566
      %v1577 = vpack.c.b16 %v1569, %v1568
      %1586 = vmatprep.subr.bf16.mxu0 0
      %1587 = vmatpush1.bf16.msra.mxu0 %v1577
      %1588 = vmatprep.subr.bf16.mxu0 0
      %1589 = vmatpush1.bf16.msra.mxu0 %v1576
      %1590 = vmatprep.subr.bf16.mxu0 0
      %1591 = vmatpush1.bf16.msra.mxu0 %v1575
      %1592 = vmatprep.subr.bf16.mxu0 0
      %1593 = vmatpush1.bf16.msra.mxu0 %v1574
      %1594 = vmatprep.subr.bf16.mxu0 0
      %1595 = vmatpush1.bf16.msra.mxu0 %v1573
      %1596 = vmatprep.subr.bf16.mxu0 0
      %1597 = vmatpush1.bf16.msra.mxu0 %v1572
      %1598 = vmatprep.subr.bf16.mxu0 0
      %1599 = vmatpush1.bf16.msra.mxu0 %v1571
      %1600 = vmatprep.subr.bf16.mxu0 0
      %1601 = vmatpush1.bf16.msra.mxu0 %v1570
      %1602 = vmatprep.subr.bf16.mxu0 0
      %1603 = vmatpush2.bf16.msra.mxu0 0
      %1604 = vmatprep.subr.bf16.mxu0 0
      %1605 = vmatpush2.bf16.msra.mxu0 0
      %1606 = vmatprep.subr.bf16.mxu0 0
      %1607 = vmatpush2.bf16.msra.mxu0 0
      %1608 = vmatprep.subr.bf16.mxu0 0
      %1609 = vmatpush2.bf16.msra.mxu0 0
      %1610 = vmatprep.subr.bf16.mxu0 0
      %1611 = vmatpush2.bf16.msra.mxu0 0
      %1612 = vmatprep.subr.bf16.mxu0 0
      %1613 = vmatpush2.bf16.msra.mxu0 0
      %1614 = vmatprep.subr.bf16.mxu0 0
      %1615 = vmatpush2.bf16.msra.mxu0 0
      %1616 = vmatprep.subr.bf16.mxu0 0
      %1617 = vmatpush2.bf16.msra.mxu0 0
      %1618 = vmatprep.mubr.bf16.mxu0 0
      %1619 = vmatmul.mubr.bf16.gmra.mxu0 %v1517
      %v1620 = vpop.f32.mrf.mxu0
      %v1621 = vadd.f32 0.0, %v1620
      %v1622 = vpop.f32.mrf.mxu0
      %v1623 = vpop.f32.mrf.mxu0
      %v1624 = vadd.f32 0.0, %v1623
      %v1625 = vpop.f32.mrf.mxu0
      %1626 = vmatprep.mubr.bf16.mxu0 0
      %1627 = vmatmul.mubr.bf16.gmra.mxu0 %v1518
      %v1628 = vpop.f32.mrf.mxu0
      %v1629 = vadd.f32 0.0, %v1628
      %v1630 = vpop.f32.mrf.mxu0
      %v1631 = vpop.f32.mrf.mxu0
      %v1632 = vadd.f32 0.0, %v1631
      %v1633 = vpop.f32.mrf.mxu0
      %1634 = vmatprep.mubr.bf16.mxu0 0
      %1635 = vmatmul.mubr.bf16.gmra.mxu0 %v1519
      %v1636 = vpop.f32.mrf.mxu0
      %v1637 = vadd.f32 0.0, %v1636
      %v1638 = vpop.f32.mrf.mxu0
      %v1639 = vpop.f32.mrf.mxu0
      %v1640 = vadd.f32 0.0, %v1639
      %v1641 = vpop.f32.mrf.mxu0
      %1642 = vmatprep.mubr.bf16.mxu0 0
      %1643 = vmatmul.mubr.bf16.gmra.mxu0 %v1520
      %v1644 = vpop.f32.mrf.mxu0
      %v1645 = vadd.f32 0.0, %v1644
      %v1646 = vpop.f32.mrf.mxu0
      %v1647 = vpop.f32.mrf.mxu0
      %v1648 = vadd.f32 0.0, %v1647
      %v1649 = vpop.f32.mrf.mxu0
      %1650 = vdwg.mxu0
      %v1651 = vadd.f32 %v1501, %v1621
      %v1652 = vadd.f32 %v1502, %v1624
      %v1653 = vadd.f32 %v1503, %v1629
      %v1654 = vadd.f32 %v1504, %v1632
      %v1655 = vadd.f32 %v1505, %v1637
      %v1656 = vadd.f32 %v1506, %v1640
      %v1657 = vadd.f32 %v1507, %v1645
      %v1658 = vadd.f32 %v1508, %v1648
      %v1659 = vld [vmem:[%s2] sm:$0x1]
      %v1661 = vlaneseq
      %v1662 = vshrl.u32 %v1661, 7
      %v1663 = vsub.s32 0, %v1662
      %v1664 = vrot.slane %v1659, %v1663
      %v1666 = vadd.f32 %v1651, %v1664
      %v1667 = vadd.f32 %v1652, %v1664
      %v1668 = vadd.f32 %v1653, %v1664
      %v1669 = vadd.f32 %v1654, %v1664
      %v1670 = vadd.f32 %v1655, %v1664
      %v1671 = vadd.f32 %v1656, %v1664
      %v1672 = vadd.f32 %v1657, %v1664
      %v1673 = vadd.f32 %v1658, %v1664
      %v1674 = vld [vmem:[%s3] sm:$0x1]
      %v1676 = vlaneseq
      %v1677 = vshrl.u32 %v1676, 7
      %v1678 = vsub.s32 0, %v1677
      %v1679 = vrot.slane %v1674, %v1678
      %v1681 = vmul.f32 %v1666, %v1679
      %v1682 = vmul.f32 %v1667, %v1679
      %v1683 = vmul.f32 %v1668, %v1679
      %v1684 = vmul.f32 %v1669, %v1679
      %v1685 = vmul.f32 %v1670, %v1679
      %v1686 = vmul.f32 %v1671, %v1679
      %v1687 = vmul.f32 %v1672, %v1679
      %v1688 = vmul.f32 %v1673, %v1679
      %v1689 = vld [vmem:[%s4] sm:$0x1]
      %v1691 = vlaneseq
      %v1692 = vshrl.u32 %v1691, 7
      %v1693 = vsub.s32 0, %v1692
      %v1694 = vrot.slane %v1689, %v1693
      %v1696 = vadd.f32 %v1681, %v1694
      %v1697 = vadd.f32 %v1682, %v1694
      %v1698 = vadd.f32 %v1683, %v1694
      %v1699 = vadd.f32 %v1684, %v1694
      %v1700 = vadd.f32 %v1685, %v1694
      %v1701 = vadd.f32 %v1686, %v1694
      %v1702 = vadd.f32 %v1687, %v1694
      %v1703 = vadd.f32 %v1688, %v1694
      %vm1704 = vcmp.ge.f32.partialorder %v1696, 0.0
      %vm1705 = vcmp.ge.f32.partialorder %v1697, 0.0
      %vm1706 = vcmp.ge.f32.partialorder %v1698, 0.0
      %vm1707 = vcmp.ge.f32.partialorder %v1699, 0.0
      %vm1708 = vcmp.ge.f32.partialorder %v1700, 0.0
      %vm1709 = vcmp.ge.f32.partialorder %v1701, 0.0
      %vm1710 = vcmp.ge.f32.partialorder %v1702, 0.0
      %vm1711 = vcmp.ge.f32.partialorder %v1703, 0.0
      %v1712 = vmul.f32 %v1696, 0.01
      %v1713 = vmul.f32 %v1697, 0.01
      %v1714 = vmul.f32 %v1698, 0.01
      %v1715 = vmul.f32 %v1699, 0.01
      %v1716 = vmul.f32 %v1700, 0.01
      %v1717 = vmul.f32 %v1701, 0.01
      %v1718 = vmul.f32 %v1702, 0.01
      %v1719 = vmul.f32 %v1703, 0.01
      %v1720 = vsel %vm1704, %v1696, %v1712
      %v1721 = vsel %vm1705, %v1697, %v1713
      %v1722 = vsel %vm1706, %v1698, %v1714
      %v1723 = vsel %vm1707, %v1699, %v1715
      %v1724 = vsel %vm1708, %v1700, %v1716
      %v1725 = vsel %vm1709, %v1701, %v1717
      %v1726 = vsel %vm1710, %v1702, %v1718
      %v1727 = vsel %vm1711, %v1703, %v1719
      %1728 = vst [vmem:[%s246] sm:$0xff] %v1720
      %1729 = vst [vmem:[%s246 + $0x8] sm:$0xff] %v1721
      %1730 = vst [vmem:[%s246 + $0x10] sm:$0xff] %v1722
      %1731 = vst [vmem:[%s246 + $0x18] sm:$0xff] %v1723
      %1732 = vst [vmem:[%s246 + $0x20] sm:$0xff] %v1724
      %1733 = vst [vmem:[%s246 + $0x28] sm:$0xff] %v1725
      %1734 = vst [vmem:[%s246 + $0x30] sm:$0xff] %v1726
      %1735 = vst [vmem:[%s246 + $0x38] sm:$0xff] %v1727
      %p1736 = scmp.lt.s32.totalorder %s20, 1
      %s1737 = scalar_select %p1736, %s20, 1
      %p1738 = scmp.lt.s32.totalorder %s21, 1
      %s1739 = scalar_select %p1738, %s21, 1
      %s1740 = smul.addr %s1739, 8
      %s1741 = smul.addr %s1737, 16
      %s1742 = sadd.s32 %s1740, %s1741
      %s1743 = smul.addr %s1742, 8
      %s1744 = scalar_lea.vmem %s5, %s1743
      // Predicated region
      $region49: #{upblock_forward.5} parent=39 // pred_check
        %p1745 = pneg %p158
      $region50: #{upblock_forward.5} parent=39 // pred_check_branch
        %1747 = sbr.rel (%p1745) target = $region52
      $region51: #{upblock_forward.5} parent=39 // pred_region
        _
      $region52: #{upblock_forward.5} parent=39 // pred_fallthru
        _
    $region40: #{upblock_forward.5} parent=5 // pred_fallthru
      _
    %p1748 = scmp.le.s32.totalorder 2, %s11
    // Predicated region
    $region53: #{upblock_forward.5} parent=5 // pred_check
      %p1749 = pneg %p1748
    $region54: #{upblock_forward.5} parent=5 // pred_check_branch
      %1751 = sbr.rel (%p1749) target = $region56
    $region55: #{upblock_forward.5} parent=5 // pred_region
      %s1752 = ssub.s32 %s11, 2
      // Predicated region
      $region57: #{upblock_forward.5} parent=55 // pred_check
        %p1753 = pneg %p164
      $region58: #{upblock_forward.5} parent=55 // pred_check_branch
        %1755 = sbr.rel (%p1753) target = $region60
      $region59: #{upblock_forward.5} parent=55 // pred_region
        %p1756 = scmp.lt.s32.totalorder %s22, 1
        %s1757 = scalar_select %p1756, %s22, 1
        %p1758 = scmp.lt.s32.totalorder %s23, 1
        %s1759 = scalar_select %p1758, %s23, 1
        %s1760 = smul.addr %s1759, 8
        %s1761 = smul.addr %s1757, 16
        %s1762 = sadd.s32 %s1760, %s1761
        %s1763 = smul.addr %s1762, 8
        %s1764 = scalar_lea.vmem %s5, %s1763
      $region60: #{upblock_forward.5} parent=55 // pred_fallthru
        _
    $region56: #{upblock_forward.5} parent=5 // pred_fallthru
      _
  $region6: #{upblock_forward.5} parent=0 // loop_footer
    %s15 = sadd.s32 1, %s11
  $region7: #{upblock_forward.5} parent=0 // loop_footer_branch
    %10 = sbr.rel target = $region3
  $region8: #{upblock_forward.5} parent=0 // loop_exit
    _

</llo_original>
